<compile_context>
chip_gen: v7x
topology: tpu7x:2x2x1
jax: 0.10.0
libtpu: 0.0.40
codegen_flags: <defaults>
</compile_context>

<pallas_src>
import functools

import jax
import jax.numpy as jnp
from jax.experimental import pallas as pl
from jax.experimental.pallas import tpu as pltpu

_BN_EPS = 1e-5
_CENTER_SIZE = 7


# ----------------------------------------------------------------------------
# Fused Pallas kernel: one grid step == one batch block, everything in VMEM.
# ----------------------------------------------------------------------------
def _neck_fused_kernel(z_ref, x_ref, wmap_ref, vmask_ref, w_ref, b_ref,
                       o_ref, p_ref, y_ref, *,
                       bb, chid, cin_p, wz, hz, wx, hx, center_size):
    nz = hz * wz                      # z (template) frame, flattened
    nx = hx * wx                      # x (search) frame, flattened
    kc = center_size - 2              # x-corr kernel spatial size (5)
    pad = kc // 2                     # x-corr padding (2)
    m = pad * wx + pad                # max |flat x-corr offset|
    nsw = nx + 2 * m                  # wide search-frame width
    wzf = nz + 2 * wz + 2             # padded flat z width per element
    wxf = nx + 2 * m + 2 * wx + 2     # padded flat x width per element
    zlen = bb * nz                    # lane offset where the x region starts
    l = (wz - center_size) // 2       # center-crop offset of the template
    C = chid

    # ---- im2col of the RAW padded frames (the 1x1 downsample is folded into
    #      the conv-head weights) -> VMEM patch scratch.  Static lane slices,
    #      8-sublane-aligned stores (cin_p is a multiple of 8).
    for j in range(bb):
        zb, xb = j * wzf, j * wxf
        for dy in range(3):
            for dx in range(3):
                r0 = (dy * 3 + dx) * cin_p
                zoff = zb + dy * wz + dx
                xoff = xb + dy * wx + dx
                p_ref[r0:r0 + cin_p, j * nz:j * nz + nz] = \
                    z_ref[:, zoff:zoff + nz]
                p_ref[r0:r0 + cin_p, zlen + j * nsw:zlen + j * nsw + nsw] = \
                    x_ref[:, xoff:xoff + nsw]

    # ---- ONE MXU matmul for the whole batch block, both frames and all three
    #      conv heads (downsample + BN composed into the weights) + bias + ReLU.
    y_ref[...] = jnp.maximum(
        jnp.dot(w_ref[...], p_ref[...], preferred_element_type=jnp.float32)
        + b_ref[...], 0.0)

    # ---- per batch element: PrRoIPool(1,1), |diff|, depthwise x-corr, stores.
    for j in range(bb):
        zo = j * nz
        xo = zlen + j * nsw
        ob = j * 3 * C

        kernel_diff = y_ref[0:C, zo:zo + nz]                            # (C, nz)
        search_diff = y_ref[0:C, xo + m:xo + m + nx]                    # (C, nx)
        search_corr = y_ref[2 * C:3 * C, xo:xo + nsw] * vmask_ref[...]  # (C, nsw)

        # PrRoIPool2D(1,1,1/8): analytic tent weights (zero outside valid 7x7)
        kvec = jnp.sum(kernel_diff * wmap_ref[:, zo:zo + nz],
                       axis=1, keepdims=True)                           # (C, 1)

        # hoist the 5x5 kernel_corr taps into one compact (C, 25) block
        # (conv-of-crop == crop-of-conv for the VALID 3x3 conv)
        ktaps = jnp.concatenate(
            [y_ref[C:2 * C,
                   zo + (dy + l) * wz + l: zo + (dy + l) * wz + l + kc]
             for dy in range(kc)], axis=1)                              # (C, 25)

        # depthwise x-corr: kc independent accumulator chains (one per tap row)
        parts = []
        for dy in range(kc):
            part = None
            for dx in range(kc):
                t = dy * kc + dx
                kcol = ktaps[:, t:t + 1]                                # (C, 1)
                s0 = m + (dy - pad) * wx + (dx - pad)
                term = kcol * search_corr[:, s0:s0 + nx]                # (C, nx)
                part = term if part is None else part + term
            parts.append(part)
        while len(parts) > 1:                                           # tree sum
            nxt = [parts[i] + parts[i + 1] for i in range(0, len(parts) - 1, 2)]
            if len(parts) % 2:
                nxt.append(parts[-1])
            parts = nxt
        feature_corr = parts[0]                                         # (C, nx)

        # three lane-dense (C, 256) stores == torch.cat(dim=1) in NCHW layout
        o_ref[ob:ob + C, :] = jnp.abs(search_diff - kvec)
        o_ref[ob + C:ob + 2 * C, :] = search_diff
        o_ref[ob + 2 * C:ob + 3 * C, :] = feature_corr


# ----------------------------------------------------------------------------
# Precise RoI pooling weights (analytic, exact — glue JAX)
# ----------------------------------------------------------------------------
def _hat_cdf(t):
    # Antiderivative of the tent function max(0, 1 - |s|), evaluated at t.
    t = jnp.clip(t, -1.0, 1.0)
    return jnp.where(t <= 0.0, 0.5 * (t + 1.0) ** 2, 1.0 - 0.5 * (1.0 - t) ** 2)


def _prroi_weights(boxes, spatial_scale, hk, wk):
    x1 = boxes[:, 0] * spatial_scale
    y1 = boxes[:, 1] * spatial_scale
    x2 = boxes[:, 2] * spatial_scale
    y2 = boxes[:, 3] * spatial_scale
    ix = jnp.arange(wk, dtype=jnp.float32)
    iy = jnp.arange(hk, dtype=jnp.float32)
    wx_ = _hat_cdf(x2[:, None] - ix[None, :]) - _hat_cdf(x1[:, None] - ix[None, :])
    wy_ = _hat_cdf(y2[:, None] - iy[None, :]) - _hat_cdf(y1[:, None] - iy[None, :])
    area = jnp.maximum((x2 - x1) * (y2 - y1), 0.0)
    inv = jnp.where(area > 0.0, 1.0 / area, 0.0)
    return wy_[:, :, None] * wx_[:, None, :] * inv[:, None, None]   # (B, Hk, Wk)


# ----------------------------------------------------------------------------
# Module forward (num_levels == 1 path of NeckAllLayer)
# ----------------------------------------------------------------------------
def neck_all_layer_forward(params, z_features_nchw, x_features_nchw, bbox,
                           center_size=_CENTER_SIZE, batch_block=None):
    z = z_features_nchw.astype(jnp.float32)
    x = x_features_nchw.astype(jnp.float32)
    b, cin, hz, wz = z.shape
    _, _, hx, wx = x.shape
    chid = params["down_w"].shape[1]
    p = params["matchcat"]

    nz, nx = hz * wz, hx * wx
    ho, wo = hx - 2, wx - 2                 # valid search conv output
    hk, wk = hz - 2, wz - 2                 # valid template conv output
    kc = center_size - 2
    pad = kc // 2
    m = pad * wx + pad
    nsw = nx + 2 * m
    wzf = nz + 2 * wz + 2
    wxf = nx + 2 * m + 2 * wx + 2
    assert pad <= hx - ho and pad <= wx - wo  # frame margin covers x-corr padding

    # batch-block size: fold 2 elements/step when batch allows, but always keep
    # >= 2 grid steps for B >= 2 so both v7x TensorCores stay busy.
    if batch_block is None:
        batch_block = 2 if b >= 4 else 1
    bb = int(batch_block)
    nb = -(-b // bb)
    b_pad = nb * bb
    cin_p = ((cin + 7) // 8) * 8            # sublane-aligned patch-stack rows

    # ---- flatten spatial onto the lane axis; pad channels + frame tails so
    #      every in-kernel tap is a static lane slice; fold bb batch elements
    #      onto the lane axis (one wide slab per grid step).
    z_flat = jnp.pad(z.reshape(b, cin, nz),
                     ((0, b_pad - b), (0, cin_p - cin), (0, 2 * wz + 2)))
    x_flat = jnp.pad(x.reshape(b, cin, nx),
                     ((0, b_pad - b), (0, cin_p - cin), (m, m + 2 * wx + 2)))
    zw = z_flat.reshape(nb, bb, cin_p, wzf).transpose(0, 2, 1, 3) \
               .reshape(nb, cin_p, bb * wzf)
    xw = x_flat.reshape(nb, bb, cin_p, wxf).transpose(0, 2, 1, 3) \
               .reshape(nb, cin_p, bb * wxf)

    # ---- compose (1x1 downsample conv + BN) INTO each 3x3 conv+BN head and
    #      stack all three heads into a single (3C, 9*cin_p) weight.
    hi = jax.lax.Precision.HIGHEST
    w1s = params["down_w"] * params["down_scale"][None, :]           # (Cin, C)

    def compose(w3_hwio, s_h, b_h):
        w_eff = jnp.einsum("ic,hwco->hwio", w1s, w3_hwio, precision=hi) * s_h
        b_eff = jnp.einsum("hwco,c->o", w3_hwio, params["down_shift"],
                           precision=hi) * s_h + b_h
        w_eff = jnp.pad(w_eff.reshape(9, cin, chid),
                        ((0, 0), (0, cin_p - cin), (0, 0)))
        return w_eff.reshape(9 * cin_p, chid).T, b_eff                # (C, 9*cin_p)

    wd_eff, bd_eff = compose(p["diff_w"], p["diff_scale"], p["diff_shift"])
    wk_eff, bk_eff = compose(p["ker_w"], p["ker_scale"], p["ker_shift"])
    ws_eff, bs_eff = compose(p["sea_w"], p["sea_scale"], p["sea_shift"])
    w_all = jnp.concatenate([wd_eff, wk_eff, ws_eff], axis=0)         # (3C, 9*cin_p)
    b_all = jnp.concatenate([bd_eff, bk_eff, bs_eff])[:, None]        # (3C, 1)

    # ---- PrRoI weights embedded in the (hz, wz) frame; valid-region mask for x-corr
    wmap = _prroi_weights(bbox.astype(jnp.float32), 1.0 / 8.0, hk, wk)
    wmap = jnp.pad(wmap, ((0, b_pad - b), (0, hz - hk), (0, wz - wk)))
    wmap = wmap.reshape(nb, 1, bb * nz).astype(jnp.float32)

    ii = jnp.arange(nx) // wx
    jj = jnp.arange(nx) % wx
    vmask = ((ii < ho) & (jj < wo)).astype(jnp.float32)
    vmask = jnp.pad(vmask, (m, m)).reshape(1, nsw)

    kern = functools.partial(_neck_fused_kernel, bb=bb, chid=chid, cin_p=cin_p,
                             wz=wz, hz=hz, wx=wx, hx=hx, center_size=center_size)

    out = pl.pallas_call(
        kern,
        out_shape=jax.ShapeDtypeStruct((nb, bb * 3 * chid, nx), jnp.float32),
        grid_spec=pltpu.PrefetchScalarGridSpec(
            num_scalar_prefetch=0,
            grid=(nb,),
            in_specs=[
                pl.BlockSpec((None, cin_p, bb * wzf), lambda i: (i, 0, 0)),
                pl.BlockSpec((None, cin_p, bb * wxf), lambda i: (i, 0, 0)),
                pl.BlockSpec((None, 1, bb * nz), lambda i: (i, 0, 0)),
                pl.BlockSpec((1, nsw), lambda i: (0, 0)),
                pl.BlockSpec((3 * chid, 9 * cin_p), lambda i: (0, 0)),
                pl.BlockSpec((3 * chid, 1), lambda i: (0, 0)),
            ],
            out_specs=pl.BlockSpec((None, bb * 3 * chid, nx), lambda i: (i, 0, 0)),
            scratch_shapes=[
                pltpu.VMEM((9 * cin_p, bb * (nz + nsw)), jnp.float32),   # im2col
                pltpu.VMEM((3 * chid, bb * (nz + nsw)), jnp.float32),    # conv out
            ]),
        compiler_params=pltpu.CompilerParams(dimension_semantics=("parallel",)),
    )(zw, xw, wmap, vmask, w_all, b_all)

    # (nb, bb*3C, nx) is already channel-first per element: free reshape, drop
    # the batch padding and crop to the valid (ho, wo) conv output.
    feat = out.reshape(b_pad, 3 * chid, hx, wx)[:b, :, :ho, :wo]
    return [feat]


# ----------------------------------------------------------------------------
# Deterministic parameter initialization (eval-mode BN folded into scale/shift)
# ----------------------------------------------------------------------------
def _fold_bn(gamma, beta, mean, var):
    scale = gamma / jnp.sqrt(var + _BN_EPS)
    shift = beta - mean * scale
    return scale, shift


def init_params(key, in_channels, out_channels):
    hid = out_channels
    keys = iter(jax.random.split(key, 32))

    def nrm(shape, fan_in):
        return jax.random.normal(next(keys), shape, jnp.float32) / jnp.sqrt(float(fan_in))

    def bn_params(c):
        gamma = 1.0 + 0.1 * jax.random.normal(next(keys), (c,), jnp.float32)
        beta = 0.1 * jax.random.normal(next(keys), (c,), jnp.float32)
        mean = 0.1 * jax.random.normal(next(keys), (c,), jnp.float32)
        var = 0.9 + 0.2 * jax.random.uniform(next(keys), (c,), jnp.float32)
        return _fold_bn(gamma, beta, mean, var)

    down_w = nrm((in_channels, out_channels), in_channels)          # 1x1 conv (Cin, Cout)
    down_scale, down_shift = bn_params(out_channels)

    def conv3(cin, cout):
        w = nrm((3, 3, cin, cout), 9 * cin)                         # HWIO
        s, b = bn_params(cout)
        return w, s, b

    diff_w, diff_s, diff_b = conv3(hid, hid)
    ker_w, ker_s, ker_b = conv3(hid, hid)
    sea_w, sea_s, sea_b = conv3(hid, hid)

    return dict(
        down_w=down_w, down_scale=down_scale, down_shift=down_shift,
        matchcat=dict(
            diff_w=diff_w, diff_scale=diff_s, diff_shift=diff_b,
            ker_w=ker_w, ker_scale=ker_s, ker_shift=ker_b,
            sea_w=sea_w, sea_scale=sea_s, sea_shift=sea_b,
        ),
    )


# ----------------------------------------------------------------------------
# Pure-JAX (XLA) reference for numerical validation
# ----------------------------------------------------------------------------
def _ref_conv(x, w_hwio, scale, shift, relu):
    y = jax.lax.conv_general_dilated(
        x, w_hwio, window_strides=(1, 1), padding="VALID",
        dimension_numbers=("NHWC", "HWIO", "NHWC"),
        precision=jax.lax.Precision.HIGHEST)
    y = y * scale + shift
    return jnp.maximum(y, 0.0) if relu else y


def _ref_xcorr(search, kern):
    b, h, w, c = search.shape
    kh = kern.shape[1]
    x = jnp.transpose(search, (0, 3, 1, 2)).reshape(1, b * c, h, w)
    k = jnp.transpose(kern, (0, 3, 1, 2)).reshape(b * c, 1, kh, kh)
    out = jax.lax.conv_general_dilated(
        x, k, (1, 1), [(kh // 2, kh // 2)] * 2,
        dimension_numbers=("NCHW", "OIHW", "NCHW"),
        feature_group_count=b * c, precision=jax.lax.Precision.HIGHEST)
    return jnp.transpose(out.reshape(b, c, h, w), (0, 2, 3, 1))


def ref_forward(params, z_nchw, x_nchw, bbox, center_size=_CENTER_SIZE):
    p = params["matchcat"]
    z = jnp.transpose(z_nchw, (0, 2, 3, 1))
    x = jnp.transpose(x_nchw, (0, 2, 3, 1))
    w1 = params["down_w"][None, None]
    kernel = _ref_conv(z, w1, params["down_scale"], params["down_shift"], False)
    search = _ref_conv(x, w1, params["down_scale"], params["down_shift"], False)
    kernel_diff = _ref_conv(kernel, p["diff_w"], p["diff_scale"], p["diff_shift"], True)
    search_diff = _ref_conv(search, p["diff_w"], p["diff_scale"], p["diff_shift"], True)
    hk, wk = kernel_diff.shape[1], kernel_diff.shape[2]
    wmap = _prroi_weights(bbox, 1.0 / 8.0, hk, wk)
    kv = jnp.einsum("bhwc,bhw->bc", kernel_diff, wmap)
    l = (kernel.shape[2] - center_size) // 2
    r = l + center_size
    kernel_corr = _ref_conv(kernel[:, l:r, l:r, :], p["ker_w"], p["ker_scale"],
                            p["ker_shift"], True)
    search_corr = _ref_conv(search, p["sea_w"], p["sea_scale"], p["sea_shift"], True)
    feature_corr = _ref_xcorr(search_corr, kernel_corr)
    feat = jnp.concatenate(
        [jnp.abs(search_diff - kv[:, None, None, :]), search_diff, feature_corr], axis=-1)
    return [jnp.transpose(feat, (0, 3, 1, 2))]


# ----------------------------------------------------------------------------
if __name__ == "__main__":
    key = jax.random.PRNGKey(0)
    kp, kz, kx = jax.random.split(key, 3)

    in_channels, out_channels = [4], [8]          # NeckAllLayer([4], [8]) -> num == 1
    params = init_params(kp, in_channels[0], out_channels[0])

    B = 4                                         # folded 2-per-step -> grid = 2
    z_features = jax.random.normal(kz, (B, in_channels[0], 9, 9), jnp.float32)
    x_features = jax.random.normal(kx, (B, in_channels[0], 16, 16), jnp.float32)
    bbox = jnp.array([[8.0, 8.0, 48.0, 48.0],
                      [4.0, 12.0, 52.0, 44.0],
                      [0.0, 0.0, 40.0, 40.0],
                      [12.0, 6.0, 50.0, 52.0]], jnp.float32)

    fwd = jax.jit(neck_all_layer_forward)
    feats = fwd(params, z_features, x_features, bbox)
    out = jax.block_until_ready(feats[0])

    ref = ref_forward(params, z_features, x_features, bbox)[0]
    assert out.shape == (B, 3 * out_channels[0], 14, 14), out.shape
    assert bool(jnp.all(jnp.isfinite(out)))
    max_err = float(jnp.max(jnp.abs(out - ref)))
    assert bool(jnp.allclose(out, ref, atol=1e-3, rtol=1e-3)), max_err

    print("KERNEL_OK")
</pallas_src>

<mosaic_0001>
module attributes {stable_mosaic.version = 11 : i64} {
  func.func @_neck_fused_kernel(%arg0: i32, %arg1: memref<1x8x202xf32, #tpu.memory_space<vmem>>, %arg2: memref<1x8x716xf32, #tpu.memory_space<vmem>>, %arg3: memref<1x1x162xf32, #tpu.memory_space<vmem>>, %arg4: memref<1x324xf32, #tpu.memory_space<vmem>>, %arg5: memref<24x72xf32, #tpu.memory_space<vmem>>, %arg6: memref<24x1xf32, #tpu.memory_space<vmem>>, %arg7: memref<1x48x256xf32, #tpu.memory_space<vmem>>, %arg8: memref<72x810xf32, #tpu.memory_space<vmem>>, %arg9: memref<24x810xf32, #tpu.memory_space<vmem>>) attributes {dimension_semantics = [#tpu.dimension_semantics<parallel>], iteration_bounds = array<i64: 2>, scalar_prefetch = 0 : i64, scratch_operands = 2 : i64, tpu.core_type = #tpu.core_type<tc>, window_params = [{transform_indices = @transform_0, window_bounds = array<i64: 1, 8, 202>}, {transform_indices = @transform_1, window_bounds = array<i64: 1, 8, 716>}, {transform_indices = @transform_2, window_bounds = array<i64: 1, 1, 162>}, {pipeline_mode = #tpu.pipeline_mode<synchronous>, transform_indices = @transform_3, window_bounds = array<i64: 1, 324>}, {pipeline_mode = #tpu.pipeline_mode<synchronous>, transform_indices = @transform_4, window_bounds = array<i64: 24, 72>}, {pipeline_mode = #tpu.pipeline_mode<synchronous>, transform_indices = @transform_5, window_bounds = array<i64: 24, 1>}, {transform_indices = @transform_6, window_bounds = array<i64: 1, 48, 256>}]} {
    %c0 = arith.constant 0 : index
    %c0_0 = arith.constant 0 : index
    %c0_1 = arith.constant 0 : index
    %0 = vector.load %arg1[%c0, %c0_0, %c0_1] : memref<1x8x202xf32, #tpu.memory_space<vmem>>, vector<1x8x81xf32>
    %1 = vector.shape_cast %0 : vector<1x8x81xf32> to vector<8x81xf32>
    %c0_2 = arith.constant 0 : index
    %c0_3 = arith.constant 0 : index
    %2 = vector.load %arg8[%c0_2, %c0_3] : memref<72x810xf32, #tpu.memory_space<vmem>>, vector<8x81xf32>
    tpu.vector_store %arg8[%c0_2, %c0_3], %1 {strides = array<i32>} : memref<72x810xf32, #tpu.memory_space<vmem>>, vector<8x81xf32>,
    %c0_4 = arith.constant 0 : index
    %c0_5 = arith.constant 0 : index
    %c0_6 = arith.constant 0 : index
    %3 = vector.load %arg2[%c0_4, %c0_5, %c0_6] : memref<1x8x716xf32, #tpu.memory_space<vmem>>, vector<1x8x324xf32>
    %4 = vector.shape_cast %3 : vector<1x8x324xf32> to vector<8x324xf32>
    %c0_7 = arith.constant 0 : index
    %c162 = arith.constant 162 : index
    %5 = vector.load %arg8[%c0_7, %c162] : memref<72x810xf32, #tpu.memory_space<vmem>>, vector<8x324xf32>
    tpu.vector_store %arg8[%c0_7, %c162], %4 {strides = array<i32>} : memref<72x810xf32, #tpu.memory_space<vmem>>, vector<8x324xf32>,
    %c0_8 = arith.constant 0 : index
    %c0_9 = arith.constant 0 : index
    %c1 = arith.constant 1 : index
    %6 = vector.load %arg1[%c0_8, %c0_9, %c1] : memref<1x8x202xf32, #tpu.memory_space<vmem>>, vector<1x8x81xf32>
    %7 = vector.shape_cast %6 : vector<1x8x81xf32> to vector<8x81xf32>
    %c8 = arith.constant 8 : index
    %c0_10 = arith.constant 0 : index
    %8 = vector.load %arg8[%c8, %c0_10] : memref<72x810xf32, #tpu.memory_space<vmem>>, vector<8x81xf32>
    tpu.vector_store %arg8[%c8, %c0_10], %7 {strides = array<i32>} : memref<72x810xf32, #tpu.memory_space<vmem>>, vector<8x81xf32>,
    %c0_11 = arith.constant 0 : index
    %c0_12 = arith.constant 0 : index
    %c1_13 = arith.constant 1 : index
    %9 = vector.load %arg2[%c0_11, %c0_12, %c1_13] : memref<1x8x716xf32, #tpu.memory_space<vmem>>, vector<1x8x324xf32>
    %10 = vector.shape_cast %9 : vector<1x8x324xf32> to vector<8x324xf32>
    %c8_14 = arith.constant 8 : index
    %c162_15 = arith.constant 162 : index
    %11 = vector.load %arg8[%c8_14, %c162_15] : memref<72x810xf32, #tpu.memory_space<vmem>>, vector<8x324xf32>
    tpu.vector_store %arg8[%c8_14, %c162_15], %10 {strides = array<i32>} : memref<72x810xf32, #tpu.memory_space<vmem>>, vector<8x324xf32>,
    %c0_16 = arith.constant 0 : index
    %c0_17 = arith.constant 0 : index
    %c2 = arith.constant 2 : index
    %12 = vector.load %arg1[%c0_16, %c0_17, %c2] : memref<1x8x202xf32, #tpu.memory_space<vmem>>, vector<1x8x81xf32>
    %13 = vector.shape_cast %12 : vector<1x8x81xf32> to vector<8x81xf32>
    %c16 = arith.constant 16 : index
    %c0_18 = arith.constant 0 : index
    %14 = vector.load %arg8[%c16, %c0_18] : memref<72x810xf32, #tpu.memory_space<vmem>>, vector<8x81xf32>
    tpu.vector_store %arg8[%c16, %c0_18], %13 {strides = array<i32>} : memref<72x810xf32, #tpu.memory_space<vmem>>, vector<8x81xf32>,
    %c0_19 = arith.constant 0 : index
    %c0_20 = arith.constant 0 : index
    %c2_21 = arith.constant 2 : index
    %15 = vector.load %arg2[%c0_19, %c0_20, %c2_21] : memref<1x8x716xf32, #tpu.memory_space<vmem>>, vector<1x8x324xf32>
    %16 = vector.shape_cast %15 : vector<1x8x324xf32> to vector<8x324xf32>
    %c16_22 = arith.constant 16 : index
    %c162_23 = arith.constant 162 : index
    %17 = vector.load %arg8[%c16_22, %c162_23] : memref<72x810xf32, #tpu.memory_space<vmem>>, vector<8x324xf32>
    tpu.vector_store %arg8[%c16_22, %c162_23], %16 {strides = array<i32>} : memref<72x810xf32, #tpu.memory_space<vmem>>, vector<8x324xf32>,
    %c0_24 = arith.constant 0 : index
    %c0_25 = arith.constant 0 : index
    %c9 = arith.constant 9 : index
    %18 = vector.load %arg1[%c0_24, %c0_25, %c9] : memref<1x8x202xf32, #tpu.memory_space<vmem>>, vector<1x8x81xf32>
    %19 = vector.shape_cast %18 : vector<1x8x81xf32> to vector<8x81xf32>
    %c24 = arith.constant 24 : index
    %c0_26 = arith.constant 0 : index
    %20 = vector.load %arg8[%c24, %c0_26] : memref<72x810xf32, #tpu.memory_space<vmem>>, vector<8x81xf32>
    tpu.vector_store %arg8[%c24, %c0_26], %19 {strides = array<i32>} : memref<72x810xf32, #tpu.memory_space<vmem>>, vector<8x81xf32>,
    %c0_27 = arith.constant 0 : index
    %c0_28 = arith.constant 0 : index
    %c16_29 = arith.constant 16 : index
    %21 = vector.load %arg2[%c0_27, %c0_28, %c16_29] : memref<1x8x716xf32, #tpu.memory_space<vmem>>, vector<1x8x324xf32>
    %22 = vector.shape_cast %21 : vector<1x8x324xf32> to vector<8x324xf32>
    %c24_30 = arith.constant 24 : index
    %c162_31 = arith.constant 162 : index
    %23 = vector.load %arg8[%c24_30, %c162_31] : memref<72x810xf32, #tpu.memory_space<vmem>>, vector<8x324xf32>
    tpu.vector_store %arg8[%c24_30, %c162_31], %22 {strides = array<i32>} : memref<72x810xf32, #tpu.memory_space<vmem>>, vector<8x324xf32>,
    %c0_32 = arith.constant 0 : index
    %c0_33 = arith.constant 0 : index
    %c10 = arith.constant 10 : index
    %24 = vector.load %arg1[%c0_32, %c0_33, %c10] : memref<1x8x202xf32, #tpu.memory_space<vmem>>, vector<1x8x81xf32>
    %25 = vector.shape_cast %24 : vector<1x8x81xf32> to vector<8x81xf32>
    %c32 = arith.constant 32 : index
    %c0_34 = arith.constant 0 : index
    %26 = vector.load %arg8[%c32, %c0_34] : memref<72x810xf32, #tpu.memory_space<vmem>>, vector<8x81xf32>
    tpu.vector_store %arg8[%c32, %c0_34], %25 {strides = array<i32>} : memref<72x810xf32, #tpu.memory_space<vmem>>, vector<8x81xf32>,
    %c0_35 = arith.constant 0 : index
    %c0_36 = arith.constant 0 : index
    %c17 = arith.constant 17 : index
    %27 = vector.load %arg2[%c0_35, %c0_36, %c17] : memref<1x8x716xf32, #tpu.memory_space<vmem>>, vector<1x8x324xf32>
    %28 = vector.shape_cast %27 : vector<1x8x324xf32> to vector<8x324xf32>
    %c32_37 = arith.constant 32 : index
    %c162_38 = arith.constant 162 : index
    %29 = vector.load %arg8[%c32_37, %c162_38] : memref<72x810xf32, #tpu.memory_space<vmem>>, vector<8x324xf32>
    tpu.vector_store %arg8[%c32_37, %c162_38], %28 {strides = array<i32>} : memref<72x810xf32, #tpu.memory_space<vmem>>, vector<8x324xf32>,
    %c0_39 = arith.constant 0 : index
    %c0_40 = arith.constant 0 : index
    %c11 = arith.constant 11 : index
    %30 = vector.load %arg1[%c0_39, %c0_40, %c11] : memref<1x8x202xf32, #tpu.memory_space<vmem>>, vector<1x8x81xf32>
    %31 = vector.shape_cast %30 : vector<1x8x81xf32> to vector<8x81xf32>
    %c40 = arith.constant 40 : index
    %c0_41 = arith.constant 0 : index
    %32 = vector.load %arg8[%c40, %c0_41] : memref<72x810xf32, #tpu.memory_space<vmem>>, vector<8x81xf32>
    tpu.vector_store %arg8[%c40, %c0_41], %31 {strides = array<i32>} : memref<72x810xf32, #tpu.memory_space<vmem>>, vector<8x81xf32>,
    %c0_42 = arith.constant 0 : index
    %c0_43 = arith.constant 0 : index
    %c18 = arith.constant 18 : index
    %33 = vector.load %arg2[%c0_42, %c0_43, %c18] : memref<1x8x716xf32, #tpu.memory_space<vmem>>, vector<1x8x324xf32>
    %34 = vector.shape_cast %33 : vector<1x8x324xf32> to vector<8x324xf32>
    %c40_44 = arith.constant 40 : index
    %c162_45 = arith.constant 162 : index
    %35 = vector.load %arg8[%c40_44, %c162_45] : memref<72x810xf32, #tpu.memory_space<vmem>>, vector<8x324xf32>
    tpu.vector_store %arg8[%c40_44, %c162_45], %34 {strides = array<i32>} : memref<72x810xf32, #tpu.memory_space<vmem>>, vector<8x324xf32>,
    %c0_46 = arith.constant 0 : index
    %c0_47 = arith.constant 0 : index
    %c18_48 = arith.constant 18 : index
    %36 = vector.load %arg1[%c0_46, %c0_47, %c18_48] : memref<1x8x202xf32, #tpu.memory_space<vmem>>, vector<1x8x81xf32>
    %37 = vector.shape_cast %36 : vector<1x8x81xf32> to vector<8x81xf32>
    %c48 = arith.constant 48 : index
    %c0_49 = arith.constant 0 : index
    %38 = vector.load %arg8[%c48, %c0_49] : memref<72x810xf32, #tpu.memory_space<vmem>>, vector<8x81xf32>
    tpu.vector_store %arg8[%c48, %c0_49], %37 {strides = array<i32>} : memref<72x810xf32, #tpu.memory_space<vmem>>, vector<8x81xf32>,
    %c0_50 = arith.constant 0 : index
    %c0_51 = arith.constant 0 : index
    %c32_52 = arith.constant 32 : index
    %39 = vector.load %arg2[%c0_50, %c0_51, %c32_52] : memref<1x8x716xf32, #tpu.memory_space<vmem>>, vector<1x8x324xf32>
    %40 = vector.shape_cast %39 : vector<1x8x324xf32> to vector<8x324xf32>
    %c48_53 = arith.constant 48 : index
    %c162_54 = arith.constant 162 : index
    %41 = vector.load %arg8[%c48_53, %c162_54] : memref<72x810xf32, #tpu.memory_space<vmem>>, vector<8x324xf32>
    tpu.vector_store %arg8[%c48_53, %c162_54], %40 {strides = array<i32>} : memref<72x810xf32, #tpu.memory_space<vmem>>, vector<8x324xf32>,
    %c0_55 = arith.constant 0 : index
    %c0_56 = arith.constant 0 : index
    %c19 = arith.constant 19 : index
    %42 = vector.load %arg1[%c0_55, %c0_56, %c19] : memref<1x8x202xf32, #tpu.memory_space<vmem>>, vector<1x8x81xf32>
    %43 = vector.shape_cast %42 : vector<1x8x81xf32> to vector<8x81xf32>
    %c56 = arith.constant 56 : index
    %c0_57 = arith.constant 0 : index
    %44 = vector.load %arg8[%c56, %c0_57] : memref<72x810xf32, #tpu.memory_space<vmem>>, vector<8x81xf32>
    tpu.vector_store %arg8[%c56, %c0_57], %43 {strides = array<i32>} : memref<72x810xf32, #tpu.memory_space<vmem>>, vector<8x81xf32>,
    %c0_58 = arith.constant 0 : index
    %c0_59 = arith.constant 0 : index
    %c33 = arith.constant 33 : index
    %45 = vector.load %arg2[%c0_58, %c0_59, %c33] : memref<1x8x716xf32, #tpu.memory_space<vmem>>, vector<1x8x324xf32>
    %46 = vector.shape_cast %45 : vector<1x8x324xf32> to vector<8x324xf32>
    %c56_60 = arith.constant 56 : index
    %c162_61 = arith.constant 162 : index
    %47 = vector.load %arg8[%c56_60, %c162_61] : memref<72x810xf32, #tpu.memory_space<vmem>>, vector<8x324xf32>
    tpu.vector_store %arg8[%c56_60, %c162_61], %46 {strides = array<i32>} : memref<72x810xf32, #tpu.memory_space<vmem>>, vector<8x324xf32>,
    %c0_62 = arith.constant 0 : index
    %c0_63 = arith.constant 0 : index
    %c20 = arith.constant 20 : index
    %48 = vector.load %arg1[%c0_62, %c0_63, %c20] : memref<1x8x202xf32, #tpu.memory_space<vmem>>, vector<1x8x81xf32>
    %49 = vector.shape_cast %48 : vector<1x8x81xf32> to vector<8x81xf32>
    %c64 = arith.constant 64 : index
    %c0_64 = arith.constant 0 : index
    %50 = vector.load %arg8[%c64, %c0_64] : memref<72x810xf32, #tpu.memory_space<vmem>>, vector<8x81xf32>
    tpu.vector_store %arg8[%c64, %c0_64], %49 {strides = array<i32>} : memref<72x810xf32, #tpu.memory_space<vmem>>, vector<8x81xf32>,
    %c0_65 = arith.constant 0 : index
    %c0_66 = arith.constant 0 : index
    %c34 = arith.constant 34 : index
    %51 = vector.load %arg2[%c0_65, %c0_66, %c34] : memref<1x8x716xf32, #tpu.memory_space<vmem>>, vector<1x8x324xf32>
    %52 = vector.shape_cast %51 : vector<1x8x324xf32> to vector<8x324xf32>
    %c64_67 = arith.constant 64 : index
    %c162_68 = arith.constant 162 : index
    %53 = vector.load %arg8[%c64_67, %c162_68] : memref<72x810xf32, #tpu.memory_space<vmem>>, vector<8x324xf32>
    tpu.vector_store %arg8[%c64_67, %c162_68], %52 {strides = array<i32>} : memref<72x810xf32, #tpu.memory_space<vmem>>, vector<8x324xf32>,
    %c0_69 = arith.constant 0 : index
    %c0_70 = arith.constant 0 : index
    %c101 = arith.constant 101 : index
    %54 = vector.load %arg1[%c0_69, %c0_70, %c101] : memref<1x8x202xf32, #tpu.memory_space<vmem>>, vector<1x8x81xf32>
    %55 = vector.shape_cast %54 : vector<1x8x81xf32> to vector<8x81xf32>
    %c0_71 = arith.constant 0 : index
    %c81 = arith.constant 81 : index
    %56 = vector.load %arg8[%c0_71, %c81] : memref<72x810xf32, #tpu.memory_space<vmem>>, vector<8x81xf32>
    tpu.vector_store %arg8[%c0_71, %c81], %55 {strides = array<i32>} : memref<72x810xf32, #tpu.memory_space<vmem>>, vector<8x81xf32>,
    %c0_72 = arith.constant 0 : index
    %c0_73 = arith.constant 0 : index
    %c358 = arith.constant 358 : index
    %57 = vector.load %arg2[%c0_72, %c0_73, %c358] : memref<1x8x716xf32, #tpu.memory_space<vmem>>, vector<1x8x324xf32>
    %58 = vector.shape_cast %57 : vector<1x8x324xf32> to vector<8x324xf32>
    %c0_74 = arith.constant 0 : index
    %c486 = arith.constant 486 : index
    %59 = vector.load %arg8[%c0_74, %c486] : memref<72x810xf32, #tpu.memory_space<vmem>>, vector<8x324xf32>
    tpu.vector_store %arg8[%c0_74, %c486], %58 {strides = array<i32>} : memref<72x810xf32, #tpu.memory_space<vmem>>, vector<8x324xf32>,
    %c0_75 = arith.constant 0 : index
    %c0_76 = arith.constant 0 : index
    %c102 = arith.constant 102 : index
    %60 = vector.load %arg1[%c0_75, %c0_76, %c102] : memref<1x8x202xf32, #tpu.memory_space<vmem>>, vector<1x8x81xf32>
    %61 = vector.shape_cast %60 : vector<1x8x81xf32> to vector<8x81xf32>
    %c8_77 = arith.constant 8 : index
    %c81_78 = arith.constant 81 : index
    %62 = vector.load %arg8[%c8_77, %c81_78] : memref<72x810xf32, #tpu.memory_space<vmem>>, vector<8x81xf32>
    tpu.vector_store %arg8[%c8_77, %c81_78], %61 {strides = array<i32>} : memref<72x810xf32, #tpu.memory_space<vmem>>, vector<8x81xf32>,
    %c0_79 = arith.constant 0 : index
    %c0_80 = arith.constant 0 : index
    %c359 = arith.constant 359 : index
    %63 = vector.load %arg2[%c0_79, %c0_80, %c359] : memref<1x8x716xf32, #tpu.memory_space<vmem>>, vector<1x8x324xf32>
    %64 = vector.shape_cast %63 : vector<1x8x324xf32> to vector<8x324xf32>
    %c8_81 = arith.constant 8 : index
    %c486_82 = arith.constant 486 : index
    %65 = vector.load %arg8[%c8_81, %c486_82] : memref<72x810xf32, #tpu.memory_space<vmem>>, vector<8x324xf32>
    tpu.vector_store %arg8[%c8_81, %c486_82], %64 {strides = array<i32>} : memref<72x810xf32, #tpu.memory_space<vmem>>, vector<8x324xf32>,
    %c0_83 = arith.constant 0 : index
    %c0_84 = arith.constant 0 : index
    %c103 = arith.constant 103 : index
    %66 = vector.load %arg1[%c0_83, %c0_84, %c103] : memref<1x8x202xf32, #tpu.memory_space<vmem>>, vector<1x8x81xf32>
    %67 = vector.shape_cast %66 : vector<1x8x81xf32> to vector<8x81xf32>
    %c16_85 = arith.constant 16 : index
    %c81_86 = arith.constant 81 : index
    %68 = vector.load %arg8[%c16_85, %c81_86] : memref<72x810xf32, #tpu.memory_space<vmem>>, vector<8x81xf32>
    tpu.vector_store %arg8[%c16_85, %c81_86], %67 {strides = array<i32>} : memref<72x810xf32, #tpu.memory_space<vmem>>, vector<8x81xf32>,
    %c0_87 = arith.constant 0 : index
    %c0_88 = arith.constant 0 : index
    %c360 = arith.constant 360 : index
    %69 = vector.load %arg2[%c0_87, %c0_88, %c360] : memref<1x8x716xf32, #tpu.memory_space<vmem>>, vector<1x8x324xf32>
    %70 = vector.shape_cast %69 : vector<1x8x324xf32> to vector<8x324xf32>
    %c16_89 = arith.constant 16 : index
    %c486_90 = arith.constant 486 : index
    %71 = vector.load %arg8[%c16_89, %c486_90] : memref<72x810xf32, #tpu.memory_space<vmem>>, vector<8x324xf32>
    tpu.vector_store %arg8[%c16_89, %c486_90], %70 {strides = array<i32>} : memref<72x810xf32, #tpu.memory_space<vmem>>, vector<8x324xf32>,
    %c0_91 = arith.constant 0 : index
    %c0_92 = arith.constant 0 : index
    %c110 = arith.constant 110 : index
    %72 = vector.load %arg1[%c0_91, %c0_92, %c110] : memref<1x8x202xf32, #tpu.memory_space<vmem>>, vector<1x8x81xf32>
    %73 = vector.shape_cast %72 : vector<1x8x81xf32> to vector<8x81xf32>
    %c24_93 = arith.constant 24 : index
    %c81_94 = arith.constant 81 : index
    %74 = vector.load %arg8[%c24_93, %c81_94] : memref<72x810xf32, #tpu.memory_space<vmem>>, vector<8x81xf32>
    tpu.vector_store %arg8[%c24_93, %c81_94], %73 {strides = array<i32>} : memref<72x810xf32, #tpu.memory_space<vmem>>, vector<8x81xf32>,
    %c0_95 = arith.constant 0 : index
    %c0_96 = arith.constant 0 : index
    %c374 = arith.constant 374 : index
    %75 = vector.load %arg2[%c0_95, %c0_96, %c374] : memref<1x8x716xf32, #tpu.memory_space<vmem>>, vector<1x8x324xf32>
    %76 = vector.shape_cast %75 : vector<1x8x324xf32> to vector<8x324xf32>
    %c24_97 = arith.constant 24 : index
    %c486_98 = arith.constant 486 : index
    %77 = vector.load %arg8[%c24_97, %c486_98] : memref<72x810xf32, #tpu.memory_space<vmem>>, vector<8x324xf32>
    tpu.vector_store %arg8[%c24_97, %c486_98], %76 {strides = array<i32>} : memref<72x810xf32, #tpu.memory_space<vmem>>, vector<8x324xf32>,
    %c0_99 = arith.constant 0 : index
    %c0_100 = arith.constant 0 : index
    %c111 = arith.constant 111 : index
    %78 = vector.load %arg1[%c0_99, %c0_100, %c111] : memref<1x8x202xf32, #tpu.memory_space<vmem>>, vector<1x8x81xf32>
    %79 = vector.shape_cast %78 : vector<1x8x81xf32> to vector<8x81xf32>
    %c32_101 = arith.constant 32 : index
    %c81_102 = arith.constant 81 : index
    %80 = vector.load %arg8[%c32_101, %c81_102] : memref<72x810xf32, #tpu.memory_space<vmem>>, vector<8x81xf32>
    tpu.vector_store %arg8[%c32_101, %c81_102], %79 {strides = array<i32>} : memref<72x810xf32, #tpu.memory_space<vmem>>, vector<8x81xf32>,
    %c0_103 = arith.constant 0 : index
    %c0_104 = arith.constant 0 : index
    %c375 = arith.constant 375 : index
    %81 = vector.load %arg2[%c0_103, %c0_104, %c375] : memref<1x8x716xf32, #tpu.memory_space<vmem>>, vector<1x8x324xf32>
    %82 = vector.shape_cast %81 : vector<1x8x324xf32> to vector<8x324xf32>
    %c32_105 = arith.constant 32 : index
    %c486_106 = arith.constant 486 : index
    %83 = vector.load %arg8[%c32_105, %c486_106] : memref<72x810xf32, #tpu.memory_space<vmem>>, vector<8x324xf32>
    tpu.vector_store %arg8[%c32_105, %c486_106], %82 {strides = array<i32>} : memref<72x810xf32, #tpu.memory_space<vmem>>, vector<8x324xf32>,
    %c0_107 = arith.constant 0 : index
    %c0_108 = arith.constant 0 : index
    %c112 = arith.constant 112 : index
    %84 = vector.load %arg1[%c0_107, %c0_108, %c112] : memref<1x8x202xf32, #tpu.memory_space<vmem>>, vector<1x8x81xf32>
    %85 = vector.shape_cast %84 : vector<1x8x81xf32> to vector<8x81xf32>
    %c40_109 = arith.constant 40 : index
    %c81_110 = arith.constant 81 : index
    %86 = vector.load %arg8[%c40_109, %c81_110] : memref<72x810xf32, #tpu.memory_space<vmem>>, vector<8x81xf32>
    tpu.vector_store %arg8[%c40_109, %c81_110], %85 {strides = array<i32>} : memref<72x810xf32, #tpu.memory_space<vmem>>, vector<8x81xf32>,
    %c0_111 = arith.constant 0 : index
    %c0_112 = arith.constant 0 : index
    %c376 = arith.constant 376 : index
    %87 = vector.load %arg2[%c0_111, %c0_112, %c376] : memref<1x8x716xf32, #tpu.memory_space<vmem>>, vector<1x8x324xf32>
    %88 = vector.shape_cast %87 : vector<1x8x324xf32> to vector<8x324xf32>
    %c40_113 = arith.constant 40 : index
    %c486_114 = arith.constant 486 : index
    %89 = vector.load %arg8[%c40_113, %c486_114] : memref<72x810xf32, #tpu.memory_space<vmem>>, vector<8x324xf32>
    tpu.vector_store %arg8[%c40_113, %c486_114], %88 {strides = array<i32>} : memref<72x810xf32, #tpu.memory_space<vmem>>, vector<8x324xf32>,
    %c0_115 = arith.constant 0 : index
    %c0_116 = arith.constant 0 : index
    %c119 = arith.constant 119 : index
    %90 = vector.load %arg1[%c0_115, %c0_116, %c119] : memref<1x8x202xf32, #tpu.memory_space<vmem>>, vector<1x8x81xf32>
    %91 = vector.shape_cast %90 : vector<1x8x81xf32> to vector<8x81xf32>
    %c48_117 = arith.constant 48 : index
    %c81_118 = arith.constant 81 : index
    %92 = vector.load %arg8[%c48_117, %c81_118] : memref<72x810xf32, #tpu.memory_space<vmem>>, vector<8x81xf32>
    tpu.vector_store %arg8[%c48_117, %c81_118], %91 {strides = array<i32>} : memref<72x810xf32, #tpu.memory_space<vmem>>, vector<8x81xf32>,
    %c0_119 = arith.constant 0 : index
    %c0_120 = arith.constant 0 : index
    %c390 = arith.constant 390 : index
    %93 = vector.load %arg2[%c0_119, %c0_120, %c390] : memref<1x8x716xf32, #tpu.memory_space<vmem>>, vector<1x8x324xf32>
    %94 = vector.shape_cast %93 : vector<1x8x324xf32> to vector<8x324xf32>
    %c48_121 = arith.constant 48 : index
    %c486_122 = arith.constant 486 : index
    %95 = vector.load %arg8[%c48_121, %c486_122] : memref<72x810xf32, #tpu.memory_space<vmem>>, vector<8x324xf32>
    tpu.vector_store %arg8[%c48_121, %c486_122], %94 {strides = array<i32>} : memref<72x810xf32, #tpu.memory_space<vmem>>, vector<8x324xf32>,
    %c0_123 = arith.constant 0 : index
    %c0_124 = arith.constant 0 : index
    %c120 = arith.constant 120 : index
    %96 = vector.load %arg1[%c0_123, %c0_124, %c120] : memref<1x8x202xf32, #tpu.memory_space<vmem>>, vector<1x8x81xf32>
    %97 = vector.shape_cast %96 : vector<1x8x81xf32> to vector<8x81xf32>
    %c56_125 = arith.constant 56 : index
    %c81_126 = arith.constant 81 : index
    %98 = vector.load %arg8[%c56_125, %c81_126] : memref<72x810xf32, #tpu.memory_space<vmem>>, vector<8x81xf32>
    tpu.vector_store %arg8[%c56_125, %c81_126], %97 {strides = array<i32>} : memref<72x810xf32, #tpu.memory_space<vmem>>, vector<8x81xf32>,
    %c0_127 = arith.constant 0 : index
    %c0_128 = arith.constant 0 : index
    %c391 = arith.constant 391 : index
    %99 = vector.load %arg2[%c0_127, %c0_128, %c391] : memref<1x8x716xf32, #tpu.memory_space<vmem>>, vector<1x8x324xf32>
    %100 = vector.shape_cast %99 : vector<1x8x324xf32> to vector<8x324xf32>
    %c56_129 = arith.constant 56 : index
    %c486_130 = arith.constant 486 : index
    %101 = vector.load %arg8[%c56_129, %c486_130] : memref<72x810xf32, #tpu.memory_space<vmem>>, vector<8x324xf32>
    tpu.vector_store %arg8[%c56_129, %c486_130], %100 {strides = array<i32>} : memref<72x810xf32, #tpu.memory_space<vmem>>, vector<8x324xf32>,
    %c0_131 = arith.constant 0 : index
    %c0_132 = arith.constant 0 : index
    %c121 = arith.constant 121 : index
    %102 = vector.load %arg1[%c0_131, %c0_132, %c121] : memref<1x8x202xf32, #tpu.memory_space<vmem>>, vector<1x8x81xf32>
    %103 = vector.shape_cast %102 : vector<1x8x81xf32> to vector<8x81xf32>
    %c64_133 = arith.constant 64 : index
    %c81_134 = arith.constant 81 : index
    %104 = vector.load %arg8[%c64_133, %c81_134] : memref<72x810xf32, #tpu.memory_space<vmem>>, vector<8x81xf32>
    tpu.vector_store %arg8[%c64_133, %c81_134], %103 {strides = array<i32>} : memref<72x810xf32, #tpu.memory_space<vmem>>, vector<8x81xf32>,
    %c0_135 = arith.constant 0 : index
    %c0_136 = arith.constant 0 : index
    %c392 = arith.constant 392 : index
    %105 = vector.load %arg2[%c0_135, %c0_136, %c392] : memref<1x8x716xf32, #tpu.memory_space<vmem>>, vector<1x8x324xf32>
    %106 = vector.shape_cast %105 : vector<1x8x324xf32> to vector<8x324xf32>
    %c64_137 = arith.constant 64 : index
    %c486_138 = arith.constant 486 : index
    %107 = vector.load %arg8[%c64_137, %c486_138] : memref<72x810xf32, #tpu.memory_space<vmem>>, vector<8x324xf32>
    tpu.vector_store %arg8[%c64_137, %c486_138], %106 {strides = array<i32>} : memref<72x810xf32, #tpu.memory_space<vmem>>, vector<8x324xf32>,
    %c0_139 = arith.constant 0 : index
    %c0_140 = arith.constant 0 : index
    %108 = vector.load %arg5[%c0_139, %c0_140] : memref<24x72xf32, #tpu.memory_space<vmem>>, vector<24x72xf32>
    %c0_141 = arith.constant 0 : index
    %c0_142 = arith.constant 0 : index
    %109 = vector.load %arg8[%c0_141, %c0_142] : memref<72x810xf32, #tpu.memory_space<vmem>>, vector<72x810xf32>
    %cst = arith.constant dense<0.000000e+00> : vector<24x810xf32>
    %110 = tpu.matmul %108, %109, %cst {dimension_numbers = #tpu.dot_dimension_numbers<[1], [0], [0], [1], [0, 0, 1, 1], [], []>} : vector<24x72xf32>, vector<72x810xf32>, vector<24x810xf32> -> vector<24x810xf32>
    %c0_143 = arith.constant 0 : index
    %c0_144 = arith.constant 0 : index
    %111 = vector.load %arg6[%c0_143, %c0_144] : memref<24x1xf32, #tpu.memory_space<vmem>>, vector<24x1xf32>
    %112 = vector.broadcast %111 : vector<24x1xf32> to vector<24x810xf32>
    %113 = arith.addf %110, %112 : vector<24x810xf32>
    %cst_145 = arith.constant 0.000000e+00 : f32
    %114 = vector.broadcast %cst_145 : f32 to vector<24x810xf32>
    %115 = arith.maximumf %113, %114 : vector<24x810xf32>
    %c0_146 = arith.constant 0 : index
    %c0_147 = arith.constant 0 : index
    %116 = vector.load %arg9[%c0_146, %c0_147] : memref<24x810xf32, #tpu.memory_space<vmem>>, vector<24x810xf32>
    tpu.vector_store %arg9[%c0_146, %c0_147], %115 {strides = array<i32>} : memref<24x810xf32, #tpu.memory_space<vmem>>, vector<24x810xf32>,
    %c0_148 = arith.constant 0 : index
    %c0_149 = arith.constant 0 : index
    %117 = vector.load %arg9[%c0_148, %c0_149] : memref<24x810xf32, #tpu.memory_space<vmem>>, vector<8x81xf32>
    %c0_150 = arith.constant 0 : index
    %c196 = arith.constant 196 : index
    %118 = vector.load %arg9[%c0_150, %c196] : memref<24x810xf32, #tpu.memory_space<vmem>>, vector<8x256xf32>
    %c16_151 = arith.constant 16 : index
    %c162_152 = arith.constant 162 : index
    %119 = vector.load %arg9[%c16_151, %c162_152] : memref<24x810xf32, #tpu.memory_space<vmem>>, vector<8x324xf32>
    %c0_153 = arith.constant 0 : index
    %c0_154 = arith.constant 0 : index
    %120 = vector.load %arg4[%c0_153, %c0_154] : memref<1x324xf32, #tpu.memory_space<vmem>>, vector<1x324xf32>
    %121 = vector.broadcast %120 : vector<1x324xf32> to vector<8x324xf32>
    %122 = arith.mulf %119, %121 : vector<8x324xf32>
    %c0_155 = arith.constant 0 : index
    %c0_156 = arith.constant 0 : index
    %c0_157 = arith.constant 0 : index
    %123 = vector.load %arg3[%c0_155, %c0_156, %c0_157] : memref<1x1x162xf32, #tpu.memory_space<vmem>>, vector<1x1x81xf32>
    %124 = vector.shape_cast %123 : vector<1x1x81xf32> to vector<1x81xf32>
    %125 = vector.broadcast %124 : vector<1x81xf32> to vector<8x81xf32>
    %126 = arith.mulf %117, %125 : vector<8x81xf32>
    %cst_158 = arith.constant dense<0.000000e+00> : vector<8xf32>
    %127 = vector.multi_reduction <add>, %126, %cst_158 [1] : vector<8x81xf32> to vector<8xf32>
    %128 = vector.shape_cast %127 : vector<8xf32> to vector<8x1xf32>
    %c8_159 = arith.constant 8 : index
    %c10_160 = arith.constant 10 : index
    %129 = vector.load %arg9[%c8_159, %c10_160] : memref<24x810xf32, #tpu.memory_space<vmem>>, vector<8x5xf32>
    %c8_161 = arith.constant 8 : index
    %c19_162 = arith.constant 19 : index
    %130 = vector.load %arg9[%c8_161, %c19_162] : memref<24x810xf32, #tpu.memory_space<vmem>>, vector<8x5xf32>
    %c8_163 = arith.constant 8 : index
    %c28 = arith.constant 28 : index
    %131 = vector.load %arg9[%c8_163, %c28] : memref<24x810xf32, #tpu.memory_space<vmem>>, vector<8x5xf32>
    %c8_164 = arith.constant 8 : index
    %c37 = arith.constant 37 : index
    %132 = vector.load %arg9[%c8_164, %c37] : memref<24x810xf32, #tpu.memory_space<vmem>>, vector<8x5xf32>
    %c8_165 = arith.constant 8 : index
    %c46 = arith.constant 46 : index
    %133 = vector.load %arg9[%c8_165, %c46] : memref<24x810xf32, #tpu.memory_space<vmem>>, vector<8x5xf32>
    %134 = tpu.concatenate %129, %130, %131, %132, %133 in 1 : vector<8x5xf32>, vector<8x5xf32>, vector<8x5xf32>, vector<8x5xf32>, vector<8x5xf32> -> vector<8x25xf32>
    %135 = vector.extract_strided_slice %134 {offsets = [0, 0], sizes = [8, 1], strides = [1, 1]} : vector<8x25xf32> to vector<8x1xf32>
    %136 = vector.extract_strided_slice %122 {offsets = [0, 0], sizes = [8, 256], strides = [1, 1]} : vector<8x324xf32> to vector<8x256xf32>
    %137 = vector.broadcast %135 : vector<8x1xf32> to vector<8x256xf32>
    %138 = arith.mulf %137, %136 : vector<8x256xf32>
    %139 = vector.extract_strided_slice %134 {offsets = [0, 1], sizes = [8, 1], strides = [1, 1]} : vector<8x25xf32> to vector<8x1xf32>
    %140 = vector.extract_strided_slice %122 {offsets = [0, 1], sizes = [8, 256], strides = [1, 1]} : vector<8x324xf32> to vector<8x256xf32>
    %141 = vector.broadcast %139 : vector<8x1xf32> to vector<8x256xf32>
    %142 = arith.mulf %141, %140 : vector<8x256xf32>
    %143 = arith.addf %138, %142 : vector<8x256xf32>
    %144 = vector.extract_strided_slice %134 {offsets = [0, 2], sizes = [8, 1], strides = [1, 1]} : vector<8x25xf32> to vector<8x1xf32>
    %145 = vector.extract_strided_slice %122 {offsets = [0, 2], sizes = [8, 256], strides = [1, 1]} : vector<8x324xf32> to vector<8x256xf32>
    %146 = vector.broadcast %144 : vector<8x1xf32> to vector<8x256xf32>
    %147 = arith.mulf %146, %145 : vector<8x256xf32>
    %148 = arith.addf %143, %147 : vector<8x256xf32>
    %149 = vector.extract_strided_slice %134 {offsets = [0, 3], sizes = [8, 1], strides = [1, 1]} : vector<8x25xf32> to vector<8x1xf32>
    %150 = vector.extract_strided_slice %122 {offsets = [0, 3], sizes = [8, 256], strides = [1, 1]} : vector<8x324xf32> to vector<8x256xf32>
    %151 = vector.broadcast %149 : vector<8x1xf32> to vector<8x256xf32>
    %152 = arith.mulf %151, %150 : vector<8x256xf32>
    %153 = arith.addf %148, %152 : vector<8x256xf32>
    %154 = vector.extract_strided_slice %134 {offsets = [0, 4], sizes = [8, 1], strides = [1, 1]} : vector<8x25xf32> to vector<8x1xf32>
    %155 = vector.extract_strided_slice %122 {offsets = [0, 4], sizes = [8, 256], strides = [1, 1]} : vector<8x324xf32> to vector<8x256xf32>
    %156 = vector.broadcast %154 : vector<8x1xf32> to vector<8x256xf32>
    %157 = arith.mulf %156, %155 : vector<8x256xf32>
    %158 = arith.addf %153, %157 : vector<8x256xf32>
    %159 = vector.extract_strided_slice %134 {offsets = [0, 5], sizes = [8, 1], strides = [1, 1]} : vector<8x25xf32> to vector<8x1xf32>
    %160 = vector.extract_strided_slice %122 {offsets = [0, 16], sizes = [8, 256], strides = [1, 1]} : vector<8x324xf32> to vector<8x256xf32>
    %161 = vector.broadcast %159 : vector<8x1xf32> to vector<8x256xf32>
    %162 = arith.mulf %161, %160 : vector<8x256xf32>
    %163 = vector.extract_strided_slice %134 {offsets = [0, 6], sizes = [8, 1], strides = [1, 1]} : vector<8x25xf32> to vector<8x1xf32>
    %164 = vector.extract_strided_slice %122 {offsets = [0, 17], sizes = [8, 256], strides = [1, 1]} : vector<8x324xf32> to vector<8x256xf32>
    %165 = vector.broadcast %163 : vector<8x1xf32> to vector<8x256xf32>
    %166 = arith.mulf %165, %164 : vector<8x256xf32>
    %167 = arith.addf %162, %166 : vector<8x256xf32>
    %168 = vector.extract_strided_slice %134 {offsets = [0, 7], sizes = [8, 1], strides = [1, 1]} : vector<8x25xf32> to vector<8x1xf32>
    %169 = vector.extract_strided_slice %122 {offsets = [0, 18], sizes = [8, 256], strides = [1, 1]} : vector<8x324xf32> to vector<8x256xf32>
    %170 = vector.broadcast %168 : vector<8x1xf32> to vector<8x256xf32>
    %171 = arith.mulf %170, %169 : vector<8x256xf32>
    %172 = arith.addf %167, %171 : vector<8x256xf32>
    %173 = vector.extract_strided_slice %134 {offsets = [0, 8], sizes = [8, 1], strides = [1, 1]} : vector<8x25xf32> to vector<8x1xf32>
    %174 = vector.extract_strided_slice %122 {offsets = [0, 19], sizes = [8, 256], strides = [1, 1]} : vector<8x324xf32> to vector<8x256xf32>
    %175 = vector.broadcast %173 : vector<8x1xf32> to vector<8x256xf32>
    %176 = arith.mulf %175, %174 : vector<8x256xf32>
    %177 = arith.addf %172, %176 : vector<8x256xf32>
    %178 = vector.extract_strided_slice %134 {offsets = [0, 9], sizes = [8, 1], strides = [1, 1]} : vector<8x25xf32> to vector<8x1xf32>
    %179 = vector.extract_strided_slice %122 {offsets = [0, 20], sizes = [8, 256], strides = [1, 1]} : vector<8x324xf32> to vector<8x256xf32>
    %180 = vector.broadcast %178 : vector<8x1xf32> to vector<8x256xf32>
    %181 = arith.mulf %180, %179 : vector<8x256xf32>
    %182 = arith.addf %177, %181 : vector<8x256xf32>
    %183 = vector.extract_strided_slice %134 {offsets = [0, 10], sizes = [8, 1], strides = [1, 1]} : vector<8x25xf32> to vector<8x1xf32>
    %184 = vector.extract_strided_slice %122 {offsets = [0, 32], sizes = [8, 256], strides = [1, 1]} : vector<8x324xf32> to vector<8x256xf32>
    %185 = vector.broadcast %183 : vector<8x1xf32> to vector<8x256xf32>
    %186 = arith.mulf %185, %184 : vector<8x256xf32>
    %187 = vector.extract_strided_slice %134 {offsets = [0, 11], sizes = [8, 1], strides = [1, 1]} : vector<8x25xf32> to vector<8x1xf32>
    %188 = vector.extract_strided_slice %122 {offsets = [0, 33], sizes = [8, 256], strides = [1, 1]} : vector<8x324xf32> to vector<8x256xf32>
    %189 = vector.broadcast %187 : vector<8x1xf32> to vector<8x256xf32>
    %190 = arith.mulf %189, %188 : vector<8x256xf32>
    %191 = arith.addf %186, %190 : vector<8x256xf32>
    %192 = vector.extract_strided_slice %134 {offsets = [0, 12], sizes = [8, 1], strides = [1, 1]} : vector<8x25xf32> to vector<8x1xf32>
    %193 = vector.extract_strided_slice %122 {offsets = [0, 34], sizes = [8, 256], strides = [1, 1]} : vector<8x324xf32> to vector<8x256xf32>
    %194 = vector.broadcast %192 : vector<8x1xf32> to vector<8x256xf32>
    %195 = arith.mulf %194, %193 : vector<8x256xf32>
    %196 = arith.addf %191, %195 : vector<8x256xf32>
    %197 = vector.extract_strided_slice %134 {offsets = [0, 13], sizes = [8, 1], strides = [1, 1]} : vector<8x25xf32> to vector<8x1xf32>
    %198 = vector.extract_strided_slice %122 {offsets = [0, 35], sizes = [8, 256], strides = [1, 1]} : vector<8x324xf32> to vector<8x256xf32>
    %199 = vector.broadcast %197 : vector<8x1xf32> to vector<8x256xf32>
    %200 = arith.mulf %199, %198 : vector<8x256xf32>
    %201 = arith.addf %196, %200 : vector<8x256xf32>
    %202 = vector.extract_strided_slice %134 {offsets = [0, 14], sizes = [8, 1], strides = [1, 1]} : vector<8x25xf32> to vector<8x1xf32>
    %203 = vector.extract_strided_slice %122 {offsets = [0, 36], sizes = [8, 256], strides = [1, 1]} : vector<8x324xf32> to vector<8x256xf32>
    %204 = vector.broadcast %202 : vector<8x1xf32> to vector<8x256xf32>
    %205 = arith.mulf %204, %203 : vector<8x256xf32>
    %206 = arith.addf %201, %205 : vector<8x256xf32>
    %207 = vector.extract_strided_slice %134 {offsets = [0, 15], sizes = [8, 1], strides = [1, 1]} : vector<8x25xf32> to vector<8x1xf32>
    %208 = vector.extract_strided_slice %122 {offsets = [0, 48], sizes = [8, 256], strides = [1, 1]} : vector<8x324xf32> to vector<8x256xf32>
    %209 = vector.broadcast %207 : vector<8x1xf32> to vector<8x256xf32>
    %210 = arith.mulf %209, %208 : vector<8x256xf32>
    %211 = vector.extract_strided_slice %134 {offsets = [0, 16], sizes = [8, 1], strides = [1, 1]} : vector<8x25xf32> to vector<8x1xf32>
    %212 = vector.extract_strided_slice %122 {offsets = [0, 49], sizes = [8, 256], strides = [1, 1]} : vector<8x324xf32> to vector<8x256xf32>
    %213 = vector.broadcast %211 : vector<8x1xf32> to vector<8x256xf32>
    %214 = arith.mulf %213, %212 : vector<8x256xf32>
    %215 = arith.addf %210, %214 : vector<8x256xf32>
    %216 = vector.extract_strided_slice %134 {offsets = [0, 17], sizes = [8, 1], strides = [1, 1]} : vector<8x25xf32> to vector<8x1xf32>
    %217 = vector.extract_strided_slice %122 {offsets = [0, 50], sizes = [8, 256], strides = [1, 1]} : vector<8x324xf32> to vector<8x256xf32>
    %218 = vector.broadcast %216 : vector<8x1xf32> to vector<8x256xf32>
    %219 = arith.mulf %218, %217 : vector<8x256xf32>
    %220 = arith.addf %215, %219 : vector<8x256xf32>
    %221 = vector.extract_strided_slice %134 {offsets = [0, 18], sizes = [8, 1], strides = [1, 1]} : vector<8x25xf32> to vector<8x1xf32>
    %222 = vector.extract_strided_slice %122 {offsets = [0, 51], sizes = [8, 256], strides = [1, 1]} : vector<8x324xf32> to vector<8x256xf32>
    %223 = vector.broadcast %221 : vector<8x1xf32> to vector<8x256xf32>
    %224 = arith.mulf %223, %222 : vector<8x256xf32>
    %225 = arith.addf %220, %224 : vector<8x256xf32>
    %226 = vector.extract_strided_slice %134 {offsets = [0, 19], sizes = [8, 1], strides = [1, 1]} : vector<8x25xf32> to vector<8x1xf32>
    %227 = vector.extract_strided_slice %122 {offsets = [0, 52], sizes = [8, 256], strides = [1, 1]} : vector<8x324xf32> to vector<8x256xf32>
    %228 = vector.broadcast %226 : vector<8x1xf32> to vector<8x256xf32>
    %229 = arith.mulf %228, %227 : vector<8x256xf32>
    %230 = arith.addf %225, %229 : vector<8x256xf32>
    %231 = vector.extract_strided_slice %134 {offsets = [0, 20], sizes = [8, 1], strides = [1, 1]} : vector<8x25xf32> to vector<8x1xf32>
    %232 = vector.extract_strided_slice %122 {offsets = [0, 64], sizes = [8, 256], strides = [1, 1]} : vector<8x324xf32> to vector<8x256xf32>
    %233 = vector.broadcast %231 : vector<8x1xf32> to vector<8x256xf32>
    %234 = arith.mulf %233, %232 : vector<8x256xf32>
    %235 = vector.extract_strided_slice %134 {offsets = [0, 21], sizes = [8, 1], strides = [1, 1]} : vector<8x25xf32> to vector<8x1xf32>
    %236 = vector.extract_strided_slice %122 {offsets = [0, 65], sizes = [8, 256], strides = [1, 1]} : vector<8x324xf32> to vector<8x256xf32>
    %237 = vector.broadcast %235 : vector<8x1xf32> to vector<8x256xf32>
    %238 = arith.mulf %237, %236 : vector<8x256xf32>
    %239 = arith.addf %234, %238 : vector<8x256xf32>
    %240 = vector.extract_strided_slice %134 {offsets = [0, 22], sizes = [8, 1], strides = [1, 1]} : vector<8x25xf32> to vector<8x1xf32>
    %241 = vector.extract_strided_slice %122 {offsets = [0, 66], sizes = [8, 256], strides = [1, 1]} : vector<8x324xf32> to vector<8x256xf32>
    %242 = vector.broadcast %240 : vector<8x1xf32> to vector<8x256xf32>
    %243 = arith.mulf %242, %241 : vector<8x256xf32>
    %244 = arith.addf %239, %243 : vector<8x256xf32>
    %245 = vector.extract_strided_slice %134 {offsets = [0, 23], sizes = [8, 1], strides = [1, 1]} : vector<8x25xf32> to vector<8x1xf32>
    %246 = vector.extract_strided_slice %122 {offsets = [0, 67], sizes = [8, 256], strides = [1, 1]} : vector<8x324xf32> to vector<8x256xf32>
    %247 = vector.broadcast %245 : vector<8x1xf32> to vector<8x256xf32>
    %248 = arith.mulf %247, %246 : vector<8x256xf32>
    %249 = arith.addf %244, %248 : vector<8x256xf32>
    %250 = vector.extract_strided_slice %134 {offsets = [0, 24], sizes = [8, 1], strides = [1, 1]} : vector<8x25xf32> to vector<8x1xf32>
    %251 = vector.extract_strided_slice %122 {offsets = [0, 68], sizes = [8, 256], strides = [1, 1]} : vector<8x324xf32> to vector<8x256xf32>
    %252 = vector.broadcast %250 : vector<8x1xf32> to vector<8x256xf32>
    %253 = arith.mulf %252, %251 : vector<8x256xf32>
    %254 = arith.addf %249, %253 : vector<8x256xf32>
    %255 = arith.addf %158, %182 : vector<8x256xf32>
    %256 = arith.addf %206, %230 : vector<8x256xf32>
    %257 = arith.addf %255, %256 : vector<8x256xf32>
    %258 = arith.addf %257, %254 : vector<8x256xf32>
    %259 = vector.broadcast %128 : vector<8x1xf32> to vector<8x256xf32>
    %260 = arith.subf %118, %259 : vector<8x256xf32>
    %261 = math.absf %260 : vector<8x256xf32>
    %c0_166 = arith.constant 0 : index
    %c0_167 = arith.constant 0 : index
    %c0_168 = arith.constant 0 : index
    %262 = vector.load %arg7[%c0_166, %c0_167, %c0_168] : memref<1x48x256xf32, #tpu.memory_space<vmem>>, vector<1x8x256xf32>
    %263 = vector.shape_cast %262 : vector<1x8x256xf32> to vector<8x256xf32>
    %264 = vector.shape_cast %261 : vector<8x256xf32> to vector<1x8x256xf32>
    tpu.vector_store %arg7[%c0_166, %c0_167, %c0_168], %264 {strides = array<i32>} : memref<1x48x256xf32, #tpu.memory_space<vmem>>, vector<1x8x256xf32>,
    %c0_169 = arith.constant 0 : index
    %c8_170 = arith.constant 8 : index
    %c0_171 = arith.constant 0 : index
    %265 = vector.load %arg7[%c0_169, %c8_170, %c0_171] : memref<1x48x256xf32, #tpu.memory_space<vmem>>, vector<1x8x256xf32>
    %266 = vector.shape_cast %265 : vector<1x8x256xf32> to vector<8x256xf32>
    %267 = vector.shape_cast %118 : vector<8x256xf32> to vector<1x8x256xf32>
    tpu.vector_store %arg7[%c0_169, %c8_170, %c0_171], %267 {strides = array<i32>} : memref<1x48x256xf32, #tpu.memory_space<vmem>>, vector<1x8x256xf32>,
    %c0_172 = arith.constant 0 : index
    %c16_173 = arith.constant 16 : index
    %c0_174 = arith.constant 0 : index
    %268 = vector.load %arg7[%c0_172, %c16_173, %c0_174] : memref<1x48x256xf32, #tpu.memory_space<vmem>>, vector<1x8x256xf32>
    %269 = vector.shape_cast %268 : vector<1x8x256xf32> to vector<8x256xf32>
    %270 = vector.shape_cast %258 : vector<8x256xf32> to vector<1x8x256xf32>
    tpu.vector_store %arg7[%c0_172, %c16_173, %c0_174], %270 {strides = array<i32>} : memref<1x48x256xf32, #tpu.memory_space<vmem>>, vector<1x8x256xf32>,
    %c0_175 = arith.constant 0 : index
    %c81_176 = arith.constant 81 : index
    %271 = vector.load %arg9[%c0_175, %c81_176] : memref<24x810xf32, #tpu.memory_space<vmem>>, vector<8x81xf32>
    %c0_177 = arith.constant 0 : index
    %c520 = arith.constant 520 : index
    %272 = vector.load %arg9[%c0_177, %c520] : memref<24x810xf32, #tpu.memory_space<vmem>>, vector<8x256xf32>
    %c16_178 = arith.constant 16 : index
    %c486_179 = arith.constant 486 : index
    %273 = vector.load %arg9[%c16_178, %c486_179] : memref<24x810xf32, #tpu.memory_space<vmem>>, vector<8x324xf32>
    %c0_180 = arith.constant 0 : index
    %c0_181 = arith.constant 0 : index
    %274 = vector.load %arg4[%c0_180, %c0_181] : memref<1x324xf32, #tpu.memory_space<vmem>>, vector<1x324xf32>
    %275 = vector.broadcast %274 : vector<1x324xf32> to vector<8x324xf32>
    %276 = arith.mulf %273, %275 : vector<8x324xf32>
    %c0_182 = arith.constant 0 : index
    %c0_183 = arith.constant 0 : index
    %c81_184 = arith.constant 81 : index
    %277 = vector.load %arg3[%c0_182, %c0_183, %c81_184] : memref<1x1x162xf32, #tpu.memory_space<vmem>>, vector<1x1x81xf32>
    %278 = vector.shape_cast %277 : vector<1x1x81xf32> to vector<1x81xf32>
    %279 = vector.broadcast %278 : vector<1x81xf32> to vector<8x81xf32>
    %280 = arith.mulf %271, %279 : vector<8x81xf32>
    %cst_185 = arith.constant dense<0.000000e+00> : vector<8xf32>
    %281 = vector.multi_reduction <add>, %280, %cst_185 [1] : vector<8x81xf32> to vector<8xf32>
    %282 = vector.shape_cast %281 : vector<8xf32> to vector<8x1xf32>
    %c8_186 = arith.constant 8 : index
    %c91 = arith.constant 91 : index
    %283 = vector.load %arg9[%c8_186, %c91] : memref<24x810xf32, #tpu.memory_space<vmem>>, vector<8x5xf32>
    %c8_187 = arith.constant 8 : index
    %c100 = arith.constant 100 : index
    %284 = vector.load %arg9[%c8_187, %c100] : memref<24x810xf32, #tpu.memory_space<vmem>>, vector<8x5xf32>
    %c8_188 = arith.constant 8 : index
    %c109 = arith.constant 109 : index
    %285 = vector.load %arg9[%c8_188, %c109] : memref<24x810xf32, #tpu.memory_space<vmem>>, vector<8x5xf32>
    %c8_189 = arith.constant 8 : index
    %c118 = arith.constant 118 : index
    %286 = vector.load %arg9[%c8_189, %c118] : memref<24x810xf32, #tpu.memory_space<vmem>>, vector<8x5xf32>
    %c8_190 = arith.constant 8 : index
    %c127 = arith.constant 127 : index
    %287 = vector.load %arg9[%c8_190, %c127] : memref<24x810xf32, #tpu.memory_space<vmem>>, vector<8x5xf32>
    %288 = tpu.concatenate %283, %284, %285, %286, %287 in 1 : vector<8x5xf32>, vector<8x5xf32>, vector<8x5xf32>, vector<8x5xf32>, vector<8x5xf32> -> vector<8x25xf32>
    %289 = vector.extract_strided_slice %288 {offsets = [0, 0], sizes = [8, 1], strides = [1, 1]} : vector<8x25xf32> to vector<8x1xf32>
    %290 = vector.extract_strided_slice %276 {offsets = [0, 0], sizes = [8, 256], strides = [1, 1]} : vector<8x324xf32> to vector<8x256xf32>
    %291 = vector.broadcast %289 : vector<8x1xf32> to vector<8x256xf32>
    %292 = arith.mulf %291, %290 : vector<8x256xf32>
    %293 = vector.extract_strided_slice %288 {offsets = [0, 1], sizes = [8, 1], strides = [1, 1]} : vector<8x25xf32> to vector<8x1xf32>
    %294 = vector.extract_strided_slice %276 {offsets = [0, 1], sizes = [8, 256], strides = [1, 1]} : vector<8x324xf32> to vector<8x256xf32>
    %295 = vector.broadcast %293 : vector<8x1xf32> to vector<8x256xf32>
    %296 = arith.mulf %295, %294 : vector<8x256xf32>
    %297 = arith.addf %292, %296 : vector<8x256xf32>
    %298 = vector.extract_strided_slice %288 {offsets = [0, 2], sizes = [8, 1], strides = [1, 1]} : vector<8x25xf32> to vector<8x1xf32>
    %299 = vector.extract_strided_slice %276 {offsets = [0, 2], sizes = [8, 256], strides = [1, 1]} : vector<8x324xf32> to vector<8x256xf32>
    %300 = vector.broadcast %298 : vector<8x1xf32> to vector<8x256xf32>
    %301 = arith.mulf %300, %299 : vector<8x256xf32>
    %302 = arith.addf %297, %301 : vector<8x256xf32>
    %303 = vector.extract_strided_slice %288 {offsets = [0, 3], sizes = [8, 1], strides = [1, 1]} : vector<8x25xf32> to vector<8x1xf32>
    %304 = vector.extract_strided_slice %276 {offsets = [0, 3], sizes = [8, 256], strides = [1, 1]} : vector<8x324xf32> to vector<8x256xf32>
    %305 = vector.broadcast %303 : vector<8x1xf32> to vector<8x256xf32>
    %306 = arith.mulf %305, %304 : vector<8x256xf32>
    %307 = arith.addf %302, %306 : vector<8x256xf32>
    %308 = vector.extract_strided_slice %288 {offsets = [0, 4], sizes = [8, 1], strides = [1, 1]} : vector<8x25xf32> to vector<8x1xf32>
    %309 = vector.extract_strided_slice %276 {offsets = [0, 4], sizes = [8, 256], strides = [1, 1]} : vector<8x324xf32> to vector<8x256xf32>
    %310 = vector.broadcast %308 : vector<8x1xf32> to vector<8x256xf32>
    %311 = arith.mulf %310, %309 : vector<8x256xf32>
    %312 = arith.addf %307, %311 : vector<8x256xf32>
    %313 = vector.extract_strided_slice %288 {offsets = [0, 5], sizes = [8, 1], strides = [1, 1]} : vector<8x25xf32> to vector<8x1xf32>
    %314 = vector.extract_strided_slice %276 {offsets = [0, 16], sizes = [8, 256], strides = [1, 1]} : vector<8x324xf32> to vector<8x256xf32>
    %315 = vector.broadcast %313 : vector<8x1xf32> to vector<8x256xf32>
    %316 = arith.mulf %315, %314 : vector<8x256xf32>
    %317 = vector.extract_strided_slice %288 {offsets = [0, 6], sizes = [8, 1], strides = [1, 1]} : vector<8x25xf32> to vector<8x1xf32>
    %318 = vector.extract_strided_slice %276 {offsets = [0, 17], sizes = [8, 256], strides = [1, 1]} : vector<8x324xf32> to vector<8x256xf32>
    %319 = vector.broadcast %317 : vector<8x1xf32> to vector<8x256xf32>
    %320 = arith.mulf %319, %318 : vector<8x256xf32>
    %321 = arith.addf %316, %320 : vector<8x256xf32>
    %322 = vector.extract_strided_slice %288 {offsets = [0, 7], sizes = [8, 1], strides = [1, 1]} : vector<8x25xf32> to vector<8x1xf32>
    %323 = vector.extract_strided_slice %276 {offsets = [0, 18], sizes = [8, 256], strides = [1, 1]} : vector<8x324xf32> to vector<8x256xf32>
    %324 = vector.broadcast %322 : vector<8x1xf32> to vector<8x256xf32>
    %325 = arith.mulf %324, %323 : vector<8x256xf32>
    %326 = arith.addf %321, %325 : vector<8x256xf32>
    %327 = vector.extract_strided_slice %288 {offsets = [0, 8], sizes = [8, 1], strides = [1, 1]} : vector<8x25xf32> to vector<8x1xf32>
    %328 = vector.extract_strided_slice %276 {offsets = [0, 19], sizes = [8, 256], strides = [1, 1]} : vector<8x324xf32> to vector<8x256xf32>
    %329 = vector.broadcast %327 : vector<8x1xf32> to vector<8x256xf32>
    %330 = arith.mulf %329, %328 : vector<8x256xf32>
    %331 = arith.addf %326, %330 : vector<8x256xf32>
    %332 = vector.extract_strided_slice %288 {offsets = [0, 9], sizes = [8, 1], strides = [1, 1]} : vector<8x25xf32> to vector<8x1xf32>
    %333 = vector.extract_strided_slice %276 {offsets = [0, 20], sizes = [8, 256], strides = [1, 1]} : vector<8x324xf32> to vector<8x256xf32>
    %334 = vector.broadcast %332 : vector<8x1xf32> to vector<8x256xf32>
    %335 = arith.mulf %334, %333 : vector<8x256xf32>
    %336 = arith.addf %331, %335 : vector<8x256xf32>
    %337 = vector.extract_strided_slice %288 {offsets = [0, 10], sizes = [8, 1], strides = [1, 1]} : vector<8x25xf32> to vector<8x1xf32>
    %338 = vector.extract_strided_slice %276 {offsets = [0, 32], sizes = [8, 256], strides = [1, 1]} : vector<8x324xf32> to vector<8x256xf32>
    %339 = vector.broadcast %337 : vector<8x1xf32> to vector<8x256xf32>
    %340 = arith.mulf %339, %338 : vector<8x256xf32>
    %341 = vector.extract_strided_slice %288 {offsets = [0, 11], sizes = [8, 1], strides = [1, 1]} : vector<8x25xf32> to vector<8x1xf32>
    %342 = vector.extract_strided_slice %276 {offsets = [0, 33], sizes = [8, 256], strides = [1, 1]} : vector<8x324xf32> to vector<8x256xf32>
    %343 = vector.broadcast %341 : vector<8x1xf32> to vector<8x256xf32>
    %344 = arith.mulf %343, %342 : vector<8x256xf32>
    %345 = arith.addf %340, %344 : vector<8x256xf32>
    %346 = vector.extract_strided_slice %288 {offsets = [0, 12], sizes = [8, 1], strides = [1, 1]} : vector<8x25xf32> to vector<8x1xf32>
    %347 = vector.extract_strided_slice %276 {offsets = [0, 34], sizes = [8, 256], strides = [1, 1]} : vector<8x324xf32> to vector<8x256xf32>
    %348 = vector.broadcast %346 : vector<8x1xf32> to vector<8x256xf32>
    %349 = arith.mulf %348, %347 : vector<8x256xf32>
    %350 = arith.addf %345, %349 : vector<8x256xf32>
    %351 = vector.extract_strided_slice %288 {offsets = [0, 13], sizes = [8, 1], strides = [1, 1]} : vector<8x25xf32> to vector<8x1xf32>
    %352 = vector.extract_strided_slice %276 {offsets = [0, 35], sizes = [8, 256], strides = [1, 1]} : vector<8x324xf32> to vector<8x256xf32>
    %353 = vector.broadcast %351 : vector<8x1xf32> to vector<8x256xf32>
    %354 = arith.mulf %353, %352 : vector<8x256xf32>
    %355 = arith.addf %350, %354 : vector<8x256xf32>
    %356 = vector.extract_strided_slice %288 {offsets = [0, 14], sizes = [8, 1], strides = [1, 1]} : vector<8x25xf32> to vector<8x1xf32>
    %357 = vector.extract_strided_slice %276 {offsets = [0, 36], sizes = [8, 256], strides = [1, 1]} : vector<8x324xf32> to vector<8x256xf32>
    %358 = vector.broadcast %356 : vector<8x1xf32> to vector<8x256xf32>
    %359 = arith.mulf %358, %357 : vector<8x256xf32>
    %360 = arith.addf %355, %359 : vector<8x256xf32>
    %361 = vector.extract_strided_slice %288 {offsets = [0, 15], sizes = [8, 1], strides = [1, 1]} : vector<8x25xf32> to vector<8x1xf32>
    %362 = vector.extract_strided_slice %276 {offsets = [0, 48], sizes = [8, 256], strides = [1, 1]} : vector<8x324xf32> to vector<8x256xf32>
    %363 = vector.broadcast %361 : vector<8x1xf32> to vector<8x256xf32>
    %364 = arith.mulf %363, %362 : vector<8x256xf32>
    %365 = vector.extract_strided_slice %288 {offsets = [0, 16], sizes = [8, 1], strides = [1, 1]} : vector<8x25xf32> to vector<8x1xf32>
    %366 = vector.extract_strided_slice %276 {offsets = [0, 49], sizes = [8, 256], strides = [1, 1]} : vector<8x324xf32> to vector<8x256xf32>
    %367 = vector.broadcast %365 : vector<8x1xf32> to vector<8x256xf32>
    %368 = arith.mulf %367, %366 : vector<8x256xf32>
    %369 = arith.addf %364, %368 : vector<8x256xf32>
    %370 = vector.extract_strided_slice %288 {offsets = [0, 17], sizes = [8, 1], strides = [1, 1]} : vector<8x25xf32> to vector<8x1xf32>
    %371 = vector.extract_strided_slice %276 {offsets = [0, 50], sizes = [8, 256], strides = [1, 1]} : vector<8x324xf32> to vector<8x256xf32>
    %372 = vector.broadcast %370 : vector<8x1xf32> to vector<8x256xf32>
    %373 = arith.mulf %372, %371 : vector<8x256xf32>
    %374 = arith.addf %369, %373 : vector<8x256xf32>
    %375 = vector.extract_strided_slice %288 {offsets = [0, 18], sizes = [8, 1], strides = [1, 1]} : vector<8x25xf32> to vector<8x1xf32>
    %376 = vector.extract_strided_slice %276 {offsets = [0, 51], sizes = [8, 256], strides = [1, 1]} : vector<8x324xf32> to vector<8x256xf32>
    %377 = vector.broadcast %375 : vector<8x1xf32> to vector<8x256xf32>
    %378 = arith.mulf %377, %376 : vector<8x256xf32>
    %379 = arith.addf %374, %378 : vector<8x256xf32>
    %380 = vector.extract_strided_slice %288 {offsets = [0, 19], sizes = [8, 1], strides = [1, 1]} : vector<8x25xf32> to vector<8x1xf32>
    %381 = vector.extract_strided_slice %276 {offsets = [0, 52], sizes = [8, 256], strides = [1, 1]} : vector<8x324xf32> to vector<8x256xf32>
    %382 = vector.broadcast %380 : vector<8x1xf32> to vector<8x256xf32>
    %383 = arith.mulf %382, %381 : vector<8x256xf32>
    %384 = arith.addf %379, %383 : vector<8x256xf32>
    %385 = vector.extract_strided_slice %288 {offsets = [0, 20], sizes = [8, 1], strides = [1, 1]} : vector<8x25xf32> to vector<8x1xf32>
    %386 = vector.extract_strided_slice %276 {offsets = [0, 64], sizes = [8, 256], strides = [1, 1]} : vector<8x324xf32> to vector<8x256xf32>
    %387 = vector.broadcast %385 : vector<8x1xf32> to vector<8x256xf32>
    %388 = arith.mulf %387, %386 : vector<8x256xf32>
    %389 = vector.extract_strided_slice %288 {offsets = [0, 21], sizes = [8, 1], strides = [1, 1]} : vector<8x25xf32> to vector<8x1xf32>
    %390 = vector.extract_strided_slice %276 {offsets = [0, 65], sizes = [8, 256], strides = [1, 1]} : vector<8x324xf32> to vector<8x256xf32>
    %391 = vector.broadcast %389 : vector<8x1xf32> to vector<8x256xf32>
    %392 = arith.mulf %391, %390 : vector<8x256xf32>
    %393 = arith.addf %388, %392 : vector<8x256xf32>
    %394 = vector.extract_strided_slice %288 {offsets = [0, 22], sizes = [8, 1], strides = [1, 1]} : vector<8x25xf32> to vector<8x1xf32>
    %395 = vector.extract_strided_slice %276 {offsets = [0, 66], sizes = [8, 256], strides = [1, 1]} : vector<8x324xf32> to vector<8x256xf32>
    %396 = vector.broadcast %394 : vector<8x1xf32> to vector<8x256xf32>
    %397 = arith.mulf %396, %395 : vector<8x256xf32>
    %398 = arith.addf %393, %397 : vector<8x256xf32>
    %399 = vector.extract_strided_slice %288 {offsets = [0, 23], sizes = [8, 1], strides = [1, 1]} : vector<8x25xf32> to vector<8x1xf32>
    %400 = vector.extract_strided_slice %276 {offsets = [0, 67], sizes = [8, 256], strides = [1, 1]} : vector<8x324xf32> to vector<8x256xf32>
    %401 = vector.broadcast %399 : vector<8x1xf32> to vector<8x256xf32>
    %402 = arith.mulf %401, %400 : vector<8x256xf32>
    %403 = arith.addf %398, %402 : vector<8x256xf32>
    %404 = vector.extract_strided_slice %288 {offsets = [0, 24], sizes = [8, 1], strides = [1, 1]} : vector<8x25xf32> to vector<8x1xf32>
    %405 = vector.extract_strided_slice %276 {offsets = [0, 68], sizes = [8, 256], strides = [1, 1]} : vector<8x324xf32> to vector<8x256xf32>
    %406 = vector.broadcast %404 : vector<8x1xf32> to vector<8x256xf32>
    %407 = arith.mulf %406, %405 : vector<8x256xf32>
    %408 = arith.addf %403, %407 : vector<8x256xf32>
    %409 = arith.addf %312, %336 : vector<8x256xf32>
    %410 = arith.addf %360, %384 : vector<8x256xf32>
    %411 = arith.addf %409, %410 : vector<8x256xf32>
    %412 = arith.addf %411, %408 : vector<8x256xf32>
    %413 = vector.broadcast %282 : vector<8x1xf32> to vector<8x256xf32>
    %414 = arith.subf %272, %413 : vector<8x256xf32>
    %415 = math.absf %414 : vector<8x256xf32>
    %c0_191 = arith.constant 0 : index
    %c24_192 = arith.constant 24 : index
    %c0_193 = arith.constant 0 : index
    %416 = vector.load %arg7[%c0_191, %c24_192, %c0_193] : memref<1x48x256xf32, #tpu.memory_space<vmem>>, vector<1x8x256xf32>
    %417 = vector.shape_cast %416 : vector<1x8x256xf32> to vector<8x256xf32>
    %418 = vector.shape_cast %415 : vector<8x256xf32> to vector<1x8x256xf32>
    tpu.vector_store %arg7[%c0_191, %c24_192, %c0_193], %418 {strides = array<i32>} : memref<1x48x256xf32, #tpu.memory_space<vmem>>, vector<1x8x256xf32>,
    %c0_194 = arith.constant 0 : index
    %c32_195 = arith.constant 32 : index
    %c0_196 = arith.constant 0 : index
    %419 = vector.load %arg7[%c0_194, %c32_195, %c0_196] : memref<1x48x256xf32, #tpu.memory_space<vmem>>, vector<1x8x256xf32>
    %420 = vector.shape_cast %419 : vector<1x8x256xf32> to vector<8x256xf32>
    %421 = vector.shape_cast %272 : vector<8x256xf32> to vector<1x8x256xf32>
    tpu.vector_store %arg7[%c0_194, %c32_195, %c0_196], %421 {strides = array<i32>} : memref<1x48x256xf32, #tpu.memory_space<vmem>>, vector<1x8x256xf32>,
    %c0_197 = arith.constant 0 : index
    %c40_198 = arith.constant 40 : index
    %c0_199 = arith.constant 0 : index
    %422 = vector.load %arg7[%c0_197, %c40_198, %c0_199] : memref<1x48x256xf32, #tpu.memory_space<vmem>>, vector<1x8x256xf32>
    %423 = vector.shape_cast %422 : vector<1x8x256xf32> to vector<8x256xf32>
    %424 = vector.shape_cast %412 : vector<8x256xf32> to vector<1x8x256xf32>
    tpu.vector_store %arg7[%c0_197, %c40_198, %c0_199], %424 {strides = array<i32>} : memref<1x48x256xf32, #tpu.memory_space<vmem>>, vector<1x8x256xf32>,
    return
  }
  func.func @transform_0(%arg0: i32) -> (i32, i32, i32) {
    %c0_i32 = arith.constant 0 : i32
    %c0_i32_0 = arith.constant 0 : i32
    %c0_i32_1 = arith.constant 0 : i32
    return %arg0, %c0_i32, %c0_i32_0 : i32, i32, i32
  }
  func.func @transform_1(%arg0: i32) -> (i32, i32, i32) {
    %c0_i32 = arith.constant 0 : i32
    %c0_i32_0 = arith.constant 0 : i32
    %c0_i32_1 = arith.constant 0 : i32
    return %arg0, %c0_i32, %c0_i32_0 : i32, i32, i32
  }
  func.func @transform_2(%arg0: i32) -> (i32, i32, i32) {
    %c0_i32 = arith.constant 0 : i32
    %c0_i32_0 = arith.constant 0 : i32
    %c0_i32_1 = arith.constant 0 : i32
    return %arg0, %c0_i32, %c0_i32_0 : i32, i32, i32
  }
  func.func @transform_3(%arg0: i32) -> (i32, i32) {
    %c0_i32 = arith.constant 0 : i32
    %c0_i32_0 = arith.constant 0 : i32
    %c0_i32_1 = arith.constant 0 : i32
    return %c0_i32, %c0_i32_0 : i32, i32
  }
  func.func @transform_4(%arg0: i32) -> (i32, i32) {
    %c0_i32 = arith.constant 0 : i32
    %c0_i32_0 = arith.constant 0 : i32
    %c0_i32_1 = arith.constant 0 : i32
    return %c0_i32, %c0_i32_0 : i32, i32
  }
  func.func @transform_5(%arg0: i32) -> (i32, i32) {
    %c0_i32 = arith.constant 0 : i32
    %c0_i32_0 = arith.constant 0 : i32
    %c0_i32_1 = arith.constant 0 : i32
    return %c0_i32, %c0_i32_0 : i32, i32
  }
  func.func @transform_6(%arg0: i32) -> (i32, i32, i32) {
    %c0_i32 = arith.constant 0 : i32
    %c0_i32_0 = arith.constant 0 : i32
    %c0_i32_1 = arith.constant 0 : i32
    return %arg0, %c0_i32, %c0_i32_0 : i32, i32, i32
  }
}

</mosaic_0001>

<llo_original>
// kernel: neck_all_layer_forward.1
$region0: #{neck_all_layer_forward.1}
  #allocation0 [shape = 'u32[]', space=smem, size = 0x4, offset = 0x4, fixed_abs, tag = 'smem constant byte address 0x4 - core index']
  #allocation1 [shape = 'u32[144,128]{1,0:T(1,128)}', space=vmem, size = 0x12000, scoped, tag = 'internal scratch']
  #allocation2 [shape = 'f32[72,810]{1,0:T(8,128)}', space=vmem, size = 0x3f000, scoped, tag = 'scratch operand']
  #allocation3 [shape = 'f32[24,810]{1,0:T(8,128)}', space=vmem, size = 0x15000, scoped, tag = 'scratch operand']
  %s0 = inlined_call_operand.vmem [shape: f32[2,8,202], index: 0, kind: input, shape index: {}]
  %s1 = inlined_call_operand.vmem [shape: f32[2,8,716], index: 1, kind: input, shape index: {}]
  %s2 = inlined_call_operand.vmem [shape: f32[2,1,162], index: 2, kind: input, shape index: {}]
  %s3 = inlined_call_operand.vmem [shape: f32[1,324], index: 3, kind: input, shape index: {}]
  %s4 = inlined_call_operand.vmem [shape: f32[24,72], index: 4, kind: input, shape index: {}]
  %s5 = inlined_call_operand.vmem [shape: f32[24,1], index: 5, kind: input, shape index: {}]
  %s6 = inlined_call_operand.vmem [shape: f32[2,48,256], index: 6, kind: output, shape index: {}]
  %s7 = sld [smem:[#allocation0]]
  $region57: #{neck_all_layer_forward.1} parent=0
    _
  %s9 = ssub.s32 1, %s7
  %s10 = scalar_select 0, %s9, %s7
  loop: start=0, step=1, limit=4
  $region2: #{neck_all_layer_forward.1} parent=0 // loop_pre_header
    _
  $region3: #{neck_all_layer_forward.1} parent=0 // loop_header
    %s12 = sphi 0, %s16
    %p13 = scmp.ge.s32.totalorder %s12, 4
    %s22 = sphi 0, %s24
    %s25 = sphi 0, %s22
    %s26 = sphi 0, %s25
    %s42 = sphi 0, %s26
    %s48 = sphi 0, %s50
    %s51 = sphi 0, %s48
    %s52 = sphi 0, %s51
    %s68 = sphi 0, %s52
    %s74 = sphi 0, %s76
    %s77 = sphi 0, %s74
    %s78 = sphi 0, %s77
    %s94 = sphi 0, %s78
    %s98 = sphi 0, %s98
    %s100 = sphi 0, %s98
    %s101 = sphi 0, %s100
    %s115 = sphi 0, %s101
    %s119 = sphi 0, %s119
    %s121 = sphi 0, %s119
    %s122 = sphi 0, %s121
    %s136 = sphi 0, %s122
    %s140 = sphi 0, %s140
    %s142 = sphi 0, %s140
    %s143 = sphi 0, %s142
    %s157 = sphi 0, %s143
    %s163 = sphi 0, %s165
    %s166 = sphi 0, %s163
    %s167 = sphi 0, %s166
    %s183 = sphi 0, %s167
  $region4: #{neck_all_layer_forward.1} parent=0 // loop_header_branch
    %15 = sbr.rel (%p13) target = $region8
  $region5: #{neck_all_layer_forward.1} parent=0 // loop_body
    %s17 = ssub.s32 %s12, 1
    %s18 = ssub.s32 %s12, 2
    %s19 = sadd.s32 %s12, 1
    %s20 = ssub.s32 %s12, %s19
    %p21 = scmp.eq.s32.totalorder %s20, 0
    %s23 = sadd.s32 %s22, 1
    %s24 = scalar_select %p21, %s22, %s23
    %p27 = pneg %p21
    %p28 = scmp.eq.s32.totalorder %s12, 1
    %p29 = por %p27, %p28
    %p30 = scmp.ne.s32.totalorder %s22, %s25
    %p31 = scmp.eq.s32.totalorder %s12, 0
    %p32 = por %p30, %p31
    %p33 = scmp.ne.s32.totalorder %s22, %s25
    %p34 = scmp.eq.s32.totalorder %s17, 1
    %p35 = por %p33, %p34
    %p36 = scmp.ne.s32.totalorder %s25, %s26
    %p37 = scmp.eq.s32.totalorder %s17, 0
    %p38 = por %p36, %p37
    %p39 = scmp.ne.s32.totalorder %s25, %s26
    %p40 = scmp.eq.s32.totalorder %s18, 1
    %p41 = por %p39, %p40
    %p43 = scmp.ne.s32.totalorder %s26, %s42
    %p44 = scmp.eq.s32.totalorder %s18, 0
    %p45 = por %p43, %p44
    %s46 = ssub.s32 %s12, %s19
    %p47 = scmp.eq.s32.totalorder %s46, 0
    %s49 = sadd.s32 %s48, 1
    %s50 = scalar_select %p47, %s48, %s49
    %p53 = pneg %p47
    %p54 = scmp.eq.s32.totalorder %s12, 1
    %p55 = por %p53, %p54
    %p56 = scmp.ne.s32.totalorder %s48, %s51
    %p57 = scmp.eq.s32.totalorder %s12, 0
    %p58 = por %p56, %p57
    %p59 = scmp.ne.s32.totalorder %s48, %s51
    %p60 = scmp.eq.s32.totalorder %s17, 1
    %p61 = por %p59, %p60
    %p62 = scmp.ne.s32.totalorder %s51, %s52
    %p63 = scmp.eq.s32.totalorder %s17, 0
    %p64 = por %p62, %p63
    %p65 = scmp.ne.s32.totalorder %s51, %s52
    %p66 = scmp.eq.s32.totalorder %s18, 1
    %p67 = por %p65, %p66
    %p69 = scmp.ne.s32.totalorder %s52, %s68
    %p70 = scmp.eq.s32.totalorder %s18, 0
    %p71 = por %p69, %p70
    %s72 = ssub.s32 %s12, %s19
    %p73 = scmp.eq.s32.totalorder %s72, 0
    %s75 = sadd.s32 %s74, 1
    %s76 = scalar_select %p73, %s74, %s75
    %p79 = pneg %p73
    %p80 = scmp.eq.s32.totalorder %s12, 1
    %p81 = por %p79, %p80
    %p82 = scmp.ne.s32.totalorder %s74, %s77
    %p83 = scmp.eq.s32.totalorder %s12, 0
    %p84 = por %p82, %p83
    %p85 = scmp.ne.s32.totalorder %s74, %s77
    %p86 = scmp.eq.s32.totalorder %s17, 1
    %p87 = por %p85, %p86
    %p88 = scmp.ne.s32.totalorder %s77, %s78
    %p89 = scmp.eq.s32.totalorder %s17, 0
    %p90 = por %p88, %p89
    %p91 = scmp.ne.s32.totalorder %s77, %s78
    %p92 = scmp.eq.s32.totalorder %s18, 1
    %p93 = por %p91, %p92
    %p95 = scmp.ne.s32.totalorder %s78, %s94
    %p96 = scmp.eq.s32.totalorder %s18, 0
    %p97 = por %p95, %p96
    %s99 = sadd.s32 %s98, 1
    %p102 = scmp.eq.s32.totalorder %s12, 1
    %p103 = scmp.ne.s32.totalorder %s98, %s100
    %p104 = scmp.eq.s32.totalorder %s12, 0
    %p105 = por %p103, %p104
    %p106 = scmp.ne.s32.totalorder %s98, %s100
    %p107 = scmp.eq.s32.totalorder %s17, 1
    %p108 = por %p106, %p107
    %p109 = scmp.ne.s32.totalorder %s100, %s101
    %p110 = scmp.eq.s32.totalorder %s17, 0
    %p111 = por %p109, %p110
    %p112 = scmp.ne.s32.totalorder %s100, %s101
    %p113 = scmp.eq.s32.totalorder %s18, 1
    %p114 = por %p112, %p113
    %p116 = scmp.ne.s32.totalorder %s101, %s115
    %p117 = scmp.eq.s32.totalorder %s18, 0
    %p118 = por %p116, %p117
    %s120 = sadd.s32 %s119, 1
    %p123 = scmp.eq.s32.totalorder %s12, 1
    %p124 = scmp.ne.s32.totalorder %s119, %s121
    %p125 = scmp.eq.s32.totalorder %s12, 0
    %p126 = por %p124, %p125
    %p127 = scmp.ne.s32.totalorder %s119, %s121
    %p128 = scmp.eq.s32.totalorder %s17, 1
    %p129 = por %p127, %p128
    %p130 = scmp.ne.s32.totalorder %s121, %s122
    %p131 = scmp.eq.s32.totalorder %s17, 0
    %p132 = por %p130, %p131
    %p133 = scmp.ne.s32.totalorder %s121, %s122
    %p134 = scmp.eq.s32.totalorder %s18, 1
    %p135 = por %p133, %p134
    %p137 = scmp.ne.s32.totalorder %s122, %s136
    %p138 = scmp.eq.s32.totalorder %s18, 0
    %p139 = por %p137, %p138
    %s141 = sadd.s32 %s140, 1
    %p144 = scmp.eq.s32.totalorder %s12, 1
    %p145 = scmp.ne.s32.totalorder %s140, %s142
    %p146 = scmp.eq.s32.totalorder %s12, 0
    %p147 = por %p145, %p146
    %p148 = scmp.ne.s32.totalorder %s140, %s142
    %p149 = scmp.eq.s32.totalorder %s17, 1
    %p150 = por %p148, %p149
    %p151 = scmp.ne.s32.totalorder %s142, %s143
    %p152 = scmp.eq.s32.totalorder %s17, 0
    %p153 = por %p151, %p152
    %p154 = scmp.ne.s32.totalorder %s142, %s143
    %p155 = scmp.eq.s32.totalorder %s18, 1
    %p156 = por %p154, %p155
    %p158 = scmp.ne.s32.totalorder %s143, %s157
    %p159 = scmp.eq.s32.totalorder %s18, 0
    %p160 = por %p158, %p159
    %s161 = ssub.s32 %s12, %s19
    %p162 = scmp.eq.s32.totalorder %s161, 0
    %s164 = sadd.s32 %s163, 1
    %s165 = scalar_select %p162, %s163, %s164
    %p168 = pneg %p162
    %p169 = scmp.eq.s32.totalorder %s12, 1
    %p170 = por %p168, %p169
    %p171 = scmp.ne.s32.totalorder %s163, %s166
    %p172 = scmp.eq.s32.totalorder %s12, 0
    %p173 = por %p171, %p172
    %p174 = scmp.ne.s32.totalorder %s163, %s166
    %p175 = scmp.eq.s32.totalorder %s17, 1
    %p176 = por %p174, %p175
    %p177 = scmp.ne.s32.totalorder %s166, %s167
    %p178 = scmp.eq.s32.totalorder %s17, 0
    %p179 = por %p177, %p178
    %p180 = scmp.ne.s32.totalorder %s166, %s167
    %p181 = scmp.eq.s32.totalorder %s18, 1
    %p182 = por %p180, %p181
    %p184 = scmp.ne.s32.totalorder %s167, %s183
    %p185 = scmp.eq.s32.totalorder %s18, 0
    %p186 = por %p184, %p185
    %p187 = scmp.le.s32.totalorder 1, %s12
    %p188 = scmp.lt.s32.totalorder %s12, 3
    %p189 = pnand %p187, %p188
    %p190 = pneg %p189
    // Predicated region
    $region9: #{neck_all_layer_forward.1} parent=5 // pred_check
      _
    $region10: #{neck_all_layer_forward.1} parent=5 // pred_check_branch
      %192 = sbr.rel (%p189) target = $region12
    $region11: #{neck_all_layer_forward.1} parent=5 // pred_region
      %s193 = ssub.s32 %s12, 1
      // Predicated region
      $region13: #{neck_all_layer_forward.1} parent=11 // pred_check
        %p194 = pneg %p111
      $region14: #{neck_all_layer_forward.1} parent=11 // pred_check_branch
        %196 = sbr.rel (%p194) target = $region16
      $region15: #{neck_all_layer_forward.1} parent=11 // pred_region
        _
      $region16: #{neck_all_layer_forward.1} parent=11 // pred_fallthru
        _
      // Predicated region
      $region17: #{neck_all_layer_forward.1} parent=11 // pred_check
        %p197 = pneg %p132
      $region18: #{neck_all_layer_forward.1} parent=11 // pred_check_branch
        %199 = sbr.rel (%p197) target = $region20
      $region19: #{neck_all_layer_forward.1} parent=11 // pred_region
        _
      $region20: #{neck_all_layer_forward.1} parent=11 // pred_fallthru
        _
      // Predicated region
      $region21: #{neck_all_layer_forward.1} parent=11 // pred_check
        %p200 = pneg %p153
      $region22: #{neck_all_layer_forward.1} parent=11 // pred_check_branch
        %202 = sbr.rel (%p200) target = $region24
      $region23: #{neck_all_layer_forward.1} parent=11 // pred_region
        _
      $region24: #{neck_all_layer_forward.1} parent=11 // pred_fallthru
        _
    $region12: #{neck_all_layer_forward.1} parent=5 // pred_fallthru
      _
    %p203 = scmp.lt.s32.totalorder %s12, 2
    // Predicated region
    $region25: #{neck_all_layer_forward.1} parent=5 // pred_check
      %p204 = pneg %p203
    $region26: #{neck_all_layer_forward.1} parent=5 // pred_check_branch
      %206 = sbr.rel (%p204) target = $region28
    $region27: #{neck_all_layer_forward.1} parent=5 // pred_region
      // Predicated region
      $region29: #{neck_all_layer_forward.1} parent=27 // pred_check
        %p207 = pneg %p32
      $region30: #{neck_all_layer_forward.1} parent=27 // pred_check_branch
        %209 = sbr.rel (%p207) target = $region32
      $region31: #{neck_all_layer_forward.1} parent=27 // pred_region
        %p210 = scmp.lt.s32.totalorder %s12, 1
        %s211 = scalar_select %p210, %s12, 1
        %s212 = smul.addr %s211, 2
        %s213 = smul.addr %s212, 8
        %s214 = scalar_lea.vmem %s0, %s213
      $region32: #{neck_all_layer_forward.1} parent=27 // pred_fallthru
        _
      // Predicated region
      $region33: #{neck_all_layer_forward.1} parent=27 // pred_check
        %p215 = pneg %p58
      $region34: #{neck_all_layer_forward.1} parent=27 // pred_check_branch
        %217 = sbr.rel (%p215) target = $region36
      $region35: #{neck_all_layer_forward.1} parent=27 // pred_region
        %p218 = scmp.lt.s32.totalorder %s12, 1
        %s219 = scalar_select %p218, %s12, 1
        %s220 = smul.addr %s219, 6
        %s221 = smul.addr %s220, 8
        %s222 = scalar_lea.vmem %s1, %s221
      $region36: #{neck_all_layer_forward.1} parent=27 // pred_fallthru
        _
      // Predicated region
      $region37: #{neck_all_layer_forward.1} parent=27 // pred_check
        %p223 = pneg %p84
      $region38: #{neck_all_layer_forward.1} parent=27 // pred_check_branch
        %225 = sbr.rel (%p223) target = $region40
      $region39: #{neck_all_layer_forward.1} parent=27 // pred_region
        %p226 = scmp.lt.s32.totalorder %s12, 1
        %s227 = scalar_select %p226, %s12, 1
        %s228 = smul.addr %s227, 2
        %s229 = scalar_lea.vmem %s2, %s228
      $region40: #{neck_all_layer_forward.1} parent=27 // pred_fallthru
        _
    $region28: #{neck_all_layer_forward.1} parent=5 // pred_fallthru
      _
    %p230 = scmp.le.s32.totalorder 1, %s12
    %p231 = scmp.lt.s32.totalorder %s12, 3
    %p232 = pnand %p230, %p231
    %p233 = pneg %p232
    // Predicated region
    $region41: #{neck_all_layer_forward.1} parent=5 // pred_check
      _
    $region42: #{neck_all_layer_forward.1} parent=5 // pred_check_branch
      %235 = sbr.rel (%p232) target = $region44
    $region43: #{neck_all_layer_forward.1} parent=5 // pred_region
      %s236 = ssub.s32 %s12, 1
      %p237 = scmp.lt.s32.totalorder %s17, 1
      %s238 = scalar_select %p237, %s17, 1
      %s239 = smul.addr %s238, 2
      %s240 = smul.addr %s239, 8
      %s241 = scalar_lea.vmem %s0, %s240
      %p242 = pneg %p38
      %p243 = pneg %p35
      %p244 = scmp.lt.s32.totalorder %s17, 1
      %s245 = scalar_select %p244, %s17, 1
      %s246 = smul.addr %s245, 6
      %s247 = smul.addr %s246, 8
      %s248 = scalar_lea.vmem %s1, %s247
      %p249 = pneg %p64
      %p250 = pneg %p61
      %p251 = scmp.lt.s32.totalorder %s17, 1
      %s252 = scalar_select %p251, %s17, 1
      %s253 = smul.addr %s252, 2
      %s254 = scalar_lea.vmem %s2, %s253
      %p255 = pneg %p90
      %p256 = pneg %p87
      %p257 = pneg %p111
      %p258 = pneg %p108
      %p259 = pneg %p132
      %p260 = pneg %p129
      %p261 = pneg %p153
      %p262 = pneg %p150
      %p263 = pneg %p179
      %p264 = pneg %p176
      %p265 = scmp.lt.s32.totalorder %s17, 1
      %s266 = scalar_select %p265, %s17, 1
      %s267 = smul.addr %s266, 12
      %s268 = smul.addr %s267, 8
      %s269 = scalar_lea.vmem %s6, %s268
      %p270 = scmp.lt.s32.totalorder %s17, 1
      %s271 = scalar_select %p270, %s17, 1
      %s272 = smul.addr %s271, 2
      %s273 = smul.addr %s272, 8
      %s274 = scalar_lea.vmem %s0, %s273
      %p275 = scmp.lt.s32.totalorder %s17, 1
      %s276 = scalar_select %p275, %s17, 1
      %s277 = smul.addr %s276, 6
      %s278 = smul.addr %s277, 8
      %s279 = scalar_lea.vmem %s1, %s278
      %p280 = scmp.lt.s32.totalorder %s17, 1
      %s281 = scalar_select %p280, %s17, 1
      %s282 = smul.addr %s281, 2
      %s283 = scalar_lea.vmem %s2, %s282
      %p284 = scmp.lt.s32.totalorder %s17, 1
      %s285 = scalar_select %p284, %s17, 1
      %s286 = smul.addr %s285, 12
      %s287 = smul.addr %s286, 8
      %s288 = scalar_lea.vmem %s6, %s287
      %v289 = vld [vmem:[%s274] sm:$0xff]
      %vm290 = vcmask 662528
      %291 = vst.msk [vmem:[#allocation2] sm:$0xff] %vm290, %v289
      %v292 = vld [vmem:[%s279] sm:$0xff]
      %v293 = vld [vmem:[%s279 + $0x8] sm:$0xff]
      %v294 = vld [vmem:[%s279 + $0x10] sm:$0xff]
      %298 = vrot.lane.b32.xlu0 %v292, 34
      %v299 = vpop.permute.xlu0 %298
      %300 = vrot.lane.b32.xlu0 %v293, 34
      %v301 = vpop.permute.xlu0 %300
      %302 = vrot.lane.b32.xlu0 %v294, 34
      %v303 = vpop.permute.xlu0 %302
      %vm304 = vcmask 277504
      %v305 = vsel %vm304, %v299, %v301
      %v306 = vsel %vm304, %v301, %v303
      %vm310 = vcmask 1047824
      %311 = vst.msk [vmem:[#allocation2 + $0x8] sm:$0xff] %vm310, %v299
      %312 = vst [vmem:[#allocation2 + $0x10] sm:$0xff] %v305
      %vm313 = vcmask 834560
      %314 = vst.msk [vmem:[#allocation2 + $0x18] sm:$0xff] %vm313, %v306
      %v315 = vld [vmem:[%s274] sm:$0xff]
      %317 = vrot.lane.b32.xlu0 %v315, 127
      %v318 = vpop.permute.xlu0 %317
      %320 = vst.msk [vmem:[#allocation2 + $0x38] sm:$0xff] %vm290, %v318
      %v321 = vld [vmem:[%s279] sm:$0xff]
      %v322 = vld [vmem:[%s279 + $0x8] sm:$0xff]
      %v323 = vld [vmem:[%s279 + $0x10] sm:$0xff]
      %327 = vrot.lane.b32.xlu0 %v321, 33
      %v328 = vpop.permute.xlu0 %327
      %329 = vrot.lane.b32.xlu0 %v322, 33
      %v330 = vpop.permute.xlu0 %329
      %331 = vrot.lane.b32.xlu0 %v323, 33
      %v332 = vpop.permute.xlu0 %331
      %vm333 = vcmask 269312
      %v334 = vsel %vm333, %v328, %v330
      %v335 = vsel %vm333, %v330, %v332
      %339 = vst.msk [vmem:[#allocation2 + $0x40] sm:$0xff] %vm310, %v328
      %340 = vst [vmem:[#allocation2 + $0x48] sm:$0xff] %v334
      %341 = vst.msk [vmem:[#allocation2 + $0x50] sm:$0xff] %vm313, %v335
      %v342 = vld [vmem:[%s274] sm:$0xff]
      %344 = vrot.lane.b32.xlu0 %v342, 126
      %v345 = vpop.permute.xlu0 %344
      %347 = vst.msk [vmem:[#allocation2 + $0x70] sm:$0xff] %vm290, %v345
      %v348 = vld [vmem:[%s279] sm:$0xff]
      %v349 = vld [vmem:[%s279 + $0x8] sm:$0xff]
      %v350 = vld [vmem:[%s279 + $0x10] sm:$0xff]
      %354 = vrot.lane.b32.xlu0 %v348, 32
      %v355 = vpop.permute.xlu0 %354
      %356 = vrot.lane.b32.xlu0 %v349, 32
      %v357 = vpop.permute.xlu0 %356
      %358 = vrot.lane.b32.xlu0 %v350, 32
      %v359 = vpop.permute.xlu0 %358
      %vm360 = vcmask 261120
      %v361 = vsel %vm360, %v355, %v357
      %v362 = vsel %vm360, %v357, %v359
      %366 = vst.msk [vmem:[#allocation2 + $0x78] sm:$0xff] %vm310, %v355
      %367 = vst [vmem:[#allocation2 + $0x80] sm:$0xff] %v361
      %368 = vst.msk [vmem:[#allocation2 + $0x88] sm:$0xff] %vm313, %v362
      %v369 = vld [vmem:[%s274] sm:$0xff]
      %371 = vrot.lane.b32.xlu0 %v369, 119
      %v372 = vpop.permute.xlu0 %371
      %374 = vst.msk [vmem:[#allocation2 + $0xa8] sm:$0xff] %vm290, %v372
      %v375 = vld [vmem:[%s279] sm:$0xff]
      %v376 = vld [vmem:[%s279 + $0x8] sm:$0xff]
      %v377 = vld [vmem:[%s279 + $0x10] sm:$0xff]
      %381 = vrot.lane.b32.xlu0 %v375, 18
      %v382 = vpop.permute.xlu0 %381
      %383 = vrot.lane.b32.xlu0 %v376, 18
      %v384 = vpop.permute.xlu0 %383
      %385 = vrot.lane.b32.xlu0 %v377, 18
      %v386 = vpop.permute.xlu0 %385
      %vm387 = vcmask 146432
      %v388 = vsel %vm387, %v382, %v384
      %v389 = vsel %vm387, %v384, %v386
      %393 = vst.msk [vmem:[#allocation2 + $0xb0] sm:$0xff] %vm310, %v382
      %394 = vst [vmem:[#allocation2 + $0xb8] sm:$0xff] %v388
      %395 = vst.msk [vmem:[#allocation2 + $0xc0] sm:$0xff] %vm313, %v389
      %v396 = vld [vmem:[%s274] sm:$0xff]
      %398 = vrot.lane.b32.xlu0 %v396, 118
      %v399 = vpop.permute.xlu0 %398
      %401 = vst.msk [vmem:[#allocation2 + $0xe0] sm:$0xff] %vm290, %v399
      %v402 = vld [vmem:[%s279] sm:$0xff]
      %v403 = vld [vmem:[%s279 + $0x8] sm:$0xff]
      %v404 = vld [vmem:[%s279 + $0x10] sm:$0xff]
      %408 = vrot.lane.b32.xlu0 %v402, 17
      %v409 = vpop.permute.xlu0 %408
      %410 = vrot.lane.b32.xlu0 %v403, 17
      %v411 = vpop.permute.xlu0 %410
      %412 = vrot.lane.b32.xlu0 %v404, 17
      %v413 = vpop.permute.xlu0 %412
      %vm414 = vcmask 138240
      %v415 = vsel %vm414, %v409, %v411
      %v416 = vsel %vm414, %v411, %v413
      %420 = vst.msk [vmem:[#allocation2 + $0xe8] sm:$0xff] %vm310, %v409
      %421 = vst [vmem:[#allocation2 + $0xf0] sm:$0xff] %v415
      %422 = vst.msk [vmem:[#allocation2 + $0xf8] sm:$0xff] %vm313, %v416
      %v423 = vld [vmem:[%s274] sm:$0xff]
      %425 = vrot.lane.b32.xlu0 %v423, 117
      %v426 = vpop.permute.xlu0 %425
      %428 = vst.msk [vmem:[#allocation2 + $0x118] sm:$0xff] %vm290, %v426
      %v429 = vld [vmem:[%s279] sm:$0xff]
      %v430 = vld [vmem:[%s279 + $0x8] sm:$0xff]
      %v431 = vld [vmem:[%s279 + $0x10] sm:$0xff]
      %435 = vrot.lane.b32.xlu0 %v429, 16
      %v436 = vpop.permute.xlu0 %435
      %437 = vrot.lane.b32.xlu0 %v430, 16
      %v438 = vpop.permute.xlu0 %437
      %439 = vrot.lane.b32.xlu0 %v431, 16
      %v440 = vpop.permute.xlu0 %439
      %vm441 = vcmask 130048
      %v442 = vsel %vm441, %v436, %v438
      %v443 = vsel %vm441, %v438, %v440
      %447 = vst.msk [vmem:[#allocation2 + $0x120] sm:$0xff] %vm310, %v436
      %448 = vst [vmem:[#allocation2 + $0x128] sm:$0xff] %v442
      %449 = vst.msk [vmem:[#allocation2 + $0x130] sm:$0xff] %vm313, %v443
      %v450 = vld [vmem:[%s274] sm:$0xff]
      %452 = vrot.lane.b32.xlu0 %v450, 110
      %v453 = vpop.permute.xlu0 %452
      %455 = vst.msk [vmem:[#allocation2 + $0x150] sm:$0xff] %vm290, %v453
      %v456 = vld [vmem:[%s279] sm:$0xff]
      %v457 = vld [vmem:[%s279 + $0x8] sm:$0xff]
      %v458 = vld [vmem:[%s279 + $0x10] sm:$0xff]
      %462 = vrot.lane.b32.xlu0 %v456, 2
      %v463 = vpop.permute.xlu0 %462
      %464 = vrot.lane.b32.xlu0 %v457, 2
      %v465 = vpop.permute.xlu0 %464
      %466 = vrot.lane.b32.xlu0 %v458, 2
      %v467 = vpop.permute.xlu0 %466
      %vm468 = vcmask 15360
      %v469 = vsel %vm468, %v463, %v465
      %v470 = vsel %vm468, %v465, %v467
      %474 = vst.msk [vmem:[#allocation2 + $0x158] sm:$0xff] %vm310, %v463
      %475 = vst [vmem:[#allocation2 + $0x160] sm:$0xff] %v469
      %476 = vst.msk [vmem:[#allocation2 + $0x168] sm:$0xff] %vm313, %v470
      %v477 = vld [vmem:[%s274] sm:$0xff]
      %479 = vrot.lane.b32.xlu0 %v477, 109
      %v480 = vpop.permute.xlu0 %479
      %482 = vst.msk [vmem:[#allocation2 + $0x188] sm:$0xff] %vm290, %v480
      %v483 = vld [vmem:[%s279] sm:$0xff]
      %v484 = vld [vmem:[%s279 + $0x8] sm:$0xff]
      %v485 = vld [vmem:[%s279 + $0x10] sm:$0xff]
      %489 = vrot.lane.b32.xlu0 %v483, 1
      %v490 = vpop.permute.xlu0 %489
      %491 = vrot.lane.b32.xlu0 %v484, 1
      %v492 = vpop.permute.xlu0 %491
      %493 = vrot.lane.b32.xlu0 %v485, 1
      %v494 = vpop.permute.xlu0 %493
      %vm495 = vcmask 7168
      %v496 = vsel %vm495, %v490, %v492
      %v497 = vsel %vm495, %v492, %v494
      %501 = vst.msk [vmem:[#allocation2 + $0x190] sm:$0xff] %vm310, %v490
      %502 = vst [vmem:[#allocation2 + $0x198] sm:$0xff] %v496
      %503 = vst.msk [vmem:[#allocation2 + $0x1a0] sm:$0xff] %vm313, %v497
      %v504 = vld [vmem:[%s274] sm:$0xff]
      %506 = vrot.lane.b32.xlu0 %v504, 108
      %v507 = vpop.permute.xlu0 %506
      %509 = vst.msk [vmem:[#allocation2 + $0x1c0] sm:$0xff] %vm290, %v507
      %v510 = vld [vmem:[%s279] sm:$0xff]
      %v511 = vld [vmem:[%s279 + $0x8] sm:$0xff]
      %v512 = vld [vmem:[%s279 + $0x10] sm:$0xff]
      %513 = vst.msk [vmem:[#allocation2 + $0x1c8] sm:$0xff] %vm310, %v510
      %514 = vst [vmem:[#allocation2 + $0x1d0] sm:$0xff] %v511
      %515 = vst.msk [vmem:[#allocation2 + $0x1d8] sm:$0xff] %vm313, %v512
      %v516 = vld [vmem:[%s274] sm:$0xff]
      %v517 = vld [vmem:[%s274 + $0x8] sm:$0xff]
      %520 = vrot.lane.b32.xlu0 %v516, 108
      %v521 = vpop.permute.xlu0 %520
      %522 = vrot.lane.b32.xlu0 %v517, 108
      %v523 = vpop.permute.xlu0 %522
      %vm524 = vcmask 883712
      %v525 = vsel %vm524, %v521, %v523
      %vm528 = vcmask 1048200
      %529 = vst.msk [vmem:[#allocation2] sm:$0xff] %vm528, %v525
      %530 = vst.msk [vmem:[#allocation2 + $0x8] sm:$0xff] %vm304, %v523
      %v531 = vld [vmem:[%s279 + $0x10] sm:$0xff]
      %v532 = vld [vmem:[%s279 + $0x18] sm:$0xff]
      %v533 = vld [vmem:[%s279 + $0x20] sm:$0xff]
      %v534 = vld [vmem:[%s279 + $0x28] sm:$0xff]
      %vm535 = vcmask 1048368
      %536 = vst.msk [vmem:[#allocation2 + $0x18] sm:$0xff] %vm535, %v531
      %537 = vst [vmem:[#allocation2 + $0x20] sm:$0xff] %v532
      %538 = vst [vmem:[#allocation2 + $0x28] sm:$0xff] %v533
      %vm539 = vcmask 343040
      %540 = vst.msk [vmem:[#allocation2 + $0x30] sm:$0xff] %vm539, %v534
      %v541 = vld [vmem:[%s274] sm:$0xff]
      %v542 = vld [vmem:[%s274 + $0x8] sm:$0xff]
      %545 = vrot.lane.b32.xlu0 %v541, 107
      %v546 = vpop.permute.xlu0 %545
      %547 = vrot.lane.b32.xlu0 %v542, 107
      %v548 = vpop.permute.xlu0 %547
      %vm549 = vcmask 875520
      %v550 = vsel %vm549, %v546, %v548
      %553 = vst.msk [vmem:[#allocation2 + $0x38] sm:$0xff] %vm528, %v550
      %554 = vst.msk [vmem:[#allocation2 + $0x40] sm:$0xff] %vm304, %v548
      %v555 = vld [vmem:[%s279 + $0x10] sm:$0xff]
      %v556 = vld [vmem:[%s279 + $0x18] sm:$0xff]
      %v557 = vld [vmem:[%s279 + $0x20] sm:$0xff]
      %v558 = vld [vmem:[%s279 + $0x28] sm:$0xff]
      %563 = vrot.lane.b32.xlu0 %v555, 127
      %v564 = vpop.permute.xlu0 %563
      %565 = vrot.lane.b32.xlu0 %v556, 127
      %v566 = vpop.permute.xlu0 %565
      %567 = vrot.lane.b32.xlu0 %v557, 127
      %v568 = vpop.permute.xlu0 %567
      %569 = vrot.lane.b32.xlu0 %v558, 127
      %v570 = vpop.permute.xlu0 %569
      %vm571 = vcmask 1039360
      %v572 = vsel %vm571, %v564, %v566
      %v573 = vsel %vm571, %v566, %v568
      %v574 = vsel %vm571, %v568, %v570
      %579 = vst.msk [vmem:[#allocation2 + $0x50] sm:$0xff] %vm535, %v572
      %580 = vst [vmem:[#allocation2 + $0x58] sm:$0xff] %v573
      %581 = vst [vmem:[#allocation2 + $0x60] sm:$0xff] %v574
      %582 = vst.msk [vmem:[#allocation2 + $0x68] sm:$0xff] %vm539, %v570
      %v583 = vld [vmem:[%s274] sm:$0xff]
      %v584 = vld [vmem:[%s274 + $0x8] sm:$0xff]
      %587 = vrot.lane.b32.xlu0 %v583, 106
      %v588 = vpop.permute.xlu0 %587
      %589 = vrot.lane.b32.xlu0 %v584, 106
      %v590 = vpop.permute.xlu0 %589
      %vm591 = vcmask 867328
      %v592 = vsel %vm591, %v588, %v590
      %595 = vst.msk [vmem:[#allocation2 + $0x70] sm:$0xff] %vm528, %v592
      %596 = vst.msk [vmem:[#allocation2 + $0x78] sm:$0xff] %vm304, %v590
      %v597 = vld [vmem:[%s279 + $0x10] sm:$0xff]
      %v598 = vld [vmem:[%s279 + $0x18] sm:$0xff]
      %v599 = vld [vmem:[%s279 + $0x20] sm:$0xff]
      %v600 = vld [vmem:[%s279 + $0x28] sm:$0xff]
      %605 = vrot.lane.b32.xlu0 %v597, 126
      %v606 = vpop.permute.xlu0 %605
      %607 = vrot.lane.b32.xlu0 %v598, 126
      %v608 = vpop.permute.xlu0 %607
      %609 = vrot.lane.b32.xlu0 %v599, 126
      %v610 = vpop.permute.xlu0 %609
      %611 = vrot.lane.b32.xlu0 %v600, 126
      %v612 = vpop.permute.xlu0 %611
      %vm613 = vcmask 1031168
      %v614 = vsel %vm613, %v606, %v608
      %v615 = vsel %vm613, %v608, %v610
      %v616 = vsel %vm613, %v610, %v612
      %621 = vst.msk [vmem:[#allocation2 + $0x88] sm:$0xff] %vm535, %v614
      %622 = vst [vmem:[#allocation2 + $0x90] sm:$0xff] %v615
      %623 = vst [vmem:[#allocation2 + $0x98] sm:$0xff] %v616
      %624 = vst.msk [vmem:[#allocation2 + $0xa0] sm:$0xff] %vm539, %v612
      %v625 = vld [vmem:[%s274] sm:$0xff]
      %v626 = vld [vmem:[%s274 + $0x8] sm:$0xff]
      %629 = vrot.lane.b32.xlu0 %v625, 99
      %v630 = vpop.permute.xlu0 %629
      %631 = vrot.lane.b32.xlu0 %v626, 99
      %v632 = vpop.permute.xlu0 %631
      %vm633 = vcmask 809984
      %v634 = vsel %vm633, %v630, %v632
      %637 = vst.msk [vmem:[#allocation2 + $0xa8] sm:$0xff] %vm528, %v634
      %638 = vst.msk [vmem:[#allocation2 + $0xb0] sm:$0xff] %vm304, %v632
      %v639 = vld [vmem:[%s279 + $0x10] sm:$0xff]
      %v640 = vld [vmem:[%s279 + $0x18] sm:$0xff]
      %v641 = vld [vmem:[%s279 + $0x20] sm:$0xff]
      %v642 = vld [vmem:[%s279 + $0x28] sm:$0xff]
      %647 = vrot.lane.b32.xlu0 %v639, 112
      %v648 = vpop.permute.xlu0 %647
      %649 = vrot.lane.b32.xlu0 %v640, 112
      %v650 = vpop.permute.xlu0 %649
      %651 = vrot.lane.b32.xlu0 %v641, 112
      %v652 = vpop.permute.xlu0 %651
      %653 = vrot.lane.b32.xlu0 %v642, 112
      %v654 = vpop.permute.xlu0 %653
      %vm655 = vcmask 916480
      %v656 = vsel %vm655, %v648, %v650
      %v657 = vsel %vm655, %v650, %v652
      %v658 = vsel %vm655, %v652, %v654
      %663 = vst.msk [vmem:[#allocation2 + $0xc0] sm:$0xff] %vm535, %v656
      %664 = vst [vmem:[#allocation2 + $0xc8] sm:$0xff] %v657
      %665 = vst [vmem:[#allocation2 + $0xd0] sm:$0xff] %v658
      %666 = vst.msk [vmem:[#allocation2 + $0xd8] sm:$0xff] %vm539, %v654
      %v667 = vld [vmem:[%s274] sm:$0xff]
      %v668 = vld [vmem:[%s274 + $0x8] sm:$0xff]
      %671 = vrot.lane.b32.xlu0 %v667, 98
      %v672 = vpop.permute.xlu0 %671
      %673 = vrot.lane.b32.xlu0 %v668, 98
      %v674 = vpop.permute.xlu0 %673
      %vm675 = vcmask 801792
      %v676 = vsel %vm675, %v672, %v674
      %679 = vst.msk [vmem:[#allocation2 + $0xe0] sm:$0xff] %vm528, %v676
      %680 = vst.msk [vmem:[#allocation2 + $0xe8] sm:$0xff] %vm304, %v674
      %v681 = vld [vmem:[%s279 + $0x10] sm:$0xff]
      %v682 = vld [vmem:[%s279 + $0x18] sm:$0xff]
      %v683 = vld [vmem:[%s279 + $0x20] sm:$0xff]
      %v684 = vld [vmem:[%s279 + $0x28] sm:$0xff]
      %689 = vrot.lane.b32.xlu0 %v681, 111
      %v690 = vpop.permute.xlu0 %689
      %691 = vrot.lane.b32.xlu0 %v682, 111
      %v692 = vpop.permute.xlu0 %691
      %693 = vrot.lane.b32.xlu0 %v683, 111
      %v694 = vpop.permute.xlu0 %693
      %695 = vrot.lane.b32.xlu0 %v684, 111
      %v696 = vpop.permute.xlu0 %695
      %vm697 = vcmask 908288
      %v698 = vsel %vm697, %v690, %v692
      %v699 = vsel %vm697, %v692, %v694
      %v700 = vsel %vm697, %v694, %v696
      %705 = vst.msk [vmem:[#allocation2 + $0xf8] sm:$0xff] %vm535, %v698
      %706 = vst [vmem:[#allocation2 + $0x100] sm:$0xff] %v699
      %707 = vst [vmem:[#allocation2 + $0x108] sm:$0xff] %v700
      %708 = vst.msk [vmem:[#allocation2 + $0x110] sm:$0xff] %vm539, %v696
      %v709 = vld [vmem:[%s274] sm:$0xff]
      %v710 = vld [vmem:[%s274 + $0x8] sm:$0xff]
      %713 = vrot.lane.b32.xlu0 %v709, 97
      %v714 = vpop.permute.xlu0 %713
      %715 = vrot.lane.b32.xlu0 %v710, 97
      %v716 = vpop.permute.xlu0 %715
      %vm717 = vcmask 793600
      %v718 = vsel %vm717, %v714, %v716
      %721 = vst.msk [vmem:[#allocation2 + $0x118] sm:$0xff] %vm528, %v718
      %722 = vst.msk [vmem:[#allocation2 + $0x120] sm:$0xff] %vm304, %v716
      %v723 = vld [vmem:[%s279 + $0x10] sm:$0xff]
      %v724 = vld [vmem:[%s279 + $0x18] sm:$0xff]
      %v725 = vld [vmem:[%s279 + $0x20] sm:$0xff]
      %v726 = vld [vmem:[%s279 + $0x28] sm:$0xff]
      %731 = vrot.lane.b32.xlu0 %v723, 110
      %v732 = vpop.permute.xlu0 %731
      %733 = vrot.lane.b32.xlu0 %v724, 110
      %v734 = vpop.permute.xlu0 %733
      %735 = vrot.lane.b32.xlu0 %v725, 110
      %v736 = vpop.permute.xlu0 %735
      %737 = vrot.lane.b32.xlu0 %v726, 110
      %v738 = vpop.permute.xlu0 %737
      %vm739 = vcmask 900096
      %v740 = vsel %vm739, %v732, %v734
      %v741 = vsel %vm739, %v734, %v736
      %v742 = vsel %vm739, %v736, %v738
      %747 = vst.msk [vmem:[#allocation2 + $0x130] sm:$0xff] %vm535, %v740
      %748 = vst [vmem:[#allocation2 + $0x138] sm:$0xff] %v741
      %749 = vst [vmem:[#allocation2 + $0x140] sm:$0xff] %v742
      %750 = vst.msk [vmem:[#allocation2 + $0x148] sm:$0xff] %vm539, %v738
      %v751 = vld [vmem:[%s274] sm:$0xff]
      %v752 = vld [vmem:[%s274 + $0x8] sm:$0xff]
      %755 = vrot.lane.b32.xlu0 %v751, 90
      %v756 = vpop.permute.xlu0 %755
      %757 = vrot.lane.b32.xlu0 %v752, 90
      %v758 = vpop.permute.xlu0 %757
      %vm759 = vcmask 736256
      %v760 = vsel %vm759, %v756, %v758
      %763 = vst.msk [vmem:[#allocation2 + $0x150] sm:$0xff] %vm528, %v760
      %764 = vst.msk [vmem:[#allocation2 + $0x158] sm:$0xff] %vm304, %v758
      %v765 = vld [vmem:[%s279 + $0x18] sm:$0xff]
      %v766 = vld [vmem:[%s279 + $0x20] sm:$0xff]
      %v767 = vld [vmem:[%s279 + $0x28] sm:$0xff]
      %771 = vrot.lane.b32.xlu0 %v765, 96
      %v772 = vpop.permute.xlu0 %771
      %773 = vrot.lane.b32.xlu0 %v766, 96
      %v774 = vpop.permute.xlu0 %773
      %775 = vrot.lane.b32.xlu0 %v767, 96
      %v776 = vpop.permute.xlu0 %775
      %vm777 = vcmask 785408
      %v778 = vsel %vm777, %v772, %v774
      %v779 = vsel %vm777, %v774, %v776
      %784 = vst.msk [vmem:[#allocation2 + $0x168] sm:$0xff] %vm535, %v772
      %785 = vst [vmem:[#allocation2 + $0x170] sm:$0xff] %v778
      %786 = vst [vmem:[#allocation2 + $0x178] sm:$0xff] %v779
      %787 = vst.msk [vmem:[#allocation2 + $0x180] sm:$0xff] %vm539, %v776
      %v788 = vld [vmem:[%s274] sm:$0xff]
      %v789 = vld [vmem:[%s274 + $0x8] sm:$0xff]
      %792 = vrot.lane.b32.xlu0 %v788, 89
      %v793 = vpop.permute.xlu0 %792
      %794 = vrot.lane.b32.xlu0 %v789, 89
      %v795 = vpop.permute.xlu0 %794
      %vm796 = vcmask 728064
      %v797 = vsel %vm796, %v793, %v795
      %800 = vst.msk [vmem:[#allocation2 + $0x188] sm:$0xff] %vm528, %v797
      %801 = vst.msk [vmem:[#allocation2 + $0x190] sm:$0xff] %vm304, %v795
      %v802 = vld [vmem:[%s279 + $0x18] sm:$0xff]
      %v803 = vld [vmem:[%s279 + $0x20] sm:$0xff]
      %v804 = vld [vmem:[%s279 + $0x28] sm:$0xff]
      %808 = vrot.lane.b32.xlu0 %v802, 95
      %v809 = vpop.permute.xlu0 %808
      %810 = vrot.lane.b32.xlu0 %v803, 95
      %v811 = vpop.permute.xlu0 %810
      %812 = vrot.lane.b32.xlu0 %v804, 95
      %v813 = vpop.permute.xlu0 %812
      %vm814 = vcmask 777216
      %v815 = vsel %vm814, %v809, %v811
      %v816 = vsel %vm814, %v811, %v813
      %821 = vst.msk [vmem:[#allocation2 + $0x1a0] sm:$0xff] %vm535, %v809
      %822 = vst [vmem:[#allocation2 + $0x1a8] sm:$0xff] %v815
      %823 = vst [vmem:[#allocation2 + $0x1b0] sm:$0xff] %v816
      %824 = vst.msk [vmem:[#allocation2 + $0x1b8] sm:$0xff] %vm539, %v813
      %v825 = vld [vmem:[%s274] sm:$0xff]
      %v826 = vld [vmem:[%s274 + $0x8] sm:$0xff]
      %829 = vrot.lane.b32.xlu0 %v825, 88
      %v830 = vpop.permute.xlu0 %829
      %831 = vrot.lane.b32.xlu0 %v826, 88
      %v832 = vpop.permute.xlu0 %831
      %vm833 = vcmask 719872
      %v834 = vsel %vm833, %v830, %v832
      %837 = vst.msk [vmem:[#allocation2 + $0x1c0] sm:$0xff] %vm528, %v834
      %838 = vst.msk [vmem:[#allocation2 + $0x1c8] sm:$0xff] %vm304, %v832
      %v839 = vld [vmem:[%s279 + $0x18] sm:$0xff]
      %v840 = vld [vmem:[%s279 + $0x20] sm:$0xff]
      %v841 = vld [vmem:[%s279 + $0x28] sm:$0xff]
      %845 = vrot.lane.b32.xlu0 %v839, 94
      %v846 = vpop.permute.xlu0 %845
      %847 = vrot.lane.b32.xlu0 %v840, 94
      %v848 = vpop.permute.xlu0 %847
      %849 = vrot.lane.b32.xlu0 %v841, 94
      %v850 = vpop.permute.xlu0 %849
      %vm851 = vcmask 769024
      %v852 = vsel %vm851, %v846, %v848
      %v853 = vsel %vm851, %v848, %v850
      %858 = vst.msk [vmem:[#allocation2 + $0x1d8] sm:$0xff] %vm535, %v846
      %859 = vst [vmem:[#allocation2 + $0x1e0] sm:$0xff] %v852
      %860 = vst [vmem:[#allocation2 + $0x1e8] sm:$0xff] %v853
      %861 = vst.msk [vmem:[#allocation2 + $0x1f0] sm:$0xff] %vm539, %v850
      %v862 = vld [vmem:[%s4] sm:$0xff]
      %v863 = vld [vmem:[%s4 + $0x8] sm:$0xff]
      %v864 = vld [vmem:[%s4 + $0x10] sm:$0xff]
      %v865 = vld [vmem:[#allocation2] sm:$0xff]
      %v866 = vld [vmem:[#allocation2 + $0x8] sm:$0xff]
      %v867 = vld [vmem:[#allocation2 + $0x10] sm:$0xff]
      %v868 = vld [vmem:[#allocation2 + $0x18] sm:$0xff]
      %v869 = vld [vmem:[#allocation2 + $0x20] sm:$0xff]
      %v870 = vld [vmem:[#allocation2 + $0x28] sm:$0xff]
      %v871 = vld [vmem:[#allocation2 + $0x30] sm:$0xff]
      %v872 = vld [vmem:[#allocation2 + $0x38] sm:$0xff]
      %v873 = vld [vmem:[#allocation2 + $0x40] sm:$0xff]
      %v874 = vld [vmem:[#allocation2 + $0x48] sm:$0xff]
      %v875 = vld [vmem:[#allocation2 + $0x50] sm:$0xff]
      %v876 = vld [vmem:[#allocation2 + $0x58] sm:$0xff]
      %v877 = vld [vmem:[#allocation2 + $0x60] sm:$0xff]
      %v878 = vld [vmem:[#allocation2 + $0x68] sm:$0xff]
      %v879 = vld [vmem:[#allocation2 + $0x70] sm:$0xff]
      %v880 = vld [vmem:[#allocation2 + $0x78] sm:$0xff]
      %v881 = vld [vmem:[#allocation2 + $0x80] sm:$0xff]
      %v882 = vld [vmem:[#allocation2 + $0x88] sm:$0xff]
      %v883 = vld [vmem:[#allocation2 + $0x90] sm:$0xff]
      %v884 = vld [vmem:[#allocation2 + $0x98] sm:$0xff]
      %v885 = vld [vmem:[#allocation2 + $0xa0] sm:$0xff]
      %v886 = vld [vmem:[#allocation2 + $0xa8] sm:$0xff]
      %v887 = vld [vmem:[#allocation2 + $0xb0] sm:$0xff]
      %v888 = vld [vmem:[#allocation2 + $0xb8] sm:$0xff]
      %v889 = vld [vmem:[#allocation2 + $0xc0] sm:$0xff]
      %v890 = vld [vmem:[#allocation2 + $0xc8] sm:$0xff]
      %v891 = vld [vmem:[#allocation2 + $0xd0] sm:$0xff]
      %v892 = vld [vmem:[#allocation2 + $0xd8] sm:$0xff]
      %v893 = vld [vmem:[#allocation2 + $0xe0] sm:$0xff]
      %v894 = vld [vmem:[#allocation2 + $0xe8] sm:$0xff]
      %v895 = vld [vmem:[#allocation2 + $0xf0] sm:$0xff]
      %v896 = vld [vmem:[#allocation2 + $0xf8] sm:$0xff]
      %v897 = vld [vmem:[#allocation2 + $0x100] sm:$0xff]
      %v898 = vld [vmem:[#allocation2 + $0x108] sm:$0xff]
      %v899 = vld [vmem:[#allocation2 + $0x110] sm:$0xff]
      %v900 = vld [vmem:[#allocation2 + $0x118] sm:$0xff]
      %v901 = vld [vmem:[#allocation2 + $0x120] sm:$0xff]
      %v902 = vld [vmem:[#allocation2 + $0x128] sm:$0xff]
      %v903 = vld [vmem:[#allocation2 + $0x130] sm:$0xff]
      %v904 = vld [vmem:[#allocation2 + $0x138] sm:$0xff]
      %v905 = vld [vmem:[#allocation2 + $0x140] sm:$0xff]
      %v906 = vld [vmem:[#allocation2 + $0x148] sm:$0xff]
      %v907 = vld [vmem:[#allocation2 + $0x150] sm:$0xff]
      %v908 = vld [vmem:[#allocation2 + $0x158] sm:$0xff]
      %v909 = vld [vmem:[#allocation2 + $0x160] sm:$0xff]
      %v910 = vld [vmem:[#allocation2 + $0x168] sm:$0xff]
      %v911 = vld [vmem:[#allocation2 + $0x170] sm:$0xff]
      %v912 = vld [vmem:[#allocation2 + $0x178] sm:$0xff]
      %v913 = vld [vmem:[#allocation2 + $0x180] sm:$0xff]
      %v914 = vld [vmem:[#allocation2 + $0x188] sm:$0xff]
      %v915 = vld [vmem:[#allocation2 + $0x190] sm:$0xff]
      %v916 = vld [vmem:[#allocation2 + $0x198] sm:$0xff]
      %v917 = vld [vmem:[#allocation2 + $0x1a0] sm:$0xff]
      %v918 = vld [vmem:[#allocation2 + $0x1a8] sm:$0xff]
      %v919 = vld [vmem:[#allocation2 + $0x1b0] sm:$0xff]
      %v920 = vld [vmem:[#allocation2 + $0x1b8] sm:$0xff]
      %v921 = vld [vmem:[#allocation2 + $0x1c0] sm:$0xff]
      %v922 = vld [vmem:[#allocation2 + $0x1c8] sm:$0xff]
      %v923 = vld [vmem:[#allocation2 + $0x1d0] sm:$0xff]
      %v924 = vld [vmem:[#allocation2 + $0x1d8] sm:$0xff]
      %v925 = vld [vmem:[#allocation2 + $0x1e0] sm:$0xff]
      %v926 = vld [vmem:[#allocation2 + $0x1e8] sm:$0xff]
      %v927 = vld [vmem:[#allocation2 + $0x1f0] sm:$0xff]
      %v928 = vld [vmem:[%s5] sm:$0xff]
      %v929 = vld [vmem:[%s5 + $0x8] sm:$0xff]
      %v930 = vld [vmem:[%s5 + $0x10] sm:$0xff]
      %932 = vset.pattern.permute.xlu0 0
      %933 = vperm.xlu0 %932, %v928
      %v934 = vpop.permute.xlu0 %933
      %937 = vset.pattern.permute.xlu0 0
      %938 = vperm.xlu0 %937, %v929
      %v939 = vpop.permute.xlu0 %938
      %942 = vset.pattern.permute.xlu0 0
      %943 = vperm.xlu0 %942, %v930
      %v944 = vpop.permute.xlu0 %943
      %vm946 = vcmask 588800
      %v948 = vsel %vm946, %v862, 0
      %v951 = vsel %vm946, %v863, 0
      %v954 = vsel %vm946, %v864, 0
      %956 = vmatprep.subr.mxu0 %v866
      %957 = vmatpush1.msra.mxu0 %v865
      %958 = vmatprep.subr.mxu0 %v873
      %959 = vmatpush1.msra.mxu0 %v872
      %960 = vmatprep.subr.mxu0 %v880
      %961 = vmatpush1.msra.mxu0 %v879
      %962 = vmatprep.subr.mxu0 %v887
      %963 = vmatpush1.msra.mxu0 %v886
      %964 = vmatprep.subr.mxu0 %v894
      %965 = vmatpush1.msra.mxu0 %v893
      %966 = vmatprep.subr.mxu0 %v901
      %967 = vmatpush1.msra.mxu0 %v900
      %968 = vmatprep.subr.mxu0 %v908
      %969 = vmatpush1.msra.mxu0 %v907
      %970 = vmatprep.subr.mxu0 %v915
      %971 = vmatpush1.msra.mxu0 %v914
      %972 = vmatprep.subr.mxu0 %v922
      %973 = vmatpush1.msra.mxu0 %v921
      %974 = vmatprep.subr.mxu0 0.0
      %975 = vmatpush1.msra.mxu0 0.0
      %976 = vmatprep.subr.mxu0 0.0
      %977 = vmatpush1.msra.mxu0 0.0
      %978 = vmatprep.subr.mxu0 0.0
      %979 = vmatpush1.msra.mxu0 0.0
      %980 = vmatprep.subr.mxu0 0.0
      %981 = vmatpush1.msra.mxu0 0.0
      %982 = vmatprep.subr.mxu0 0.0
      %983 = vmatpush1.msra.mxu0 0.0
      %984 = vmatprep.subr.mxu0 0.0
      %985 = vmatpush1.msra.mxu0 0.0
      %986 = vmatprep.subr.mxu0 0.0
      %987 = vmatpush1.msra.mxu0 0.0
      %988 = vmatprep.subr.mxu0 0.0
      %989 = vmatpush1.msra.mxu0 0.0
      %990 = vmatprep.subr.mxu0 0.0
      %991 = vmatpush1.msra.mxu0 0.0
      %992 = vmatprep.subr.mxu0 0.0
      %993 = vmatpush1.msra.mxu0 0.0
      %994 = vmatprep.subr.mxu0 0.0
      %995 = vmatpush1.msra.mxu0 0.0
      %996 = vmatprep.subr.mxu0 0.0
      %997 = vmatpush1.msra.mxu0 0.0
      %998 = vmatprep.subr.mxu0 0.0
      %999 = vmatpush1.msra.mxu0 0.0
      %1000 = vmatprep.subr.mxu0 0.0
      %1001 = vmatpush1.msra.mxu0 0.0
      %1002 = vmatprep.subr.mxu0 0.0
      %1003 = vmatpush1.msra.mxu0 0.0
      %1004 = vmatprep.subr.mxu0 0.0
      %1005 = vmatpush1.msra.mxu0 0.0
      %1006 = vmatprep.subr.mxu0 0.0
      %1007 = vmatpush1.msra.mxu0 0.0
      %1008 = vmatprep.subr.mxu0 0.0
      %1009 = vmatpush1.msra.mxu0 0.0
      %1010 = vmatprep.subr.mxu0 0.0
      %1011 = vmatpush1.msra.mxu0 0.0
      %1012 = vmatprep.subr.mxu0 0.0
      %1013 = vmatpush1.msra.mxu0 0.0
      %1014 = vmatprep.subr.mxu0 0.0
      %1015 = vmatpush1.msra.mxu0 0.0
      %1016 = vmatprep.subr.mxu0 0.0
      %1017 = vmatpush1.msra.mxu0 0.0
      %1018 = vmatprep.subr.mxu0 0.0
      %1019 = vmatpush1.msra.mxu0 0.0
      %1020 = vmatprep.mubr.f32.mxu0 0.0
      %1021 = vmatmul.mubr.f32.gmra.mrb[0].mxu0 %v948
      %v1022 = vpop.f32.mrb[0].mxu0
      %v1023 = vadd.f32 %v934, %v1022
      %v1024 = vpop.f32.mrb[0].mxu0
      %v1025 = vadd.f32 %v934, %v1024
      %1026 = vmatprep.mubr.f32.mxu0 0.0
      %1027 = vmatmul.mubr.f32.gmra.mrb[0].mxu0 %v951
      %v1028 = vpop.f32.mrb[0].mxu0
      %v1029 = vadd.f32 %v939, %v1028
      %v1030 = vpop.f32.mrb[0].mxu0
      %v1031 = vadd.f32 %v939, %v1030
      %1032 = vmatprep.mubr.f32.mxu0 0.0
      %1033 = vmatmul.mubr.f32.gmra.mrb[0].mxu0 %v954
      %v1034 = vpop.f32.mrb[0].mxu0
      %v1035 = vadd.f32 %v944, %v1034
      %v1036 = vpop.f32.mrb[0].mxu0
      %v1037 = vadd.f32 %v944, %v1036
      %1038 = vdwg.mxu0
      %1039 = vmatprep.subr.mxu0 %v868
      %1040 = vmatpush1.msra.mxu0 %v867
      %1041 = vmatprep.subr.mxu0 %v875
      %1042 = vmatpush1.msra.mxu0 %v874
      %1043 = vmatprep.subr.mxu0 %v882
      %1044 = vmatpush1.msra.mxu0 %v881
      %1045 = vmatprep.subr.mxu0 %v889
      %1046 = vmatpush1.msra.mxu0 %v888
      %1047 = vmatprep.subr.mxu0 %v896
      %1048 = vmatpush1.msra.mxu0 %v895
      %1049 = vmatprep.subr.mxu0 %v903
      %1050 = vmatpush1.msra.mxu0 %v902
      %1051 = vmatprep.subr.mxu0 %v910
      %1052 = vmatpush1.msra.mxu0 %v909
      %1053 = vmatprep.subr.mxu0 %v917
      %1054 = vmatpush1.msra.mxu0 %v916
      %1055 = vmatprep.subr.mxu0 %v924
      %1056 = vmatpush1.msra.mxu0 %v923
      %1057 = vmatprep.subr.mxu0 0.0
      %1058 = vmatpush1.msra.mxu0 0.0
      %1059 = vmatprep.subr.mxu0 0.0
      %1060 = vmatpush1.msra.mxu0 0.0
      %1061 = vmatprep.subr.mxu0 0.0
      %1062 = vmatpush1.msra.mxu0 0.0
      %1063 = vmatprep.subr.mxu0 0.0
      %1064 = vmatpush1.msra.mxu0 0.0
      %1065 = vmatprep.subr.mxu0 0.0
      %1066 = vmatpush1.msra.mxu0 0.0
      %1067 = vmatprep.subr.mxu0 0.0
      %1068 = vmatpush1.msra.mxu0 0.0
      %1069 = vmatprep.subr.mxu0 0.0
      %1070 = vmatpush1.msra.mxu0 0.0
      %1071 = vmatprep.subr.mxu0 0.0
      %1072 = vmatpush1.msra.mxu0 0.0
      %1073 = vmatprep.subr.mxu0 0.0
      %1074 = vmatpush1.msra.mxu0 0.0
      %1075 = vmatprep.subr.mxu0 0.0
      %1076 = vmatpush1.msra.mxu0 0.0
      %1077 = vmatprep.subr.mxu0 0.0
      %1078 = vmatpush1.msra.mxu0 0.0
      %1079 = vmatprep.subr.mxu0 0.0
      %1080 = vmatpush1.msra.mxu0 0.0
      %1081 = vmatprep.subr.mxu0 0.0
      %1082 = vmatpush1.msra.mxu0 0.0
      %1083 = vmatprep.subr.mxu0 0.0
      %1084 = vmatpush1.msra.mxu0 0.0
      %1085 = vmatprep.subr.mxu0 0.0
      %1086 = vmatpush1.msra.mxu0 0.0
      %1087 = vmatprep.subr.mxu0 0.0
      %1088 = vmatpush1.msra.mxu0 0.0
      %1089 = vmatprep.subr.mxu0 0.0
      %1090 = vmatpush1.msra.mxu0 0.0
      %1091 = vmatprep.subr.mxu0 0.0
      %1092 = vmatpush1.msra.mxu0 0.0
      %1093 = vmatprep.subr.mxu0 0.0
      %1094 = vmatpush1.msra.mxu0 0.0
      %1095 = vmatprep.subr.mxu0 0.0
      %1096 = vmatpush1.msra.mxu0 0.0
      %1097 = vmatprep.subr.mxu0 0.0
      %1098 = vmatpush1.msra.mxu0 0.0
      %1099 = vmatprep.subr.mxu0 0.0
      %1100 = vmatpush1.msra.mxu0 0.0
      %1101 = vmatprep.subr.mxu0 0.0
      %1102 = vmatpush1.msra.mxu0 0.0
      %1103 = vmatprep.mubr.f32.mxu0 0.0
      %1104 = vmatmul.mubr.f32.gmra.mrb[0].mxu0 %v948
      %v1105 = vpop.f32.mrb[0].mxu0
      %v1106 = vadd.f32 %v934, %v1105
      %v1107 = vpop.f32.mrb[0].mxu0
      %v1108 = vadd.f32 %v934, %v1107
      %1109 = vmatprep.mubr.f32.mxu0 0.0
      %1110 = vmatmul.mubr.f32.gmra.mrb[0].mxu0 %v951
      %v1111 = vpop.f32.mrb[0].mxu0
      %v1112 = vadd.f32 %v939, %v1111
      %v1113 = vpop.f32.mrb[0].mxu0
      %v1114 = vadd.f32 %v939, %v1113
      %1115 = vmatprep.mubr.f32.mxu0 0.0
      %1116 = vmatmul.mubr.f32.gmra.mrb[0].mxu0 %v954
      %v1117 = vpop.f32.mrb[0].mxu0
      %v1118 = vadd.f32 %v944, %v1117
      %v1119 = vpop.f32.mrb[0].mxu0
      %v1120 = vadd.f32 %v944, %v1119
      %1121 = vdwg.mxu0
      %1122 = vmatprep.subr.mxu0 %v870
      %1123 = vmatpush1.msra.mxu0 %v869
      %1124 = vmatprep.subr.mxu0 %v877
      %1125 = vmatpush1.msra.mxu0 %v876
      %1126 = vmatprep.subr.mxu0 %v884
      %1127 = vmatpush1.msra.mxu0 %v883
      %1128 = vmatprep.subr.mxu0 %v891
      %1129 = vmatpush1.msra.mxu0 %v890
      %1130 = vmatprep.subr.mxu0 %v898
      %1131 = vmatpush1.msra.mxu0 %v897
      %1132 = vmatprep.subr.mxu0 %v905
      %1133 = vmatpush1.msra.mxu0 %v904
      %1134 = vmatprep.subr.mxu0 %v912
      %1135 = vmatpush1.msra.mxu0 %v911
      %1136 = vmatprep.subr.mxu0 %v919
      %1137 = vmatpush1.msra.mxu0 %v918
      %1138 = vmatprep.subr.mxu0 %v926
      %1139 = vmatpush1.msra.mxu0 %v925
      %1140 = vmatprep.subr.mxu0 0.0
      %1141 = vmatpush1.msra.mxu0 0.0
      %1142 = vmatprep.subr.mxu0 0.0
      %1143 = vmatpush1.msra.mxu0 0.0
      %1144 = vmatprep.subr.mxu0 0.0
      %1145 = vmatpush1.msra.mxu0 0.0
      %1146 = vmatprep.subr.mxu0 0.0
      %1147 = vmatpush1.msra.mxu0 0.0
      %1148 = vmatprep.subr.mxu0 0.0
      %1149 = vmatpush1.msra.mxu0 0.0
      %1150 = vmatprep.subr.mxu0 0.0
      %1151 = vmatpush1.msra.mxu0 0.0
      %1152 = vmatprep.subr.mxu0 0.0
      %1153 = vmatpush1.msra.mxu0 0.0
      %1154 = vmatprep.subr.mxu0 0.0
      %1155 = vmatpush1.msra.mxu0 0.0
      %1156 = vmatprep.subr.mxu0 0.0
      %1157 = vmatpush1.msra.mxu0 0.0
      %1158 = vmatprep.subr.mxu0 0.0
      %1159 = vmatpush1.msra.mxu0 0.0
      %1160 = vmatprep.subr.mxu0 0.0
      %1161 = vmatpush1.msra.mxu0 0.0
      %1162 = vmatprep.subr.mxu0 0.0
      %1163 = vmatpush1.msra.mxu0 0.0
      %1164 = vmatprep.subr.mxu0 0.0
      %1165 = vmatpush1.msra.mxu0 0.0
      %1166 = vmatprep.subr.mxu0 0.0
      %1167 = vmatpush1.msra.mxu0 0.0
      %1168 = vmatprep.subr.mxu0 0.0
      %1169 = vmatpush1.msra.mxu0 0.0
      %1170 = vmatprep.subr.mxu0 0.0
      %1171 = vmatpush1.msra.mxu0 0.0
      %1172 = vmatprep.subr.mxu0 0.0
      %1173 = vmatpush1.msra.mxu0 0.0
      %1174 = vmatprep.subr.mxu0 0.0
      %1175 = vmatpush1.msra.mxu0 0.0
      %1176 = vmatprep.subr.mxu0 0.0
      %1177 = vmatpush1.msra.mxu0 0.0
      %1178 = vmatprep.subr.mxu0 0.0
      %1179 = vmatpush1.msra.mxu0 0.0
      %1180 = vmatprep.subr.mxu0 0.0
      %1181 = vmatpush1.msra.mxu0 0.0
      %1182 = vmatprep.subr.mxu0 0.0
      %1183 = vmatpush1.msra.mxu0 0.0
      %1184 = vmatprep.subr.mxu0 0.0
      %1185 = vmatpush1.msra.mxu0 0.0
      %1186 = vmatprep.mubr.f32.mxu0 0.0
      %1187 = vmatmul.mubr.f32.gmra.mrb[0].mxu0 %v948
      %v1188 = vpop.f32.mrb[0].mxu0
      %v1189 = vadd.f32 %v934, %v1188
      %v1190 = vpop.f32.mrb[0].mxu0
      %v1191 = vadd.f32 %v934, %v1190
      %1192 = vmatprep.mubr.f32.mxu0 0.0
      %1193 = vmatmul.mubr.f32.gmra.mrb[0].mxu0 %v951
      %v1194 = vpop.f32.mrb[0].mxu0
      %v1195 = vadd.f32 %v939, %v1194
      %v1196 = vpop.f32.mrb[0].mxu0
      %v1197 = vadd.f32 %v939, %v1196
      %1198 = vmatprep.mubr.f32.mxu0 0.0
      %1199 = vmatmul.mubr.f32.gmra.mrb[0].mxu0 %v954
      %v1200 = vpop.f32.mrb[0].mxu0
      %v1201 = vadd.f32 %v944, %v1200
      %v1202 = vpop.f32.mrb[0].mxu0
      %v1203 = vadd.f32 %v944, %v1202
      %1204 = vdwg.mxu0
      %1205 = vmatprep.subr.mxu0 0.0
      %1206 = vmatpush1.msra.mxu0 %v871
      %1207 = vmatprep.subr.mxu0 0.0
      %1208 = vmatpush1.msra.mxu0 %v878
      %1209 = vmatprep.subr.mxu0 0.0
      %1210 = vmatpush1.msra.mxu0 %v885
      %1211 = vmatprep.subr.mxu0 0.0
      %1212 = vmatpush1.msra.mxu0 %v892
      %1213 = vmatprep.subr.mxu0 0.0
      %1214 = vmatpush1.msra.mxu0 %v899
      %1215 = vmatprep.subr.mxu0 0.0
      %1216 = vmatpush1.msra.mxu0 %v906
      %1217 = vmatprep.subr.mxu0 0.0
      %1218 = vmatpush1.msra.mxu0 %v913
      %1219 = vmatprep.subr.mxu0 0.0
      %1220 = vmatpush1.msra.mxu0 %v920
      %1221 = vmatprep.subr.mxu0 0.0
      %1222 = vmatpush1.msra.mxu0 %v927
      %1223 = vmatprep.subr.mxu0 0.0
      %1224 = vmatpush1.msra.mxu0 0.0
      %1225 = vmatprep.subr.mxu0 0.0
      %1226 = vmatpush1.msra.mxu0 0.0
      %1227 = vmatprep.subr.mxu0 0.0
      %1228 = vmatpush1.msra.mxu0 0.0
      %1229 = vmatprep.subr.mxu0 0.0
      %1230 = vmatpush1.msra.mxu0 0.0
      %1231 = vmatprep.subr.mxu0 0.0
      %1232 = vmatpush1.msra.mxu0 0.0
      %1233 = vmatprep.subr.mxu0 0.0
      %1234 = vmatpush1.msra.mxu0 0.0
      %1235 = vmatprep.subr.mxu0 0.0
      %1236 = vmatpush1.msra.mxu0 0.0
      %1237 = vmatprep.subr.mxu0 0.0
      %1238 = vmatpush1.msra.mxu0 0.0
      %1239 = vmatprep.subr.mxu0 0.0
      %1240 = vmatpush1.msra.mxu0 0.0
      %1241 = vmatprep.subr.mxu0 0.0
      %1242 = vmatpush1.msra.mxu0 0.0
      %1243 = vmatprep.subr.mxu0 0.0
      %1244 = vmatpush1.msra.mxu0 0.0
      %1245 = vmatprep.subr.mxu0 0.0
      %1246 = vmatpush1.msra.mxu0 0.0
      %1247 = vmatprep.subr.mxu0 0.0
      %1248 = vmatpush1.msra.mxu0 0.0
      %1249 = vmatprep.subr.mxu0 0.0
      %1250 = vmatpush1.msra.mxu0 0.0
      %1251 = vmatprep.subr.mxu0 0.0
      %1252 = vmatpush1.msra.mxu0 0.0
      %1253 = vmatprep.subr.mxu0 0.0
      %1254 = vmatpush1.msra.mxu0 0.0
      %1255 = vmatprep.subr.mxu0 0.0
      %1256 = vmatpush1.msra.mxu0 0.0
      %1257 = vmatprep.subr.mxu0 0.0
      %1258 = vmatpush1.msra.mxu0 0.0
      %1259 = vmatprep.subr.mxu0 0.0
      %1260 = vmatpush1.msra.mxu0 0.0
      %1261 = vmatprep.subr.mxu0 0.0
      %1262 = vmatpush1.msra.mxu0 0.0
      %1263 = vmatprep.subr.mxu0 0.0
      %1264 = vmatpush1.msra.mxu0 0.0
      %1265 = vmatprep.subr.mxu0 0.0
      %1266 = vmatpush1.msra.mxu0 0.0
      %1267 = vmatprep.subr.mxu0 0.0
      %1268 = vmatpush1.msra.mxu0 0.0
      %1269 = vmatprep.mubr.f32.mxu0 0.0
      %1270 = vmatmul.mubr.f32.gmra.mrb[0].mxu0 %v948
      %v1271 = vpop.f32.mrb[0].mxu0
      %v1272 = vadd.f32 %v934, %v1271
      %v1273 = vpop.f32.mrb[0].mxu0
      %1274 = vmatprep.mubr.f32.mxu0 0.0
      %1275 = vmatmul.mubr.f32.gmra.mrb[0].mxu0 %v951
      %v1276 = vpop.f32.mrb[0].mxu0
      %v1277 = vadd.f32 %v939, %v1276
      %v1278 = vpop.f32.mrb[0].mxu0
      %1279 = vmatprep.mubr.f32.mxu0 0.0
      %1280 = vmatmul.mubr.f32.gmra.mrb[0].mxu0 %v954
      %v1281 = vpop.f32.mrb[0].mxu0
      %v1282 = vadd.f32 %v944, %v1281
      %v1283 = vpop.f32.mrb[0].mxu0
      %1284 = vdwg.mxu0
      %v1285 = vmax.f32 %v1023, 0.0
      %v1286 = vmax.f32 %v1025, 0.0
      %v1287 = vmax.f32 %v1106, 0.0
      %v1288 = vmax.f32 %v1108, 0.0
      %v1289 = vmax.f32 %v1189, 0.0
      %v1290 = vmax.f32 %v1191, 0.0
      %v1291 = vmax.f32 %v1272, 0.0
      %v1292 = vmax.f32 %v1029, 0.0
      %v1293 = vmax.f32 %v1031, 0.0
      %v1294 = vmax.f32 %v1112, 0.0
      %v1295 = vmax.f32 %v1114, 0.0
      %v1296 = vmax.f32 %v1195, 0.0
      %v1297 = vmax.f32 %v1197, 0.0
      %v1298 = vmax.f32 %v1277, 0.0
      %v1299 = vmax.f32 %v1035, 0.0
      %v1300 = vmax.f32 %v1037, 0.0
      %v1301 = vmax.f32 %v1118, 0.0
      %v1302 = vmax.f32 %v1120, 0.0
      %v1303 = vmax.f32 %v1201, 0.0
      %v1304 = vmax.f32 %v1203, 0.0
      %v1305 = vmax.f32 %v1282, 0.0
      %1306 = vst [vmem:[#allocation3] sm:$0xff] %v1285
      %1307 = vst [vmem:[#allocation3 + $0x8] sm:$0xff] %v1286
      %1308 = vst [vmem:[#allocation3 + $0x10] sm:$0xff] %v1287
      %1309 = vst [vmem:[#allocation3 + $0x18] sm:$0xff] %v1288
      %1310 = vst [vmem:[#allocation3 + $0x20] sm:$0xff] %v1289
      %1311 = vst [vmem:[#allocation3 + $0x28] sm:$0xff] %v1290
      %1312 = vst.msk [vmem:[#allocation3 + $0x30] sm:$0xff] %vm539, %v1291
      %1313 = vst [vmem:[#allocation3 + $0x38] sm:$0xff] %v1292
      %1314 = vst [vmem:[#allocation3 + $0x40] sm:$0xff] %v1293
      %1315 = vst [vmem:[#allocation3 + $0x48] sm:$0xff] %v1294
      %1316 = vst [vmem:[#allocation3 + $0x50] sm:$0xff] %v1295
      %1317 = vst [vmem:[#allocation3 + $0x58] sm:$0xff] %v1296
      %1318 = vst [vmem:[#allocation3 + $0x60] sm:$0xff] %v1297
      %1319 = vst.msk [vmem:[#allocation3 + $0x68] sm:$0xff] %vm539, %v1298
      %1320 = vst [vmem:[#allocation3 + $0x70] sm:$0xff] %v1299
      %1321 = vst [vmem:[#allocation3 + $0x78] sm:$0xff] %v1300
      %1322 = vst [vmem:[#allocation3 + $0x80] sm:$0xff] %v1301
      %1323 = vst [vmem:[#allocation3 + $0x88] sm:$0xff] %v1302
      %1324 = vst [vmem:[#allocation3 + $0x90] sm:$0xff] %v1303
      %1325 = vst [vmem:[#allocation3 + $0x98] sm:$0xff] %v1304
      %1326 = vst.msk [vmem:[#allocation3 + $0xa0] sm:$0xff] %vm539, %v1305
      %v1327 = vld [vmem:[#allocation3] sm:$0xff]
      %v1328 = vld [vmem:[#allocation3 + $0x8] sm:$0xff]
      %v1329 = vld [vmem:[#allocation3 + $0x10] sm:$0xff]
      %v1330 = vld [vmem:[#allocation3 + $0x18] sm:$0xff]
      %v1331 = vld [vmem:[#allocation3 + $0x78] sm:$0xff]
      %v1332 = vld [vmem:[#allocation3 + $0x80] sm:$0xff]
      %v1333 = vld [vmem:[#allocation3 + $0x88] sm:$0xff]
      %v1334 = vld [vmem:[%s3] sm:$0x7]
      %v1336 = vlaneseq
      %v1337 = vshrl.u32 %v1336, 7
      %v1338 = vsub.s32 0, %v1337
      %v1339 = vrot.slane %v1334, %v1338
      %v1340 = vlaneseq
      %v1341 = vshrl.u32 %v1340, 7
      %v1342 = vsub.s32 1, %v1341
      %v1343 = vrot.slane %v1334, %v1342
      %v1344 = vlaneseq
      %v1345 = vshrl.u32 %v1344, 7
      %v1346 = vsub.s32 2, %v1345
      %v1347 = vrot.slane %v1334, %v1346
      %1348 = vrot.lane.b32.xlu0 %v1339, 34
      %v1349 = vpop.permute.xlu0 %1348
      %1350 = vrot.lane.b32.xlu0 %v1343, 34
      %v1351 = vpop.permute.xlu0 %1350
      %1352 = vrot.lane.b32.xlu0 %v1347, 34
      %v1353 = vpop.permute.xlu0 %1352
      %v1354 = vsel %vm304, %v1349, %v1351
      %v1355 = vsel %vm304, %v1351, %v1353
      %v1359 = vmul.f32 %v1331, %v1349
      %v1360 = vmul.f32 %v1332, %v1354
      %v1361 = vmul.f32 %v1333, %v1355
      %v1362 = vld [vmem:[%s283] sm:$0x1]
      %v1364 = vlaneseq
      %v1365 = vshrl.u32 %v1364, 7
      %v1366 = vsub.s32 0, %v1365
      %v1367 = vrot.slane %v1362, %v1366
      %v1369 = vmul.f32 %v1327, %v1367
      %v1370 = vsel %vm290, %v1369, 0.0
      %1371 = vadd.xlane.f32.xlu0 %v1370
      %v1372 = vpop.xlane.xlu0 %1371
      %v1373 = vld [vmem:[#allocation3 + $0x38] sm:$0xff]
      %1375 = vrot.lane.b32.xlu0 %v1373, 118
      %v1376 = vpop.permute.xlu0 %1375
      %1378 = vrot.lane.b32.xlu0 %v1373, 114
      %v1379 = vpop.permute.xlu0 %1378
      %1381 = vrot.lane.b32.xlu0 %v1373, 110
      %v1382 = vpop.permute.xlu0 %1381
      %1384 = vrot.lane.b32.xlu0 %v1373, 106
      %v1385 = vpop.permute.xlu0 %1384
      %1387 = vrot.lane.b32.xlu0 %v1373, 102
      %v1388 = vpop.permute.xlu0 %1387
      %vm1390 = vcmask 39936
      %v1391 = vsel %vm1390, %v1376, %v1379
      %vm1392 = vcmask 80896
      %v1393 = vsel %vm1392, %v1391, %v1382
      %vm1394 = vcmask 121856
      %v1395 = vsel %vm1394, %v1393, %v1385
      %vm1396 = vcmask 162816
      %v1397 = vsel %vm1396, %v1395, %v1388
      %1399 = vset.pattern.permute.xlu0 0
      %1400 = vperm.xlu0 %1399, %v1397
      %v1401 = vpop.permute.xlu0 %1400
      %v1403 = vmul.f32 %v1401, %v1359
      %v1404 = vmul.f32 %v1401, %v1360
      %v1405 = vmul.f32 %v1401, %v1361
      %1406 = vset.pattern.permute.xlu0 1
      %1407 = vperm.xlu0 %1406, %v1397
      %v1408 = vpop.permute.xlu0 %1407
      %v1410 = vmul.f32 %v1408, %v1359
      %v1411 = vmul.f32 %v1408, %v1360
      %v1412 = vmul.f32 %v1408, %v1361
      %1416 = vrot.lane.b32.xlu0 %v1410, 127
      %v1417 = vpop.permute.xlu0 %1416
      %1418 = vrot.lane.b32.xlu0 %v1411, 127
      %v1419 = vpop.permute.xlu0 %1418
      %1420 = vrot.lane.b32.xlu0 %v1412, 127
      %v1421 = vpop.permute.xlu0 %1420
      %v1422 = vsel %vm571, %v1417, %v1419
      %v1423 = vsel %vm571, %v1419, %v1421
      %v1427 = vadd.f32 %v1403, %v1422
      %v1428 = vadd.f32 %v1404, %v1423
      %v1429 = vadd.f32 %v1405, %v1421
      %1430 = vset.pattern.permute.xlu0 2
      %1431 = vperm.xlu0 %1430, %v1397
      %v1432 = vpop.permute.xlu0 %1431
      %v1434 = vmul.f32 %v1432, %v1359
      %v1435 = vmul.f32 %v1432, %v1360
      %v1436 = vmul.f32 %v1432, %v1361
      %1440 = vrot.lane.b32.xlu0 %v1434, 126
      %v1441 = vpop.permute.xlu0 %1440
      %1442 = vrot.lane.b32.xlu0 %v1435, 126
      %v1443 = vpop.permute.xlu0 %1442
      %1444 = vrot.lane.b32.xlu0 %v1436, 126
      %v1445 = vpop.permute.xlu0 %1444
      %v1446 = vsel %vm613, %v1441, %v1443
      %v1447 = vsel %vm613, %v1443, %v1445
      %v1451 = vadd.f32 %v1427, %v1446
      %v1452 = vadd.f32 %v1428, %v1447
      %v1453 = vadd.f32 %v1429, %v1445
      %1454 = vset.pattern.permute.xlu0 3
      %1455 = vperm.xlu0 %1454, %v1397
      %v1456 = vpop.permute.xlu0 %1455
      %v1458 = vmul.f32 %v1456, %v1359
      %v1459 = vmul.f32 %v1456, %v1360
      %v1460 = vmul.f32 %v1456, %v1361
      %1464 = vrot.lane.b32.xlu0 %v1458, 125
      %v1465 = vpop.permute.xlu0 %1464
      %1466 = vrot.lane.b32.xlu0 %v1459, 125
      %v1467 = vpop.permute.xlu0 %1466
      %1468 = vrot.lane.b32.xlu0 %v1460, 125
      %v1469 = vpop.permute.xlu0 %1468
      %vm1470 = vcmask 1022976
      %v1471 = vsel %vm1470, %v1465, %v1467
      %v1472 = vsel %vm1470, %v1467, %v1469
      %v1476 = vadd.f32 %v1451, %v1471
      %v1477 = vadd.f32 %v1452, %v1472
      %v1478 = vadd.f32 %v1453, %v1469
      %1479 = vset.pattern.permute.xlu0 4
      %1480 = vperm.xlu0 %1479, %v1397
      %v1481 = vpop.permute.xlu0 %1480
      %v1483 = vmul.f32 %v1481, %v1359
      %v1484 = vmul.f32 %v1481, %v1360
      %v1485 = vmul.f32 %v1481, %v1361
      %1489 = vrot.lane.b32.xlu0 %v1483, 124
      %v1490 = vpop.permute.xlu0 %1489
      %1491 = vrot.lane.b32.xlu0 %v1484, 124
      %v1492 = vpop.permute.xlu0 %1491
      %1493 = vrot.lane.b32.xlu0 %v1485, 124
      %v1494 = vpop.permute.xlu0 %1493
      %vm1495 = vcmask 1014784
      %v1496 = vsel %vm1495, %v1490, %v1492
      %v1497 = vsel %vm1495, %v1492, %v1494
      %v1501 = vadd.f32 %v1476, %v1496
      %v1502 = vadd.f32 %v1477, %v1497
      %v1503 = vadd.f32 %v1478, %v1494
      %1504 = vset.pattern.permute.xlu0 5
      %1505 = vperm.xlu0 %1504, %v1397
      %v1506 = vpop.permute.xlu0 %1505
      %v1508 = vmul.f32 %v1506, %v1359
      %v1509 = vmul.f32 %v1506, %v1360
      %v1510 = vmul.f32 %v1506, %v1361
      %1511 = vset.pattern.permute.xlu0 6
      %1512 = vperm.xlu0 %1511, %v1397
      %v1513 = vpop.permute.xlu0 %1512
      %v1515 = vmul.f32 %v1513, %v1359
      %v1516 = vmul.f32 %v1513, %v1360
      %v1517 = vmul.f32 %v1513, %v1361
      %1521 = vrot.lane.b32.xlu0 %v1515, 127
      %v1522 = vpop.permute.xlu0 %1521
      %1523 = vrot.lane.b32.xlu0 %v1516, 127
      %v1524 = vpop.permute.xlu0 %1523
      %1525 = vrot.lane.b32.xlu0 %v1517, 127
      %v1526 = vpop.permute.xlu0 %1525
      %v1527 = vsel %vm571, %v1522, %v1524
      %v1528 = vsel %vm571, %v1524, %v1526
      %v1532 = vadd.f32 %v1508, %v1527
      %v1533 = vadd.f32 %v1509, %v1528
      %v1534 = vadd.f32 %v1510, %v1526
      %1535 = vset.pattern.permute.xlu0 7
      %1536 = vperm.xlu0 %1535, %v1397
      %v1537 = vpop.permute.xlu0 %1536
      %v1539 = vmul.f32 %v1537, %v1359
      %v1540 = vmul.f32 %v1537, %v1360
      %v1541 = vmul.f32 %v1537, %v1361
      %1545 = vrot.lane.b32.xlu0 %v1539, 126
      %v1546 = vpop.permute.xlu0 %1545
      %1547 = vrot.lane.b32.xlu0 %v1540, 126
      %v1548 = vpop.permute.xlu0 %1547
      %1549 = vrot.lane.b32.xlu0 %v1541, 126
      %v1550 = vpop.permute.xlu0 %1549
      %v1551 = vsel %vm613, %v1546, %v1548
      %v1552 = vsel %vm613, %v1548, %v1550
      %v1556 = vadd.f32 %v1532, %v1551
      %v1557 = vadd.f32 %v1533, %v1552
      %v1558 = vadd.f32 %v1534, %v1550
      %1559 = vset.pattern.permute.xlu0 8
      %1560 = vperm.xlu0 %1559, %v1397
      %v1561 = vpop.permute.xlu0 %1560
      %v1563 = vmul.f32 %v1561, %v1359
      %v1564 = vmul.f32 %v1561, %v1360
      %v1565 = vmul.f32 %v1561, %v1361
      %1569 = vrot.lane.b32.xlu0 %v1563, 125
      %v1570 = vpop.permute.xlu0 %1569
      %1571 = vrot.lane.b32.xlu0 %v1564, 125
      %v1572 = vpop.permute.xlu0 %1571
      %1573 = vrot.lane.b32.xlu0 %v1565, 125
      %v1574 = vpop.permute.xlu0 %1573
      %v1575 = vsel %vm1470, %v1570, %v1572
      %v1576 = vsel %vm1470, %v1572, %v1574
      %v1580 = vadd.f32 %v1556, %v1575
      %v1581 = vadd.f32 %v1557, %v1576
      %v1582 = vadd.f32 %v1558, %v1574
      %1583 = vset.pattern.permute.xlu0 9
      %1584 = vperm.xlu0 %1583, %v1397
      %v1585 = vpop.permute.xlu0 %1584
      %v1587 = vmul.f32 %v1585, %v1359
      %v1588 = vmul.f32 %v1585, %v1360
      %v1589 = vmul.f32 %v1585, %v1361
      %1593 = vrot.lane.b32.xlu0 %v1587, 124
      %v1594 = vpop.permute.xlu0 %1593
      %1595 = vrot.lane.b32.xlu0 %v1588, 124
      %v1596 = vpop.permute.xlu0 %1595
      %1597 = vrot.lane.b32.xlu0 %v1589, 124
      %v1598 = vpop.permute.xlu0 %1597
      %v1599 = vsel %vm1495, %v1594, %v1596
      %v1600 = vsel %vm1495, %v1596, %v1598
      %v1604 = vadd.f32 %v1580, %v1599
      %v1605 = vadd.f32 %v1581, %v1600
      %v1606 = vadd.f32 %v1582, %v1598
      %1607 = vset.pattern.permute.xlu0 10
      %1608 = vperm.xlu0 %1607, %v1397
      %v1609 = vpop.permute.xlu0 %1608
      %v1611 = vmul.f32 %v1609, %v1359
      %v1612 = vmul.f32 %v1609, %v1360
      %v1613 = vmul.f32 %v1609, %v1361
      %1614 = vset.pattern.permute.xlu0 11
      %1615 = vperm.xlu0 %1614, %v1397
      %v1616 = vpop.permute.xlu0 %1615
      %v1618 = vmul.f32 %v1616, %v1359
      %v1619 = vmul.f32 %v1616, %v1360
      %v1620 = vmul.f32 %v1616, %v1361
      %1624 = vrot.lane.b32.xlu0 %v1618, 127
      %v1625 = vpop.permute.xlu0 %1624
      %1626 = vrot.lane.b32.xlu0 %v1619, 127
      %v1627 = vpop.permute.xlu0 %1626
      %1628 = vrot.lane.b32.xlu0 %v1620, 127
      %v1629 = vpop.permute.xlu0 %1628
      %v1630 = vsel %vm571, %v1625, %v1627
      %v1631 = vsel %vm571, %v1627, %v1629
      %v1635 = vadd.f32 %v1611, %v1630
      %v1636 = vadd.f32 %v1612, %v1631
      %v1637 = vadd.f32 %v1613, %v1629
      %1638 = vset.pattern.permute.xlu0 12
      %1639 = vperm.xlu0 %1638, %v1397
      %v1640 = vpop.permute.xlu0 %1639
      %v1642 = vmul.f32 %v1640, %v1359
      %v1643 = vmul.f32 %v1640, %v1360
      %v1644 = vmul.f32 %v1640, %v1361
      %1648 = vrot.lane.b32.xlu0 %v1642, 126
      %v1649 = vpop.permute.xlu0 %1648
      %1650 = vrot.lane.b32.xlu0 %v1643, 126
      %v1651 = vpop.permute.xlu0 %1650
      %1652 = vrot.lane.b32.xlu0 %v1644, 126
      %v1653 = vpop.permute.xlu0 %1652
      %v1654 = vsel %vm613, %v1649, %v1651
      %v1655 = vsel %vm613, %v1651, %v1653
      %v1659 = vadd.f32 %v1635, %v1654
      %v1660 = vadd.f32 %v1636, %v1655
      %v1661 = vadd.f32 %v1637, %v1653
      %1662 = vset.pattern.permute.xlu0 13
      %1663 = vperm.xlu0 %1662, %v1397
      %v1664 = vpop.permute.xlu0 %1663
      %v1666 = vmul.f32 %v1664, %v1359
      %v1667 = vmul.f32 %v1664, %v1360
      %v1668 = vmul.f32 %v1664, %v1361
      %1672 = vrot.lane.b32.xlu0 %v1666, 125
      %v1673 = vpop.permute.xlu0 %1672
      %1674 = vrot.lane.b32.xlu0 %v1667, 125
      %v1675 = vpop.permute.xlu0 %1674
      %1676 = vrot.lane.b32.xlu0 %v1668, 125
      %v1677 = vpop.permute.xlu0 %1676
      %v1678 = vsel %vm1470, %v1673, %v1675
      %v1679 = vsel %vm1470, %v1675, %v1677
      %v1683 = vadd.f32 %v1659, %v1678
      %v1684 = vadd.f32 %v1660, %v1679
      %v1685 = vadd.f32 %v1661, %v1677
      %1686 = vset.pattern.permute.xlu0 14
      %1687 = vperm.xlu0 %1686, %v1397
      %v1688 = vpop.permute.xlu0 %1687
      %v1690 = vmul.f32 %v1688, %v1359
      %v1691 = vmul.f32 %v1688, %v1360
      %v1692 = vmul.f32 %v1688, %v1361
      %1696 = vrot.lane.b32.xlu0 %v1690, 124
      %v1697 = vpop.permute.xlu0 %1696
      %1698 = vrot.lane.b32.xlu0 %v1691, 124
      %v1699 = vpop.permute.xlu0 %1698
      %1700 = vrot.lane.b32.xlu0 %v1692, 124
      %v1701 = vpop.permute.xlu0 %1700
      %v1702 = vsel %vm1495, %v1697, %v1699
      %v1703 = vsel %vm1495, %v1699, %v1701
      %v1707 = vadd.f32 %v1683, %v1702
      %v1708 = vadd.f32 %v1684, %v1703
      %v1709 = vadd.f32 %v1685, %v1701
      %1710 = vset.pattern.permute.xlu0 15
      %1711 = vperm.xlu0 %1710, %v1397
      %v1712 = vpop.permute.xlu0 %1711
      %v1714 = vmul.f32 %v1712, %v1359
      %v1715 = vmul.f32 %v1712, %v1360
      %v1716 = vmul.f32 %v1712, %v1361
      %1717 = vset.pattern.permute.xlu0 16
      %1718 = vperm.xlu0 %1717, %v1397
      %v1719 = vpop.permute.xlu0 %1718
      %v1721 = vmul.f32 %v1719, %v1359
      %v1722 = vmul.f32 %v1719, %v1360
      %v1723 = vmul.f32 %v1719, %v1361
      %1727 = vrot.lane.b32.xlu0 %v1721, 127
      %v1728 = vpop.permute.xlu0 %1727
      %1729 = vrot.lane.b32.xlu0 %v1722, 127
      %v1730 = vpop.permute.xlu0 %1729
      %1731 = vrot.lane.b32.xlu0 %v1723, 127
      %v1732 = vpop.permute.xlu0 %1731
      %v1733 = vsel %vm571, %v1728, %v1730
      %v1734 = vsel %vm571, %v1730, %v1732
      %v1738 = vadd.f32 %v1714, %v1733
      %v1739 = vadd.f32 %v1715, %v1734
      %v1740 = vadd.f32 %v1716, %v1732
      %1741 = vset.pattern.permute.xlu0 17
      %1742 = vperm.xlu0 %1741, %v1397
      %v1743 = vpop.permute.xlu0 %1742
      %v1745 = vmul.f32 %v1743, %v1359
      %v1746 = vmul.f32 %v1743, %v1360
      %v1747 = vmul.f32 %v1743, %v1361
      %1751 = vrot.lane.b32.xlu0 %v1745, 126
      %v1752 = vpop.permute.xlu0 %1751
      %1753 = vrot.lane.b32.xlu0 %v1746, 126
      %v1754 = vpop.permute.xlu0 %1753
      %1755 = vrot.lane.b32.xlu0 %v1747, 126
      %v1756 = vpop.permute.xlu0 %1755
      %v1757 = vsel %vm613, %v1752, %v1754
      %v1758 = vsel %vm613, %v1754, %v1756
      %v1762 = vadd.f32 %v1738, %v1757
      %v1763 = vadd.f32 %v1739, %v1758
      %v1764 = vadd.f32 %v1740, %v1756
      %1765 = vset.pattern.permute.xlu0 18
      %1766 = vperm.xlu0 %1765, %v1397
      %v1767 = vpop.permute.xlu0 %1766
      %v1769 = vmul.f32 %v1767, %v1359
      %v1770 = vmul.f32 %v1767, %v1360
      %v1771 = vmul.f32 %v1767, %v1361
      %1775 = vrot.lane.b32.xlu0 %v1769, 125
      %v1776 = vpop.permute.xlu0 %1775
      %1777 = vrot.lane.b32.xlu0 %v1770, 125
      %v1778 = vpop.permute.xlu0 %1777
      %1779 = vrot.lane.b32.xlu0 %v1771, 125
      %v1780 = vpop.permute.xlu0 %1779
      %v1781 = vsel %vm1470, %v1776, %v1778
      %v1782 = vsel %vm1470, %v1778, %v1780
      %v1786 = vadd.f32 %v1762, %v1781
      %v1787 = vadd.f32 %v1763, %v1782
      %v1788 = vadd.f32 %v1764, %v1780
      %1789 = vset.pattern.permute.xlu0 19
      %1790 = vperm.xlu0 %1789, %v1397
      %v1791 = vpop.permute.xlu0 %1790
      %v1793 = vmul.f32 %v1791, %v1359
      %v1794 = vmul.f32 %v1791, %v1360
      %v1795 = vmul.f32 %v1791, %v1361
      %1799 = vrot.lane.b32.xlu0 %v1793, 124
      %v1800 = vpop.permute.xlu0 %1799
      %1801 = vrot.lane.b32.xlu0 %v1794, 124
      %v1802 = vpop.permute.xlu0 %1801
      %1803 = vrot.lane.b32.xlu0 %v1795, 124
      %v1804 = vpop.permute.xlu0 %1803
      %v1805 = vsel %vm1495, %v1800, %v1802
      %v1806 = vsel %vm1495, %v1802, %v1804
      %v1810 = vadd.f32 %v1786, %v1805
      %v1811 = vadd.f32 %v1787, %v1806
      %v1812 = vadd.f32 %v1788, %v1804
      %1813 = vset.pattern.permute.xlu0 20
      %1814 = vperm.xlu0 %1813, %v1397
      %v1815 = vpop.permute.xlu0 %1814
      %v1817 = vmul.f32 %v1815, %v1359
      %v1818 = vmul.f32 %v1815, %v1360
      %v1819 = vmul.f32 %v1815, %v1361
      %1820 = vset.pattern.permute.xlu0 21
      %1821 = vperm.xlu0 %1820, %v1397
      %v1822 = vpop.permute.xlu0 %1821
      %v1824 = vmul.f32 %v1822, %v1359
      %v1825 = vmul.f32 %v1822, %v1360
      %v1826 = vmul.f32 %v1822, %v1361
      %1830 = vrot.lane.b32.xlu0 %v1824, 127
      %v1831 = vpop.permute.xlu0 %1830
      %1832 = vrot.lane.b32.xlu0 %v1825, 127
      %v1833 = vpop.permute.xlu0 %1832
      %1834 = vrot.lane.b32.xlu0 %v1826, 127
      %v1835 = vpop.permute.xlu0 %1834
      %v1836 = vsel %vm571, %v1831, %v1833
      %v1837 = vsel %vm571, %v1833, %v1835
      %v1841 = vadd.f32 %v1817, %v1836
      %v1842 = vadd.f32 %v1818, %v1837
      %v1843 = vadd.f32 %v1819, %v1835
      %1844 = vset.pattern.permute.xlu0 22
      %1845 = vperm.xlu0 %1844, %v1397
      %v1846 = vpop.permute.xlu0 %1845
      %v1848 = vmul.f32 %v1846, %v1359
      %v1849 = vmul.f32 %v1846, %v1360
      %v1850 = vmul.f32 %v1846, %v1361
      %1854 = vrot.lane.b32.xlu0 %v1848, 126
      %v1855 = vpop.permute.xlu0 %1854
      %1856 = vrot.lane.b32.xlu0 %v1849, 126
      %v1857 = vpop.permute.xlu0 %1856
      %1858 = vrot.lane.b32.xlu0 %v1850, 126
      %v1859 = vpop.permute.xlu0 %1858
      %v1860 = vsel %vm613, %v1855, %v1857
      %v1861 = vsel %vm613, %v1857, %v1859
      %v1865 = vadd.f32 %v1841, %v1860
      %v1866 = vadd.f32 %v1842, %v1861
      %v1867 = vadd.f32 %v1843, %v1859
      %1868 = vset.pattern.permute.xlu0 23
      %1869 = vperm.xlu0 %1868, %v1397
      %v1870 = vpop.permute.xlu0 %1869
      %v1872 = vmul.f32 %v1870, %v1359
      %v1873 = vmul.f32 %v1870, %v1360
      %v1874 = vmul.f32 %v1870, %v1361
      %1878 = vrot.lane.b32.xlu0 %v1872, 125
      %v1879 = vpop.permute.xlu0 %1878
      %1880 = vrot.lane.b32.xlu0 %v1873, 125
      %v1881 = vpop.permute.xlu0 %1880
      %1882 = vrot.lane.b32.xlu0 %v1874, 125
      %v1883 = vpop.permute.xlu0 %1882
      %v1884 = vsel %vm1470, %v1879, %v1881
      %v1885 = vsel %vm1470, %v1881, %v1883
      %v1889 = vadd.f32 %v1865, %v1884
      %v1890 = vadd.f32 %v1866, %v1885
      %v1891 = vadd.f32 %v1867, %v1883
      %1892 = vset.pattern.permute.xlu0 24
      %1893 = vperm.xlu0 %1892, %v1397
      %v1894 = vpop.permute.xlu0 %1893
      %v1896 = vmul.f32 %v1894, %v1359
      %v1897 = vmul.f32 %v1894, %v1360
      %v1898 = vmul.f32 %v1894, %v1361
      %1902 = vrot.lane.b32.xlu0 %v1896, 124
      %v1903 = vpop.permute.xlu0 %1902
      %1904 = vrot.lane.b32.xlu0 %v1897, 124
      %v1905 = vpop.permute.xlu0 %1904
      %1906 = vrot.lane.b32.xlu0 %v1898, 124
      %v1907 = vpop.permute.xlu0 %1906
      %v1908 = vsel %vm1495, %v1903, %v1905
      %v1909 = vsel %vm1495, %v1905, %v1907
      %v1913 = vadd.f32 %v1889, %v1908
      %v1914 = vadd.f32 %v1890, %v1909
      %v1915 = vadd.f32 %v1891, %v1907
      %1919 = vrot.lane.b32.xlu0 %v1604, 112
      %v1920 = vpop.permute.xlu0 %1919
      %1921 = vrot.lane.b32.xlu0 %v1605, 112
      %v1922 = vpop.permute.xlu0 %1921
      %1923 = vrot.lane.b32.xlu0 %v1606, 112
      %v1924 = vpop.permute.xlu0 %1923
      %v1925 = vsel %vm655, %v1920, %v1922
      %v1926 = vsel %vm655, %v1922, %v1924
      %v1930 = vadd.f32 %v1501, %v1925
      %v1931 = vadd.f32 %v1502, %v1926
      %v1932 = vadd.f32 %v1503, %v1924
      %1936 = vrot.lane.b32.xlu0 %v1810, 112
      %v1937 = vpop.permute.xlu0 %1936
      %1938 = vrot.lane.b32.xlu0 %v1811, 112
      %v1939 = vpop.permute.xlu0 %1938
      %1940 = vrot.lane.b32.xlu0 %v1812, 112
      %v1941 = vpop.permute.xlu0 %1940
      %v1942 = vsel %vm655, %v1937, %v1939
      %v1943 = vsel %vm655, %v1939, %v1941
      %v1947 = vadd.f32 %v1707, %v1942
      %v1948 = vadd.f32 %v1708, %v1943
      %v1949 = vadd.f32 %v1709, %v1941
      %1953 = vrot.lane.b32.xlu0 %v1947, 96
      %v1954 = vpop.permute.xlu0 %1953
      %1955 = vrot.lane.b32.xlu0 %v1948, 96
      %v1956 = vpop.permute.xlu0 %1955
      %1957 = vrot.lane.b32.xlu0 %v1949, 96
      %v1958 = vpop.permute.xlu0 %1957
      %v1959 = vsel %vm777, %v1954, %v1956
      %v1960 = vsel %vm777, %v1956, %v1958
      %v1964 = vadd.f32 %v1930, %v1959
      %v1965 = vadd.f32 %v1931, %v1960
      %v1966 = vadd.f32 %v1932, %v1958
      %1970 = vrot.lane.b32.xlu0 %v1913, 64
      %v1971 = vpop.permute.xlu0 %1970
      %1972 = vrot.lane.b32.xlu0 %v1914, 64
      %v1973 = vpop.permute.xlu0 %1972
      %1974 = vrot.lane.b32.xlu0 %v1915, 64
      %v1975 = vpop.permute.xlu0 %1974
      %vm1976 = vcmask 523264
      %v1977 = vsel %vm1976, %v1971, %v1973
      %v1978 = vsel %vm1976, %v1973, %v1975
      %v1982 = vadd.f32 %v1964, %v1977
      %v1983 = vadd.f32 %v1965, %v1978
      %v1984 = vadd.f32 %v1966, %v1975
      %v1985 = vsub.f32 %v1328, %v1372
      %v1986 = vsub.f32 %v1329, %v1372
      %v1987 = vsub.f32 %v1330, %v1372
      %v1988 = vand.u32 2147483647, %v1985
      %v1989 = vand.u32 2147483647, %v1986
      %v1990 = vand.u32 2147483647, %v1987
      %1994 = vrot.lane.b32.xlu0 %v1988, 60
      %v1995 = vpop.permute.xlu0 %1994
      %1996 = vrot.lane.b32.xlu0 %v1989, 60
      %v1997 = vpop.permute.xlu0 %1996
      %1998 = vrot.lane.b32.xlu0 %v1990, 60
      %v1999 = vpop.permute.xlu0 %1998
      %vm2000 = vcmask 490496
      %v2001 = vsel %vm2000, %v1995, %v1997
      %v2002 = vsel %vm2000, %v1997, %v1999
      %2005 = vst [vmem:[%s288] sm:$0xff] %v2001
      %2006 = vst [vmem:[%s288 + $0x8] sm:$0xff] %v2002
      %2010 = vrot.lane.b32.xlu0 %v1328, 60
      %v2011 = vpop.permute.xlu0 %2010
      %2012 = vrot.lane.b32.xlu0 %v1329, 60
      %v2013 = vpop.permute.xlu0 %2012
      %2014 = vrot.lane.b32.xlu0 %v1330, 60
      %v2015 = vpop.permute.xlu0 %2014
      %v2016 = vsel %vm2000, %v2011, %v2013
      %v2017 = vsel %vm2000, %v2013, %v2015
      %2020 = vst [vmem:[%s288 + $0x10] sm:$0xff] %v2016
      %2021 = vst [vmem:[%s288 + $0x18] sm:$0xff] %v2017
      %2025 = vrot.lane.b32.xlu0 %v1982, 94
      %v2026 = vpop.permute.xlu0 %2025
      %2027 = vrot.lane.b32.xlu0 %v1983, 94
      %v2028 = vpop.permute.xlu0 %2027
      %2029 = vrot.lane.b32.xlu0 %v1984, 94
      %v2030 = vpop.permute.xlu0 %2029
      %v2031 = vsel %vm851, %v2026, %v2028
      %v2032 = vsel %vm851, %v2028, %v2030
      %2035 = vst [vmem:[%s288 + $0x20] sm:$0xff] %v2031
      %2036 = vst [vmem:[%s288 + $0x28] sm:$0xff] %v2032
      %v2037 = vld [vmem:[#allocation3] sm:$0xff]
      %v2038 = vld [vmem:[#allocation3 + $0x8] sm:$0xff]
      %v2039 = vld [vmem:[#allocation3 + $0x20] sm:$0xff]
      %v2040 = vld [vmem:[#allocation3 + $0x28] sm:$0xff]
      %v2041 = vld [vmem:[#allocation3 + $0x30] sm:$0xff]
      %v2042 = vld [vmem:[#allocation3 + $0x88] sm:$0xff]
      %v2043 = vld [vmem:[#allocation3 + $0x90] sm:$0xff]
      %v2044 = vld [vmem:[#allocation3 + $0x98] sm:$0xff]
      %v2045 = vld [vmem:[#allocation3 + $0xa0] sm:$0xff]
      %v2046 = vld [vmem:[%s3] sm:$0x7]
      %v2048 = vlaneseq
      %v2049 = vshrl.u32 %v2048, 7
      %v2050 = vsub.s32 0, %v2049
      %v2051 = vrot.slane %v2046, %v2050
      %v2052 = vlaneseq
      %v2053 = vshrl.u32 %v2052, 7
      %v2054 = vsub.s32 1, %v2053
      %v2055 = vrot.slane %v2046, %v2054
      %v2056 = vlaneseq
      %v2057 = vshrl.u32 %v2056, 7
      %v2058 = vsub.s32 2, %v2057
      %v2059 = vrot.slane %v2046, %v2058
      %2060 = vrot.lane.b32.xlu0 %v2051, 102
      %v2061 = vpop.permute.xlu0 %2060
      %2062 = vrot.lane.b32.xlu0 %v2055, 102
      %v2063 = vpop.permute.xlu0 %2062
      %2064 = vrot.lane.b32.xlu0 %v2059, 102
      %v2065 = vpop.permute.xlu0 %2064
      %v2066 = vsel %vm313, %v2061, %v2063
      %v2067 = vsel %vm313, %v2063, %v2065
      %v2072 = vmul.f32 %v2042, %v2061
      %v2073 = vmul.f32 %v2043, %v2066
      %v2074 = vmul.f32 %v2044, %v2067
      %v2075 = vmul.f32 %v2045, %v2065
      %v2076 = vld [vmem:[%s283] sm:$0x3]
      %v2078 = vlaneseq
      %v2079 = vshrl.u32 %v2078, 7
      %v2080 = vsub.s32 0, %v2079
      %v2081 = vrot.slane %v2076, %v2080
      %v2082 = vlaneseq
      %v2083 = vshrl.u32 %v2082, 7
      %v2084 = vsub.s32 1, %v2083
      %v2085 = vrot.slane %v2076, %v2084
      %v2088 = vmul.f32 %v2037, %v2081
      %v2089 = vmul.f32 %v2038, %v2085
      %2092 = vrot.lane.b32.xlu0 %v2088, 47
      %v2093 = vpop.permute.xlu0 %2092
      %2094 = vrot.lane.b32.xlu0 %v2089, 47
      %v2095 = vpop.permute.xlu0 %2094
      %vm2096 = vcmask 384000
      %v2097 = vsel %vm2096, %v2093, %v2095
      %v2099 = vsel %vm290, %v2097, 0.0
      %2100 = vadd.xlane.f32.xlu0 %v2099
      %v2101 = vpop.xlane.xlu0 %2100
      %v2102 = vld [vmem:[#allocation3 + $0x38] sm:$0xff]
      %v2103 = vld [vmem:[#allocation3 + $0x40] sm:$0xff]
      %2105 = vrot.lane.b32.xlu0 %v2102, 37
      %v2106 = vpop.permute.xlu0 %2105
      %2108 = vrot.lane.b32.xlu0 %v2102, 33
      %v2109 = vpop.permute.xlu0 %2108
      %2111 = vrot.lane.b32.xlu0 %v2102, 29
      %v2112 = vpop.permute.xlu0 %2111
      %2114 = vrot.lane.b32.xlu0 %v2102, 25
      %v2115 = vpop.permute.xlu0 %2114
      %2118 = vrot.lane.b32.xlu0 %v2102, 21
      %v2119 = vpop.permute.xlu0 %2118
      %2120 = vrot.lane.b32.xlu0 %v2103, 21
      %v2121 = vpop.permute.xlu0 %2120
      %vm2122 = vcmask 171008
      %v2123 = vsel %vm2122, %v2119, %v2121
      %v2125 = vsel %vm1390, %v2106, %v2109
      %v2126 = vsel %vm1392, %v2125, %v2112
      %v2127 = vsel %vm1394, %v2126, %v2115
      %v2128 = vsel %vm1396, %v2127, %v2123
      %2130 = vset.pattern.permute.xlu0 0
      %2131 = vperm.xlu0 %2130, %v2128
      %v2132 = vpop.permute.xlu0 %2131
      %v2134 = vmul.f32 %v2132, %v2072
      %v2135 = vmul.f32 %v2132, %v2073
      %v2136 = vmul.f32 %v2132, %v2074
      %2137 = vset.pattern.permute.xlu0 1
      %2138 = vperm.xlu0 %2137, %v2128
      %v2139 = vpop.permute.xlu0 %2138
      %v2141 = vmul.f32 %v2139, %v2072
      %v2142 = vmul.f32 %v2139, %v2073
      %v2143 = vmul.f32 %v2139, %v2074
      %2147 = vrot.lane.b32.xlu0 %v2141, 127
      %v2148 = vpop.permute.xlu0 %2147
      %2149 = vrot.lane.b32.xlu0 %v2142, 127
      %v2150 = vpop.permute.xlu0 %2149
      %2151 = vrot.lane.b32.xlu0 %v2143, 127
      %v2152 = vpop.permute.xlu0 %2151
      %v2153 = vsel %vm571, %v2148, %v2150
      %v2154 = vsel %vm571, %v2150, %v2152
      %v2158 = vadd.f32 %v2134, %v2153
      %v2159 = vadd.f32 %v2135, %v2154
      %v2160 = vadd.f32 %v2136, %v2152
      %2161 = vset.pattern.permute.xlu0 2
      %2162 = vperm.xlu0 %2161, %v2128
      %v2163 = vpop.permute.xlu0 %2162
      %v2165 = vmul.f32 %v2163, %v2072
      %v2166 = vmul.f32 %v2163, %v2073
      %v2167 = vmul.f32 %v2163, %v2074
      %2171 = vrot.lane.b32.xlu0 %v2165, 126
      %v2172 = vpop.permute.xlu0 %2171
      %2173 = vrot.lane.b32.xlu0 %v2166, 126
      %v2174 = vpop.permute.xlu0 %2173
      %2175 = vrot.lane.b32.xlu0 %v2167, 126
      %v2176 = vpop.permute.xlu0 %2175
      %v2177 = vsel %vm613, %v2172, %v2174
      %v2178 = vsel %vm613, %v2174, %v2176
      %v2182 = vadd.f32 %v2158, %v2177
      %v2183 = vadd.f32 %v2159, %v2178
      %v2184 = vadd.f32 %v2160, %v2176
      %2185 = vset.pattern.permute.xlu0 3
      %2186 = vperm.xlu0 %2185, %v2128
      %v2187 = vpop.permute.xlu0 %2186
      %v2189 = vmul.f32 %v2187, %v2072
      %v2190 = vmul.f32 %v2187, %v2073
      %v2191 = vmul.f32 %v2187, %v2074
      %2195 = vrot.lane.b32.xlu0 %v2189, 125
      %v2196 = vpop.permute.xlu0 %2195
      %2197 = vrot.lane.b32.xlu0 %v2190, 125
      %v2198 = vpop.permute.xlu0 %2197
      %2199 = vrot.lane.b32.xlu0 %v2191, 125
      %v2200 = vpop.permute.xlu0 %2199
      %v2201 = vsel %vm1470, %v2196, %v2198
      %v2202 = vsel %vm1470, %v2198, %v2200
      %v2206 = vadd.f32 %v2182, %v2201
      %v2207 = vadd.f32 %v2183, %v2202
      %v2208 = vadd.f32 %v2184, %v2200
      %2209 = vset.pattern.permute.xlu0 4
      %2210 = vperm.xlu0 %2209, %v2128
      %v2211 = vpop.permute.xlu0 %2210
      %v2213 = vmul.f32 %v2211, %v2072
      %v2214 = vmul.f32 %v2211, %v2073
      %v2215 = vmul.f32 %v2211, %v2074
      %2219 = vrot.lane.b32.xlu0 %v2213, 124
      %v2220 = vpop.permute.xlu0 %2219
      %2221 = vrot.lane.b32.xlu0 %v2214, 124
      %v2222 = vpop.permute.xlu0 %2221
      %2223 = vrot.lane.b32.xlu0 %v2215, 124
      %v2224 = vpop.permute.xlu0 %2223
      %v2225 = vsel %vm1495, %v2220, %v2222
      %v2226 = vsel %vm1495, %v2222, %v2224
      %v2230 = vadd.f32 %v2206, %v2225
      %v2231 = vadd.f32 %v2207, %v2226
      %v2232 = vadd.f32 %v2208, %v2224
      %2233 = vset.pattern.permute.xlu0 5
      %2234 = vperm.xlu0 %2233, %v2128
      %v2235 = vpop.permute.xlu0 %2234
      %v2237 = vmul.f32 %v2235, %v2072
      %v2238 = vmul.f32 %v2235, %v2073
      %v2239 = vmul.f32 %v2235, %v2074
      %2240 = vset.pattern.permute.xlu0 6
      %2241 = vperm.xlu0 %2240, %v2128
      %v2242 = vpop.permute.xlu0 %2241
      %v2244 = vmul.f32 %v2242, %v2072
      %v2245 = vmul.f32 %v2242, %v2073
      %v2246 = vmul.f32 %v2242, %v2074
      %2250 = vrot.lane.b32.xlu0 %v2244, 127
      %v2251 = vpop.permute.xlu0 %2250
      %2252 = vrot.lane.b32.xlu0 %v2245, 127
      %v2253 = vpop.permute.xlu0 %2252
      %2254 = vrot.lane.b32.xlu0 %v2246, 127
      %v2255 = vpop.permute.xlu0 %2254
      %v2256 = vsel %vm571, %v2251, %v2253
      %v2257 = vsel %vm571, %v2253, %v2255
      %v2261 = vadd.f32 %v2237, %v2256
      %v2262 = vadd.f32 %v2238, %v2257
      %v2263 = vadd.f32 %v2239, %v2255
      %2264 = vset.pattern.permute.xlu0 7
      %2265 = vperm.xlu0 %2264, %v2128
      %v2266 = vpop.permute.xlu0 %2265
      %v2268 = vmul.f32 %v2266, %v2072
      %v2269 = vmul.f32 %v2266, %v2073
      %v2270 = vmul.f32 %v2266, %v2074
      %2274 = vrot.lane.b32.xlu0 %v2268, 126
      %v2275 = vpop.permute.xlu0 %2274
      %2276 = vrot.lane.b32.xlu0 %v2269, 126
      %v2277 = vpop.permute.xlu0 %2276
      %2278 = vrot.lane.b32.xlu0 %v2270, 126
      %v2279 = vpop.permute.xlu0 %2278
      %v2280 = vsel %vm613, %v2275, %v2277
      %v2281 = vsel %vm613, %v2277, %v2279
      %v2285 = vadd.f32 %v2261, %v2280
      %v2286 = vadd.f32 %v2262, %v2281
      %v2287 = vadd.f32 %v2263, %v2279
      %2288 = vset.pattern.permute.xlu0 8
      %2289 = vperm.xlu0 %2288, %v2128
      %v2290 = vpop.permute.xlu0 %2289
      %v2292 = vmul.f32 %v2290, %v2072
      %v2293 = vmul.f32 %v2290, %v2073
      %v2294 = vmul.f32 %v2290, %v2074
      %2298 = vrot.lane.b32.xlu0 %v2292, 125
      %v2299 = vpop.permute.xlu0 %2298
      %2300 = vrot.lane.b32.xlu0 %v2293, 125
      %v2301 = vpop.permute.xlu0 %2300
      %2302 = vrot.lane.b32.xlu0 %v2294, 125
      %v2303 = vpop.permute.xlu0 %2302
      %v2304 = vsel %vm1470, %v2299, %v2301
      %v2305 = vsel %vm1470, %v2301, %v2303
      %v2309 = vadd.f32 %v2285, %v2304
      %v2310 = vadd.f32 %v2286, %v2305
      %v2311 = vadd.f32 %v2287, %v2303
      %2312 = vset.pattern.permute.xlu0 9
      %2313 = vperm.xlu0 %2312, %v2128
      %v2314 = vpop.permute.xlu0 %2313
      %v2316 = vmul.f32 %v2314, %v2072
      %v2317 = vmul.f32 %v2314, %v2073
      %v2318 = vmul.f32 %v2314, %v2074
      %2322 = vrot.lane.b32.xlu0 %v2316, 124
      %v2323 = vpop.permute.xlu0 %2322
      %2324 = vrot.lane.b32.xlu0 %v2317, 124
      %v2325 = vpop.permute.xlu0 %2324
      %2326 = vrot.lane.b32.xlu0 %v2318, 124
      %v2327 = vpop.permute.xlu0 %2326
      %v2328 = vsel %vm1495, %v2323, %v2325
      %v2329 = vsel %vm1495, %v2325, %v2327
      %v2333 = vadd.f32 %v2309, %v2328
      %v2334 = vadd.f32 %v2310, %v2329
      %v2335 = vadd.f32 %v2311, %v2327
      %2336 = vset.pattern.permute.xlu0 10
      %2337 = vperm.xlu0 %2336, %v2128
      %v2338 = vpop.permute.xlu0 %2337
      %v2340 = vmul.f32 %v2338, %v2073
      %v2341 = vmul.f32 %v2338, %v2074
      %v2342 = vmul.f32 %v2338, %v2075
      %2343 = vset.pattern.permute.xlu0 11
      %2344 = vperm.xlu0 %2343, %v2128
      %v2345 = vpop.permute.xlu0 %2344
      %v2347 = vmul.f32 %v2345, %v2073
      %v2348 = vmul.f32 %v2345, %v2074
      %v2349 = vmul.f32 %v2345, %v2075
      %2353 = vrot.lane.b32.xlu0 %v2347, 127
      %v2354 = vpop.permute.xlu0 %2353
      %2355 = vrot.lane.b32.xlu0 %v2348, 127
      %v2356 = vpop.permute.xlu0 %2355
      %2357 = vrot.lane.b32.xlu0 %v2349, 127
      %v2358 = vpop.permute.xlu0 %2357
      %v2359 = vsel %vm571, %v2354, %v2356
      %v2360 = vsel %vm571, %v2356, %v2358
      %v2364 = vadd.f32 %v2340, %v2359
      %v2365 = vadd.f32 %v2341, %v2360
      %v2366 = vadd.f32 %v2342, %v2358
      %2367 = vset.pattern.permute.xlu0 12
      %2368 = vperm.xlu0 %2367, %v2128
      %v2369 = vpop.permute.xlu0 %2368
      %v2371 = vmul.f32 %v2369, %v2073
      %v2372 = vmul.f32 %v2369, %v2074
      %v2373 = vmul.f32 %v2369, %v2075
      %2377 = vrot.lane.b32.xlu0 %v2371, 126
      %v2378 = vpop.permute.xlu0 %2377
      %2379 = vrot.lane.b32.xlu0 %v2372, 126
      %v2380 = vpop.permute.xlu0 %2379
      %2381 = vrot.lane.b32.xlu0 %v2373, 126
      %v2382 = vpop.permute.xlu0 %2381
      %v2383 = vsel %vm613, %v2378, %v2380
      %v2384 = vsel %vm613, %v2380, %v2382
      %v2388 = vadd.f32 %v2364, %v2383
      %v2389 = vadd.f32 %v2365, %v2384
      %v2390 = vadd.f32 %v2366, %v2382
      %2391 = vset.pattern.permute.xlu0 13
      %2392 = vperm.xlu0 %2391, %v2128
      %v2393 = vpop.permute.xlu0 %2392
      %v2395 = vmul.f32 %v2393, %v2073
      %v2396 = vmul.f32 %v2393, %v2074
      %v2397 = vmul.f32 %v2393, %v2075
      %2401 = vrot.lane.b32.xlu0 %v2395, 125
      %v2402 = vpop.permute.xlu0 %2401
      %2403 = vrot.lane.b32.xlu0 %v2396, 125
      %v2404 = vpop.permute.xlu0 %2403
      %2405 = vrot.lane.b32.xlu0 %v2397, 125
      %v2406 = vpop.permute.xlu0 %2405
      %v2407 = vsel %vm1470, %v2402, %v2404
      %v2408 = vsel %vm1470, %v2404, %v2406
      %v2412 = vadd.f32 %v2388, %v2407
      %v2413 = vadd.f32 %v2389, %v2408
      %v2414 = vadd.f32 %v2390, %v2406
      %2415 = vset.pattern.permute.xlu0 14
      %2416 = vperm.xlu0 %2415, %v2128
      %v2417 = vpop.permute.xlu0 %2416
      %v2419 = vmul.f32 %v2417, %v2073
      %v2420 = vmul.f32 %v2417, %v2074
      %v2421 = vmul.f32 %v2417, %v2075
      %2425 = vrot.lane.b32.xlu0 %v2419, 124
      %v2426 = vpop.permute.xlu0 %2425
      %2427 = vrot.lane.b32.xlu0 %v2420, 124
      %v2428 = vpop.permute.xlu0 %2427
      %2429 = vrot.lane.b32.xlu0 %v2421, 124
      %v2430 = vpop.permute.xlu0 %2429
      %v2431 = vsel %vm1495, %v2426, %v2428
      %v2432 = vsel %vm1495, %v2428, %v2430
      %v2436 = vadd.f32 %v2412, %v2431
      %v2437 = vadd.f32 %v2413, %v2432
      %v2438 = vadd.f32 %v2414, %v2430
      %2439 = vset.pattern.permute.xlu0 15
      %2440 = vperm.xlu0 %2439, %v2128
      %v2441 = vpop.permute.xlu0 %2440
      %v2443 = vmul.f32 %v2441, %v2073
      %v2444 = vmul.f32 %v2441, %v2074
      %v2445 = vmul.f32 %v2441, %v2075
      %2446 = vset.pattern.permute.xlu0 16
      %2447 = vperm.xlu0 %2446, %v2128
      %v2448 = vpop.permute.xlu0 %2447
      %v2450 = vmul.f32 %v2448, %v2073
      %v2451 = vmul.f32 %v2448, %v2074
      %v2452 = vmul.f32 %v2448, %v2075
      %2456 = vrot.lane.b32.xlu0 %v2450, 127
      %v2457 = vpop.permute.xlu0 %2456
      %2458 = vrot.lane.b32.xlu0 %v2451, 127
      %v2459 = vpop.permute.xlu0 %2458
      %2460 = vrot.lane.b32.xlu0 %v2452, 127
      %v2461 = vpop.permute.xlu0 %2460
      %v2462 = vsel %vm571, %v2457, %v2459
      %v2463 = vsel %vm571, %v2459, %v2461
      %v2467 = vadd.f32 %v2443, %v2462
      %v2468 = vadd.f32 %v2444, %v2463
      %v2469 = vadd.f32 %v2445, %v2461
      %2470 = vset.pattern.permute.xlu0 17
      %2471 = vperm.xlu0 %2470, %v2128
      %v2472 = vpop.permute.xlu0 %2471
      %v2474 = vmul.f32 %v2472, %v2073
      %v2475 = vmul.f32 %v2472, %v2074
      %v2476 = vmul.f32 %v2472, %v2075
      %2480 = vrot.lane.b32.xlu0 %v2474, 126
      %v2481 = vpop.permute.xlu0 %2480
      %2482 = vrot.lane.b32.xlu0 %v2475, 126
      %v2483 = vpop.permute.xlu0 %2482
      %2484 = vrot.lane.b32.xlu0 %v2476, 126
      %v2485 = vpop.permute.xlu0 %2484
      %v2486 = vsel %vm613, %v2481, %v2483
      %v2487 = vsel %vm613, %v2483, %v2485
      %v2491 = vadd.f32 %v2467, %v2486
      %v2492 = vadd.f32 %v2468, %v2487
      %v2493 = vadd.f32 %v2469, %v2485
      %2494 = vset.pattern.permute.xlu0 18
      %2495 = vperm.xlu0 %2494, %v2128
      %v2496 = vpop.permute.xlu0 %2495
      %v2498 = vmul.f32 %v2496, %v2073
      %v2499 = vmul.f32 %v2496, %v2074
      %v2500 = vmul.f32 %v2496, %v2075
      %2504 = vrot.lane.b32.xlu0 %v2498, 125
      %v2505 = vpop.permute.xlu0 %2504
      %2506 = vrot.lane.b32.xlu0 %v2499, 125
      %v2507 = vpop.permute.xlu0 %2506
      %2508 = vrot.lane.b32.xlu0 %v2500, 125
      %v2509 = vpop.permute.xlu0 %2508
      %v2510 = vsel %vm1470, %v2505, %v2507
      %v2511 = vsel %vm1470, %v2507, %v2509
      %v2515 = vadd.f32 %v2491, %v2510
      %v2516 = vadd.f32 %v2492, %v2511
      %v2517 = vadd.f32 %v2493, %v2509
      %2518 = vset.pattern.permute.xlu0 19
      %2519 = vperm.xlu0 %2518, %v2128
      %v2520 = vpop.permute.xlu0 %2519
      %v2522 = vmul.f32 %v2520, %v2073
      %v2523 = vmul.f32 %v2520, %v2074
      %v2524 = vmul.f32 %v2520, %v2075
      %2528 = vrot.lane.b32.xlu0 %v2522, 124
      %v2529 = vpop.permute.xlu0 %2528
      %2530 = vrot.lane.b32.xlu0 %v2523, 124
      %v2531 = vpop.permute.xlu0 %2530
      %2532 = vrot.lane.b32.xlu0 %v2524, 124
      %v2533 = vpop.permute.xlu0 %2532
      %v2534 = vsel %vm1495, %v2529, %v2531
      %v2535 = vsel %vm1495, %v2531, %v2533
      %v2539 = vadd.f32 %v2515, %v2534
      %v2540 = vadd.f32 %v2516, %v2535
      %v2541 = vadd.f32 %v2517, %v2533
      %2542 = vset.pattern.permute.xlu0 20
      %2543 = vperm.xlu0 %2542, %v2128
      %v2544 = vpop.permute.xlu0 %2543
      %v2546 = vmul.f32 %v2544, %v2073
      %v2547 = vmul.f32 %v2544, %v2074
      %v2548 = vmul.f32 %v2544, %v2075
      %2549 = vset.pattern.permute.xlu0 21
      %2550 = vperm.xlu0 %2549, %v2128
      %v2551 = vpop.permute.xlu0 %2550
      %v2553 = vmul.f32 %v2551, %v2073
      %v2554 = vmul.f32 %v2551, %v2074
      %v2555 = vmul.f32 %v2551, %v2075
      %2559 = vrot.lane.b32.xlu0 %v2553, 127
      %v2560 = vpop.permute.xlu0 %2559
      %2561 = vrot.lane.b32.xlu0 %v2554, 127
      %v2562 = vpop.permute.xlu0 %2561
      %2563 = vrot.lane.b32.xlu0 %v2555, 127
      %v2564 = vpop.permute.xlu0 %2563
      %v2565 = vsel %vm571, %v2560, %v2562
      %v2566 = vsel %vm571, %v2562, %v2564
      %v2570 = vadd.f32 %v2546, %v2565
      %v2571 = vadd.f32 %v2547, %v2566
      %v2572 = vadd.f32 %v2548, %v2564
      %2573 = vset.pattern.permute.xlu0 22
      %2574 = vperm.xlu0 %2573, %v2128
      %v2575 = vpop.permute.xlu0 %2574
      %v2577 = vmul.f32 %v2575, %v2073
      %v2578 = vmul.f32 %v2575, %v2074
      %v2579 = vmul.f32 %v2575, %v2075
      %2583 = vrot.lane.b32.xlu0 %v2577, 126
      %v2584 = vpop.permute.xlu0 %2583
      %2585 = vrot.lane.b32.xlu0 %v2578, 126
      %v2586 = vpop.permute.xlu0 %2585
      %2587 = vrot.lane.b32.xlu0 %v2579, 126
      %v2588 = vpop.permute.xlu0 %2587
      %v2589 = vsel %vm613, %v2584, %v2586
      %v2590 = vsel %vm613, %v2586, %v2588
      %v2594 = vadd.f32 %v2570, %v2589
      %v2595 = vadd.f32 %v2571, %v2590
      %v2596 = vadd.f32 %v2572, %v2588
      %2597 = vset.pattern.permute.xlu0 23
      %2598 = vperm.xlu0 %2597, %v2128
      %v2599 = vpop.permute.xlu0 %2598
      %v2601 = vmul.f32 %v2599, %v2073
      %v2602 = vmul.f32 %v2599, %v2074
      %v2603 = vmul.f32 %v2599, %v2075
      %2607 = vrot.lane.b32.xlu0 %v2601, 125
      %v2608 = vpop.permute.xlu0 %2607
      %2609 = vrot.lane.b32.xlu0 %v2602, 125
      %v2610 = vpop.permute.xlu0 %2609
      %2611 = vrot.lane.b32.xlu0 %v2603, 125
      %v2612 = vpop.permute.xlu0 %2611
      %v2613 = vsel %vm1470, %v2608, %v2610
      %v2614 = vsel %vm1470, %v2610, %v2612
      %v2618 = vadd.f32 %v2594, %v2613
      %v2619 = vadd.f32 %v2595, %v2614
      %v2620 = vadd.f32 %v2596, %v2612
      %2621 = vset.pattern.permute.xlu0 24
      %2622 = vperm.xlu0 %2621, %v2128
      %v2623 = vpop.permute.xlu0 %2622
      %v2625 = vmul.f32 %v2623, %v2073
      %v2626 = vmul.f32 %v2623, %v2074
      %v2627 = vmul.f32 %v2623, %v2075
      %2631 = vrot.lane.b32.xlu0 %v2625, 124
      %v2632 = vpop.permute.xlu0 %2631
      %2633 = vrot.lane.b32.xlu0 %v2626, 124
      %v2634 = vpop.permute.xlu0 %2633
      %2635 = vrot.lane.b32.xlu0 %v2627, 124
      %v2636 = vpop.permute.xlu0 %2635
      %v2637 = vsel %vm1495, %v2632, %v2634
      %v2638 = vsel %vm1495, %v2634, %v2636
      %v2642 = vadd.f32 %v2618, %v2637
      %v2643 = vadd.f32 %v2619, %v2638
      %v2644 = vadd.f32 %v2620, %v2636
      %2648 = vrot.lane.b32.xlu0 %v2333, 112
      %v2649 = vpop.permute.xlu0 %2648
      %2650 = vrot.lane.b32.xlu0 %v2334, 112
      %v2651 = vpop.permute.xlu0 %2650
      %2652 = vrot.lane.b32.xlu0 %v2335, 112
      %v2653 = vpop.permute.xlu0 %2652
      %v2654 = vsel %vm655, %v2649, %v2651
      %v2655 = vsel %vm655, %v2651, %v2653
      %v2659 = vadd.f32 %v2230, %v2654
      %v2660 = vadd.f32 %v2231, %v2655
      %v2661 = vadd.f32 %v2232, %v2653
      %2665 = vrot.lane.b32.xlu0 %v2539, 112
      %v2666 = vpop.permute.xlu0 %2665
      %2667 = vrot.lane.b32.xlu0 %v2540, 112
      %v2668 = vpop.permute.xlu0 %2667
      %2669 = vrot.lane.b32.xlu0 %v2541, 112
      %v2670 = vpop.permute.xlu0 %2669
      %v2671 = vsel %vm655, %v2666, %v2668
      %v2672 = vsel %vm655, %v2668, %v2670
      %v2676 = vadd.f32 %v2436, %v2671
      %v2677 = vadd.f32 %v2437, %v2672
      %v2678 = vadd.f32 %v2438, %v2670
      %2682 = vrot.lane.b32.xlu0 %v2676, 96
      %v2683 = vpop.permute.xlu0 %2682
      %2684 = vrot.lane.b32.xlu0 %v2677, 96
      %v2685 = vpop.permute.xlu0 %2684
      %2686 = vrot.lane.b32.xlu0 %v2678, 96
      %v2687 = vpop.permute.xlu0 %2686
      %v2688 = vsel %vm777, %v2683, %v2685
      %v2689 = vsel %vm777, %v2685, %v2687
      %v2693 = vadd.f32 %v2659, %v2683
      %v2694 = vadd.f32 %v2660, %v2688
      %v2695 = vadd.f32 %v2661, %v2689
      %2699 = vrot.lane.b32.xlu0 %v2642, 64
      %v2700 = vpop.permute.xlu0 %2699
      %2701 = vrot.lane.b32.xlu0 %v2643, 64
      %v2702 = vpop.permute.xlu0 %2701
      %2703 = vrot.lane.b32.xlu0 %v2644, 64
      %v2704 = vpop.permute.xlu0 %2703
      %v2705 = vsel %vm1976, %v2700, %v2702
      %v2706 = vsel %vm1976, %v2702, %v2704
      %v2710 = vadd.f32 %v2693, %v2700
      %v2711 = vadd.f32 %v2694, %v2705
      %v2712 = vadd.f32 %v2695, %v2706
      %v2713 = vsub.f32 %v2039, %v2101
      %v2714 = vsub.f32 %v2040, %v2101
      %v2715 = vsub.f32 %v2041, %v2101
      %v2716 = vand.u32 2147483647, %v2713
      %v2717 = vand.u32 2147483647, %v2714
      %v2718 = vand.u32 2147483647, %v2715
      %2722 = vrot.lane.b32.xlu0 %v2716, 120
      %v2723 = vpop.permute.xlu0 %2722
      %2724 = vrot.lane.b32.xlu0 %v2717, 120
      %v2725 = vpop.permute.xlu0 %2724
      %2726 = vrot.lane.b32.xlu0 %v2718, 120
      %v2727 = vpop.permute.xlu0 %2726
      %vm2728 = vcmask 982016
      %v2729 = vsel %vm2728, %v2723, %v2725
      %v2730 = vsel %vm2728, %v2725, %v2727
      %2733 = vst [vmem:[%s288 + $0x30] sm:$0xff] %v2729
      %2734 = vst [vmem:[%s288 + $0x38] sm:$0xff] %v2730
      %2738 = vrot.lane.b32.xlu0 %v2039, 120
      %v2739 = vpop.permute.xlu0 %2738
      %2740 = vrot.lane.b32.xlu0 %v2040, 120
      %v2741 = vpop.permute.xlu0 %2740
      %2742 = vrot.lane.b32.xlu0 %v2041, 120
      %v2743 = vpop.permute.xlu0 %2742
      %v2744 = vsel %vm2728, %v2739, %v2741
      %v2745 = vsel %vm2728, %v2741, %v2743
      %2748 = vst [vmem:[%s288 + $0x40] sm:$0xff] %v2744
      %2749 = vst [vmem:[%s288 + $0x48] sm:$0xff] %v2745
      %2753 = vrot.lane.b32.xlu0 %v2710, 26
      %v2754 = vpop.permute.xlu0 %2753
      %2755 = vrot.lane.b32.xlu0 %v2711, 26
      %v2756 = vpop.permute.xlu0 %2755
      %2757 = vrot.lane.b32.xlu0 %v2712, 26
      %v2758 = vpop.permute.xlu0 %2757
      %vm2759 = vcmask 211968
      %v2760 = vsel %vm2759, %v2754, %v2756
      %v2761 = vsel %vm2759, %v2756, %v2758
      %2764 = vst [vmem:[%s288 + $0x50] sm:$0xff] %v2760
      %2765 = vst [vmem:[%s288 + $0x58] sm:$0xff] %v2761
      %p2766 = scmp.lt.s32.totalorder %s17, 1
      %s2767 = scalar_select %p2766, %s17, 1
      %s2768 = smul.addr %s2767, 12
      %s2769 = smul.addr %s2768, 8
      %s2770 = scalar_lea.vmem %s6, %s2769
      // Predicated region
      $region45: #{neck_all_layer_forward.1} parent=43 // pred_check
        %p2771 = pneg %p176
      $region46: #{neck_all_layer_forward.1} parent=43 // pred_check_branch
        %2773 = sbr.rel (%p2771) target = $region48
      $region47: #{neck_all_layer_forward.1} parent=43 // pred_region
        _
      $region48: #{neck_all_layer_forward.1} parent=43 // pred_fallthru
        _
    $region44: #{neck_all_layer_forward.1} parent=5 // pred_fallthru
      _
    %p2774 = scmp.le.s32.totalorder 2, %s12
    // Predicated region
    $region49: #{neck_all_layer_forward.1} parent=5 // pred_check
      %p2775 = pneg %p2774
    $region50: #{neck_all_layer_forward.1} parent=5 // pred_check_branch
      %2777 = sbr.rel (%p2775) target = $region52
    $region51: #{neck_all_layer_forward.1} parent=5 // pred_region
      %s2778 = ssub.s32 %s12, 2
      // Predicated region
      $region53: #{neck_all_layer_forward.1} parent=51 // pred_check
        %p2779 = pneg %p182
      $region54: #{neck_all_layer_forward.1} parent=51 // pred_check_branch
        %2781 = sbr.rel (%p2779) target = $region56
      $region55: #{neck_all_layer_forward.1} parent=51 // pred_region
        %p2782 = scmp.lt.s32.totalorder %s18, 1
        %s2783 = scalar_select %p2782, %s18, 1
        %s2784 = smul.addr %s2783, 12
        %s2785 = smul.addr %s2784, 8
        %s2786 = scalar_lea.vmem %s6, %s2785
      $region56: #{neck_all_layer_forward.1} parent=51 // pred_fallthru
        _
    $region52: #{neck_all_layer_forward.1} parent=5 // pred_fallthru
      _
  $region6: #{neck_all_layer_forward.1} parent=0 // loop_footer
    %s16 = sadd.s32 1, %s12
  $region7: #{neck_all_layer_forward.1} parent=0 // loop_footer_branch
    %11 = sbr.rel target = $region3
  $region8: #{neck_all_layer_forward.1} parent=0 // loop_exit
    _

</llo_original>
